<compile_context>
chip_gen: v5e
topology: v5e:2x2
jax: 0.10.0
libtpu: 0.0.40
codegen_flags: <defaults>
</compile_context>

<pallas_src>
from functools import partial

import numpy as np
import jax
import jax.numpy as jnp
from jax import lax
from jax.experimental import pallas as pl
from jax.experimental.pallas import tpu as pltpu

_CP = 128  # lane-padded output-channel tile (one 128-lane vreg width)


# ----------------------------------------------------------------------------
# Pallas kernel: fused 3x3 conv (padding=1, no bias) + folded BN + ReLU, NHWC.
# ----------------------------------------------------------------------------
def _bottleneck_kernel(x_ref, u_ref, wx_ref, wu_ref, b_ref, o_ref, acc_ref):
    # x_ref  : (1, H, W, Cx)      bf16  original features (one image)
    # u_ref  : (1, H, W, Cu)      bf16  concatenated pyramid-stage outputs
    # wx_ref : (1, Cx, 9*_CP)     bf16  taps for the x channels, BN scale folded,
    #                                   columns ordered (tap t = dy*3+dx, cout)
    # wu_ref : (1, Cu, 9*_CP)     bf16  taps for the u channels
    # b_ref  : (1, 1, _CP)        f32   folded BN bias (zero on padded channels)
    # o_ref  : (1, H, W, _CP)     f32   lane-dense output tile
    # acc_ref: (H+2, W+2, _CP)    f32   scratch; the 1-pixel margin absorbs the
    #                                   contributions that fall on the padding.
    _, H, W, Cx = x_ref.shape
    Cu = u_ref.shape[3]

    # Flatten each source once (layout preserving when W % 8 == 0) and run a
    # single wide MXU matmul per source against all nine taps at once
    # (K = C, N = 9 * 128), accumulating in f32.
    xf = x_ref[0].reshape(H * W, Cx)
    uf = u_ref[0].reshape(H * W, Cu)
    y = jnp.dot(xf, wx_ref[0], preferred_element_type=jnp.float32)
    y = y + jnp.dot(uf, wu_ref[0], preferred_element_type=jnp.float32)

    # Scatter the nine tap planes at their (dy, dx) offsets:
    #   out[h, w] += p_t[h + dy - 1, w + dx - 1]   (zero outside the image)
    # by adding each full plane into the padded accumulator window starting at
    # (2 - dy, 2 - dx); out-of-image terms land on the margin and are dropped.
    acc_ref[...] = jnp.zeros_like(acc_ref)
    for dy in range(3):
        for dx in range(3):
            t = dy * 3 + dx
            p = y[:, t * _CP:(t + 1) * _CP].reshape(H, W, _CP)  # lane-aligned
            a, b = 2 - dy, 2 - dx
            acc_ref[a:a + H, b:b + W, :] += p

    out = jnp.maximum(acc_ref[1:H + 1, 1:W + 1, :] + b_ref[0, 0], 0.0)
    o_ref[0] = out.astype(o_ref.dtype)


def bottleneck_conv_bn_relu(x16, u16, wx, wu, bias):
    """x16, u16: (N, H, W, C*) bf16; wx/wu: (n_ct, C*, 9*_CP) bf16;
    bias: (n_ct, 1, _CP) f32.  Returns (N, H, W, n_ct*_CP) f32."""
    N, H, W, Cx = x16.shape
    Cu = u16.shape[-1]
    n_ct = wx.shape[0]
    return pl.pallas_call(
        _bottleneck_kernel,
        out_shape=jax.ShapeDtypeStruct((N, H, W, n_ct * _CP), jnp.float32),
        grid=(N, n_ct),
        in_specs=[
            pl.BlockSpec((1, H, W, Cx), lambda n, j: (n, 0, 0, 0)),
            pl.BlockSpec((1, H, W, Cu), lambda n, j: (n, 0, 0, 0)),
            pl.BlockSpec((1, Cx, 9 * _CP), lambda n, j: (j, 0, 0)),
            pl.BlockSpec((1, Cu, 9 * _CP), lambda n, j: (j, 0, 0)),
            pl.BlockSpec((1, 1, _CP), lambda n, j: (j, 0, 0)),
        ],
        out_specs=pl.BlockSpec((1, H, W, _CP), lambda n, j: (n, 0, 0, j)),
        scratch_shapes=[pltpu.VMEM((H + 2, W + 2, _CP), jnp.float32)],
        compiler_params=pltpu.CompilerParams(
            dimension_semantics=("parallel", "parallel"),
            # Cap well above what the toy shapes need; raise toward the
            # per-generation physical VMEM when strip-tiling real PSPNet sizes.
            vmem_limit_bytes=64 * 1024 * 1024,
        ),
    )(x16, u16, wx, wu, bias)


# ----------------------------------------------------------------------------
# Glue: adaptive-pool / bilinear-upsample matrices (match PyTorch semantics).
# ----------------------------------------------------------------------------
def adaptive_pool_matrix(out_size, in_size):
    P = np.zeros((out_size, in_size), np.float32)
    for j in range(out_size):
        start = (j * in_size) // out_size
        end = -(-((j + 1) * in_size) // out_size)  # ceil
        P[j, start:end] = 1.0 / (end - start)
    return P


def upsample_matrix(out_size, in_size):
    # bilinear, align_corners=True
    U = np.zeros((out_size, in_size), np.float32)
    if in_size == 1:
        U[:, 0] = 1.0
        return U
    scale = (in_size - 1) / (out_size - 1) if out_size > 1 else 0.0
    for i in range(out_size):
        src = i * scale
        f = int(np.floor(src))
        f = min(f, in_size - 1)
        c = min(f + 1, in_size - 1)
        t = src - f
        U[i, f] += 1.0 - t
        U[i, c] += t
    return U


def _bn_fold(key, c):
    k1, k2, k3, k4 = jax.random.split(key, 4)
    gamma = 1.0 + 0.1 * jax.random.normal(k1, (c,), jnp.float32)
    beta = 0.1 * jax.random.normal(k2, (c,), jnp.float32)
    mean = 0.1 * jax.random.normal(k3, (c,), jnp.float32)
    var = 0.5 + jax.random.uniform(k4, (c,), jnp.float32)
    eps = 1e-5
    scale = gamma / jnp.sqrt(var + eps)
    bias = beta - mean * scale
    return scale, bias


def init_params(key, in_channels, bin_sizes):
    out_channels = in_channels // len(bin_sizes)
    cat_channels = in_channels + out_channels * len(bin_sizes)
    keys = iter(jax.random.split(key, 2 * len(bin_sizes) + 2))

    stages = []
    for _ in bin_sizes:
        w1 = jax.random.normal(next(keys), (in_channels, out_channels),
                               jnp.float32) / np.sqrt(in_channels)
        s, b = _bn_fold(next(keys), out_channels)
        stages.append((w1, s, b))

    w_btl = jax.random.normal(next(keys), (3, 3, cat_channels, out_channels),
                              jnp.float32) / np.sqrt(9 * cat_channels)
    s_btl, b_btl = _bn_fold(next(keys), out_channels)
    return {"stages": stages, "w_btl": w_btl, "s_btl": s_btl, "b_btl": b_btl}


def build_pyramids(x_nhwc, params, bin_sizes):
    """AdaptiveAvgPool2d(b) -> 1x1 conv -> BN -> ReLU -> bilinear upsample
    (align_corners=True) per bin size, concatenated along channels.  Plain-JAX
    glue: the pooled maps are tiny (b in {1, 2, 3, 6})."""
    N, H, W, C = x_nhwc.shape
    outs = []
    for b, (w1, s, bb) in zip(bin_sizes, params["stages"]):
        Ph = jnp.asarray(adaptive_pool_matrix(b, H))
        Pw = jnp.asarray(adaptive_pool_matrix(b, W))
        Uh = jnp.asarray(upsample_matrix(H, b))
        Uw = jnp.asarray(upsample_matrix(W, b))
        t = jnp.einsum("ph,nhwc->npwc", Ph, x_nhwc)          # pool over H
        pooled = jnp.einsum("qw,npwc->npqc", Pw, t)          # pool over W
        z = jnp.einsum("npqc,co->npqo", pooled, w1)          # 1x1 conv
        z = jnp.maximum(z * s + bb, 0.0)                     # BN + ReLU
        u = jnp.einsum("hp,npqo->nhqo", Uh, z)               # upsample H
        outs.append(jnp.einsum("wq,nhqo->nhwo", Uw, u))      # upsample W
    return jnp.concatenate(outs, axis=-1)


def prep_bottleneck_weights(params, cin):
    """Fold BN scale into the 3x3 conv weights, pad Cout to a multiple of 128,
    split per source (x vs. pyramid stages) and lay the nine taps out side by
    side along the output-lane axis: wide[:, (dy*3+dx)*128 + c]."""
    w = params["w_btl"]                                   # (3, 3, Ctot, Cout)
    s = params["s_btl"]
    b = params["b_btl"]
    Ctot, Cout = w.shape[2], w.shape[3]
    n_ct = -(-Cout // _CP)
    pad = n_ct * _CP - Cout

    wf = w * s[None, None, None, :]                       # fold BN scale
    wf = jnp.pad(wf, ((0, 0), (0, 0), (0, 0), (0, pad)))
    wf = wf.reshape(3, 3, Ctot, n_ct, _CP)
    wf = jnp.transpose(wf, (3, 2, 0, 1, 4)).reshape(n_ct, Ctot, 9 * _CP)
    wx = wf[:, :cin, :].astype(jnp.bfloat16)
    wu = wf[:, cin:, :].astype(jnp.bfloat16)
    bias = jnp.pad(b, (0, pad)).reshape(n_ct, 1, _CP).astype(jnp.float32)
    return wx, wu, bias, Cout


@partial(jax.jit, static_argnums=(2,))
def psp_module_forward(features_nchw, params, bin_sizes):
    x = jnp.transpose(features_nchw, (0, 2, 3, 1))        # NCHW -> NHWC
    N, H, W, Cin = x.shape
    u = build_pyramids(x, params, bin_sizes)              # (N, H, W, Cin) f32
    wx, wu, bias, Cout = prep_bottleneck_weights(params, Cin)
    y = bottleneck_conv_bn_relu(x.astype(jnp.bfloat16),
                                u.astype(jnp.bfloat16), wx, wu, bias)
    y = y[..., :Cout]                                     # drop lane padding
    # Dropout2d(0.1) is an inference-time identity.
    return jnp.transpose(y, (0, 3, 1, 2))                 # NHWC -> NCHW


# ----------------------------------------------------------------------------
# References.
# ----------------------------------------------------------------------------
@partial(jax.jit, static_argnums=(2,))
def psp_module_forward_ref_bf16(features_nchw, params, bin_sizes):
    """lax.conv reference with the same bf16 quantization of activations and
    BN-folded weights as the Pallas path (f32 accumulation)."""
    x = jnp.transpose(features_nchw, (0, 2, 3, 1))
    u = build_pyramids(x, params, bin_sizes)
    cat = jnp.concatenate([x, u], axis=-1)
    cat = cat.astype(jnp.bfloat16).astype(jnp.float32)
    w = params["w_btl"] * params["s_btl"][None, None, None, :]
    w = w.astype(jnp.bfloat16).astype(jnp.float32)
    y = lax.conv_general_dilated(cat, w, (1, 1), "SAME",
                                 dimension_numbers=("NHWC", "HWIO", "NHWC"))
    y = jnp.maximum(y + params["b_btl"], 0.0)
    return jnp.transpose(y, (0, 3, 1, 2))


@partial(jax.jit, static_argnums=(2,))
def psp_module_forward_ref_f32(features_nchw, params, bin_sizes):
    """Pure-f32 reference (lax.conv), BN applied after the conv."""
    x = jnp.transpose(features_nchw, (0, 2, 3, 1))
    u = build_pyramids(x, params, bin_sizes)
    cat = jnp.concatenate([x, u], axis=-1)
    y = lax.conv_general_dilated(cat, params["w_btl"], (1, 1), "SAME",
                                 dimension_numbers=("NHWC", "HWIO", "NHWC"))
    y = jnp.maximum(y * params["s_btl"] + params["b_btl"], 0.0)
    return jnp.transpose(y, (0, 3, 1, 2))


if __name__ == "__main__":
    key = jax.random.PRNGKey(0)
    k_x, k_p = jax.random.split(key)

    N, C, H, W = 2, 16, 16, 16
    bin_sizes = (1, 2, 3, 6)

    features = jax.random.normal(k_x, (N, C, H, W), jnp.float32)
    params = init_params(k_p, C, bin_sizes)

    out = jax.block_until_ready(psp_module_forward(features, params, bin_sizes))
    ref16 = jax.block_until_ready(
        psp_module_forward_ref_bf16(features, params, bin_sizes))
    ref32 = jax.block_until_ready(
        psp_module_forward_ref_f32(features, params, bin_sizes))

    assert out.shape == (N, C // len(bin_sizes), H, W), out.shape
    err16 = float(jnp.max(jnp.abs(out - ref16)))
    err32 = float(jnp.max(jnp.abs(out - ref32)))
    # Tight check vs. a reference using identical bf16 inputs / weights.
    assert err16 < 1e-2, f"bf16-matched reference mismatch: {err16}"
    # Loose sanity check vs. the pure-f32 reference (bf16 quantization slack).
    assert err32 < 1e-1, f"f32 reference mismatch: {err32}"

    print("KERNEL_OK")
</pallas_src>

<mosaic_0001>
module attributes {stable_mosaic.version = 11 : i64} {
  func.func @_bottleneck_kernel(%arg0: i32, %arg1: i32, %arg2: memref<1x16x16x16xbf16, #tpu.memory_space<vmem>>, %arg3: memref<1x16x16x16xbf16, #tpu.memory_space<vmem>>, %arg4: memref<1x16x1152xbf16, #tpu.memory_space<vmem>>, %arg5: memref<1x16x1152xbf16, #tpu.memory_space<vmem>>, %arg6: memref<1x1x128xf32, #tpu.memory_space<vmem>>, %arg7: memref<1x16x16x128xf32, #tpu.memory_space<vmem>>, %arg8: memref<18x18x128xf32, #tpu.memory_space<vmem>>) attributes {dimension_semantics = [#tpu.dimension_semantics<parallel>, #tpu.dimension_semantics<parallel>], iteration_bounds = array<i64: 2, 1>, scalar_prefetch = 0 : i64, scratch_operands = 1 : i64, tpu.core_type = #tpu.core_type<tc>, window_params = [{transform_indices = @transform_0, window_bounds = array<i64: 1, 16, 16, 16>}, {transform_indices = @transform_1, window_bounds = array<i64: 1, 16, 16, 16>}, {transform_indices = @transform_2, window_bounds = array<i64: 1, 16, 1152>}, {transform_indices = @transform_3, window_bounds = array<i64: 1, 16, 1152>}, {transform_indices = @transform_4, window_bounds = array<i64: 1, 1, 128>}, {transform_indices = @transform_5, window_bounds = array<i64: 1, 16, 16, 128>}]} {
    %c0 = arith.constant 0 : index
    %c0_0 = arith.constant 0 : index
    %c0_1 = arith.constant 0 : index
    %c0_2 = arith.constant 0 : index
    %0 = vector.load %arg2[%c0, %c0_0, %c0_1, %c0_2] : memref<1x16x16x16xbf16, #tpu.memory_space<vmem>>, vector<1x16x16x16xbf16>
    %1 = vector.shape_cast %0 : vector<1x16x16x16xbf16> to vector<16x16x16xbf16>
    %2 = vector.shape_cast %1 : vector<16x16x16xbf16> to vector<256x16xbf16>
    %c0_3 = arith.constant 0 : index
    %c0_4 = arith.constant 0 : index
    %c0_5 = arith.constant 0 : index
    %c0_6 = arith.constant 0 : index
    %3 = vector.load %arg3[%c0_3, %c0_4, %c0_5, %c0_6] : memref<1x16x16x16xbf16, #tpu.memory_space<vmem>>, vector<1x16x16x16xbf16>
    %4 = vector.shape_cast %3 : vector<1x16x16x16xbf16> to vector<16x16x16xbf16>
    %5 = vector.shape_cast %4 : vector<16x16x16xbf16> to vector<256x16xbf16>
    %c0_7 = arith.constant 0 : index
    %c0_8 = arith.constant 0 : index
    %c0_9 = arith.constant 0 : index
    %6 = vector.load %arg4[%c0_7, %c0_8, %c0_9] : memref<1x16x1152xbf16, #tpu.memory_space<vmem>>, vector<1x16x1152xbf16>
    %7 = vector.shape_cast %6 : vector<1x16x1152xbf16> to vector<16x1152xbf16>
    %cst = arith.constant dense<0.000000e+00> : vector<256x1152xf32>
    %8 = tpu.matmul %2, %7, %cst {dimension_numbers = #tpu.dot_dimension_numbers<[1], [0], [0], [1], [0, 0, 1, 1], [], []>} : vector<256x16xbf16>, vector<16x1152xbf16>, vector<256x1152xf32> -> vector<256x1152xf32>
    %c0_10 = arith.constant 0 : index
    %c0_11 = arith.constant 0 : index
    %c0_12 = arith.constant 0 : index
    %9 = vector.load %arg5[%c0_10, %c0_11, %c0_12] : memref<1x16x1152xbf16, #tpu.memory_space<vmem>>, vector<1x16x1152xbf16>
    %10 = vector.shape_cast %9 : vector<1x16x1152xbf16> to vector<16x1152xbf16>
    %cst_13 = arith.constant dense<0.000000e+00> : vector<256x1152xf32>
    %11 = tpu.matmul %5, %10, %cst_13 {dimension_numbers = #tpu.dot_dimension_numbers<[1], [0], [0], [1], [0, 0, 1, 1], [], []>} : vector<256x16xbf16>, vector<16x1152xbf16>, vector<256x1152xf32> -> vector<256x1152xf32>
    %12 = arith.addf %8, %11 : vector<256x1152xf32>
    %cst_14 = arith.constant 0.000000e+00 : f32
    %13 = vector.broadcast %cst_14 : f32 to vector<18x18x128xf32>
    %c0_15 = arith.constant 0 : index
    %c0_16 = arith.constant 0 : index
    %c0_17 = arith.constant 0 : index
    %14 = vector.load %arg8[%c0_15, %c0_16, %c0_17] : memref<18x18x128xf32, #tpu.memory_space<vmem>>, vector<18x18x128xf32>
    tpu.vector_store %arg8[%c0_15, %c0_16, %c0_17], %13 {strides = array<i32>} : memref<18x18x128xf32, #tpu.memory_space<vmem>>, vector<18x18x128xf32>,
    %15 = vector.extract_strided_slice %12 {offsets = [0, 0], sizes = [256, 128], strides = [1, 1]} : vector<256x1152xf32> to vector<256x128xf32>
    %16 = vector.shape_cast %15 : vector<256x128xf32> to vector<16x16x128xf32>
    %c2 = arith.constant 2 : index
    %c2_18 = arith.constant 2 : index
    %c0_19 = arith.constant 0 : index
    %17 = vector.load %arg8[%c2, %c2_18, %c0_19] : memref<18x18x128xf32, #tpu.memory_space<vmem>>, vector<16x16x128xf32>
    %18 = arith.addf %17, %16 : vector<16x16x128xf32>
    %c2_20 = arith.constant 2 : index
    %c2_21 = arith.constant 2 : index
    %c0_22 = arith.constant 0 : index
    %19 = vector.load %arg8[%c2_20, %c2_21, %c0_22] : memref<18x18x128xf32, #tpu.memory_space<vmem>>, vector<16x16x128xf32>
    tpu.vector_store %arg8[%c2_20, %c2_21, %c0_22], %18 {strides = array<i32>} : memref<18x18x128xf32, #tpu.memory_space<vmem>>, vector<16x16x128xf32>,
    %20 = vector.extract_strided_slice %12 {offsets = [0, 128], sizes = [256, 128], strides = [1, 1]} : vector<256x1152xf32> to vector<256x128xf32>
    %21 = vector.shape_cast %20 : vector<256x128xf32> to vector<16x16x128xf32>
    %c2_23 = arith.constant 2 : index
    %c1 = arith.constant 1 : index
    %c0_24 = arith.constant 0 : index
    %22 = vector.load %arg8[%c2_23, %c1, %c0_24] : memref<18x18x128xf32, #tpu.memory_space<vmem>>, vector<16x16x128xf32>
    %23 = arith.addf %22, %21 : vector<16x16x128xf32>
    %c2_25 = arith.constant 2 : index
    %c1_26 = arith.constant 1 : index
    %c0_27 = arith.constant 0 : index
    %24 = vector.load %arg8[%c2_25, %c1_26, %c0_27] : memref<18x18x128xf32, #tpu.memory_space<vmem>>, vector<16x16x128xf32>
    tpu.vector_store %arg8[%c2_25, %c1_26, %c0_27], %23 {strides = array<i32>} : memref<18x18x128xf32, #tpu.memory_space<vmem>>, vector<16x16x128xf32>,
    %25 = vector.extract_strided_slice %12 {offsets = [0, 256], sizes = [256, 128], strides = [1, 1]} : vector<256x1152xf32> to vector<256x128xf32>
    %26 = vector.shape_cast %25 : vector<256x128xf32> to vector<16x16x128xf32>
    %c2_28 = arith.constant 2 : index
    %c0_29 = arith.constant 0 : index
    %c0_30 = arith.constant 0 : index
    %27 = vector.load %arg8[%c2_28, %c0_29, %c0_30] : memref<18x18x128xf32, #tpu.memory_space<vmem>>, vector<16x16x128xf32>
    %28 = arith.addf %27, %26 : vector<16x16x128xf32>
    %c2_31 = arith.constant 2 : index
    %c0_32 = arith.constant 0 : index
    %c0_33 = arith.constant 0 : index
    %29 = vector.load %arg8[%c2_31, %c0_32, %c0_33] : memref<18x18x128xf32, #tpu.memory_space<vmem>>, vector<16x16x128xf32>
    tpu.vector_store %arg8[%c2_31, %c0_32, %c0_33], %28 {strides = array<i32>} : memref<18x18x128xf32, #tpu.memory_space<vmem>>, vector<16x16x128xf32>,
    %30 = vector.extract_strided_slice %12 {offsets = [0, 384], sizes = [256, 128], strides = [1, 1]} : vector<256x1152xf32> to vector<256x128xf32>
    %31 = vector.shape_cast %30 : vector<256x128xf32> to vector<16x16x128xf32>
    %c1_34 = arith.constant 1 : index
    %c2_35 = arith.constant 2 : index
    %c0_36 = arith.constant 0 : index
    %32 = vector.load %arg8[%c1_34, %c2_35, %c0_36] : memref<18x18x128xf32, #tpu.memory_space<vmem>>, vector<16x16x128xf32>
    %33 = arith.addf %32, %31 : vector<16x16x128xf32>
    %c1_37 = arith.constant 1 : index
    %c2_38 = arith.constant 2 : index
    %c0_39 = arith.constant 0 : index
    %34 = vector.load %arg8[%c1_37, %c2_38, %c0_39] : memref<18x18x128xf32, #tpu.memory_space<vmem>>, vector<16x16x128xf32>
    tpu.vector_store %arg8[%c1_37, %c2_38, %c0_39], %33 {strides = array<i32>} : memref<18x18x128xf32, #tpu.memory_space<vmem>>, vector<16x16x128xf32>,
    %35 = vector.extract_strided_slice %12 {offsets = [0, 512], sizes = [256, 128], strides = [1, 1]} : vector<256x1152xf32> to vector<256x128xf32>
    %36 = vector.shape_cast %35 : vector<256x128xf32> to vector<16x16x128xf32>
    %c1_40 = arith.constant 1 : index
    %c1_41 = arith.constant 1 : index
    %c0_42 = arith.constant 0 : index
    %37 = vector.load %arg8[%c1_40, %c1_41, %c0_42] : memref<18x18x128xf32, #tpu.memory_space<vmem>>, vector<16x16x128xf32>
    %38 = arith.addf %37, %36 : vector<16x16x128xf32>
    %c1_43 = arith.constant 1 : index
    %c1_44 = arith.constant 1 : index
    %c0_45 = arith.constant 0 : index
    %39 = vector.load %arg8[%c1_43, %c1_44, %c0_45] : memref<18x18x128xf32, #tpu.memory_space<vmem>>, vector<16x16x128xf32>
    tpu.vector_store %arg8[%c1_43, %c1_44, %c0_45], %38 {strides = array<i32>} : memref<18x18x128xf32, #tpu.memory_space<vmem>>, vector<16x16x128xf32>,
    %40 = vector.extract_strided_slice %12 {offsets = [0, 640], sizes = [256, 128], strides = [1, 1]} : vector<256x1152xf32> to vector<256x128xf32>
    %41 = vector.shape_cast %40 : vector<256x128xf32> to vector<16x16x128xf32>
    %c1_46 = arith.constant 1 : index
    %c0_47 = arith.constant 0 : index
    %c0_48 = arith.constant 0 : index
    %42 = vector.load %arg8[%c1_46, %c0_47, %c0_48] : memref<18x18x128xf32, #tpu.memory_space<vmem>>, vector<16x16x128xf32>
    %43 = arith.addf %42, %41 : vector<16x16x128xf32>
    %c1_49 = arith.constant 1 : index
    %c0_50 = arith.constant 0 : index
    %c0_51 = arith.constant 0 : index
    %44 = vector.load %arg8[%c1_49, %c0_50, %c0_51] : memref<18x18x128xf32, #tpu.memory_space<vmem>>, vector<16x16x128xf32>
    tpu.vector_store %arg8[%c1_49, %c0_50, %c0_51], %43 {strides = array<i32>} : memref<18x18x128xf32, #tpu.memory_space<vmem>>, vector<16x16x128xf32>,
    %45 = vector.extract_strided_slice %12 {offsets = [0, 768], sizes = [256, 128], strides = [1, 1]} : vector<256x1152xf32> to vector<256x128xf32>
    %46 = vector.shape_cast %45 : vector<256x128xf32> to vector<16x16x128xf32>
    %c0_52 = arith.constant 0 : index
    %c2_53 = arith.constant 2 : index
    %c0_54 = arith.constant 0 : index
    %47 = vector.load %arg8[%c0_52, %c2_53, %c0_54] : memref<18x18x128xf32, #tpu.memory_space<vmem>>, vector<16x16x128xf32>
    %48 = arith.addf %47, %46 : vector<16x16x128xf32>
    %c0_55 = arith.constant 0 : index
    %c2_56 = arith.constant 2 : index
    %c0_57 = arith.constant 0 : index
    %49 = vector.load %arg8[%c0_55, %c2_56, %c0_57] : memref<18x18x128xf32, #tpu.memory_space<vmem>>, vector<16x16x128xf32>
    tpu.vector_store %arg8[%c0_55, %c2_56, %c0_57], %48 {strides = array<i32>} : memref<18x18x128xf32, #tpu.memory_space<vmem>>, vector<16x16x128xf32>,
    %50 = vector.extract_strided_slice %12 {offsets = [0, 896], sizes = [256, 128], strides = [1, 1]} : vector<256x1152xf32> to vector<256x128xf32>
    %51 = vector.shape_cast %50 : vector<256x128xf32> to vector<16x16x128xf32>
    %c0_58 = arith.constant 0 : index
    %c1_59 = arith.constant 1 : index
    %c0_60 = arith.constant 0 : index
    %52 = vector.load %arg8[%c0_58, %c1_59, %c0_60] : memref<18x18x128xf32, #tpu.memory_space<vmem>>, vector<16x16x128xf32>
    %53 = arith.addf %52, %51 : vector<16x16x128xf32>
    %c0_61 = arith.constant 0 : index
    %c1_62 = arith.constant 1 : index
    %c0_63 = arith.constant 0 : index
    %54 = vector.load %arg8[%c0_61, %c1_62, %c0_63] : memref<18x18x128xf32, #tpu.memory_space<vmem>>, vector<16x16x128xf32>
    tpu.vector_store %arg8[%c0_61, %c1_62, %c0_63], %53 {strides = array<i32>} : memref<18x18x128xf32, #tpu.memory_space<vmem>>, vector<16x16x128xf32>,
    %55 = vector.extract_strided_slice %12 {offsets = [0, 1024], sizes = [256, 128], strides = [1, 1]} : vector<256x1152xf32> to vector<256x128xf32>
    %56 = vector.shape_cast %55 : vector<256x128xf32> to vector<16x16x128xf32>
    %c0_64 = arith.constant 0 : index
    %c0_65 = arith.constant 0 : index
    %c0_66 = arith.constant 0 : index
    %57 = vector.load %arg8[%c0_64, %c0_65, %c0_66] : memref<18x18x128xf32, #tpu.memory_space<vmem>>, vector<16x16x128xf32>
    %58 = arith.addf %57, %56 : vector<16x16x128xf32>
    %c0_67 = arith.constant 0 : index
    %c0_68 = arith.constant 0 : index
    %c0_69 = arith.constant 0 : index
    %59 = vector.load %arg8[%c0_67, %c0_68, %c0_69] : memref<18x18x128xf32, #tpu.memory_space<vmem>>, vector<16x16x128xf32>
    tpu.vector_store %arg8[%c0_67, %c0_68, %c0_69], %58 {strides = array<i32>} : memref<18x18x128xf32, #tpu.memory_space<vmem>>, vector<16x16x128xf32>,
    %c1_70 = arith.constant 1 : index
    %c1_71 = arith.constant 1 : index
    %c0_72 = arith.constant 0 : index
    %60 = vector.load %arg8[%c1_70, %c1_71, %c0_72] : memref<18x18x128xf32, #tpu.memory_space<vmem>>, vector<16x16x128xf32>
    %c0_73 = arith.constant 0 : index
    %c0_74 = arith.constant 0 : index
    %c0_75 = arith.constant 0 : index
    %61 = vector.load %arg6[%c0_73, %c0_74, %c0_75] : memref<1x1x128xf32, #tpu.memory_space<vmem>>, vector<1x1x128xf32>
    %62 = vector.shape_cast %61 : vector<1x1x128xf32> to vector<128xf32>
    %63 = vector.shape_cast %62 : vector<128xf32> to vector<1x1x128xf32>
    %64 = vector.broadcast %63 : vector<1x1x128xf32> to vector<16x16x128xf32>
    %65 = arith.addf %60, %64 : vector<16x16x128xf32>
    %cst_76 = arith.constant 0.000000e+00 : f32
    %66 = vector.broadcast %cst_76 : f32 to vector<16x16x128xf32>
    %67 = arith.maximumf %65, %66 : vector<16x16x128xf32>
    %c0_77 = arith.constant 0 : index
    %c0_78 = arith.constant 0 : index
    %c0_79 = arith.constant 0 : index
    %c0_80 = arith.constant 0 : index
    %68 = vector.load %arg7[%c0_77, %c0_78, %c0_79, %c0_80] : memref<1x16x16x128xf32, #tpu.memory_space<vmem>>, vector<1x16x16x128xf32>
    %69 = vector.shape_cast %68 : vector<1x16x16x128xf32> to vector<16x16x128xf32>
    %70 = vector.shape_cast %67 : vector<16x16x128xf32> to vector<1x16x16x128xf32>
    tpu.vector_store %arg7[%c0_77, %c0_78, %c0_79, %c0_80], %70 {strides = array<i32>} : memref<1x16x16x128xf32, #tpu.memory_space<vmem>>, vector<1x16x16x128xf32>,
    return
  }
  func.func @transform_0(%arg0: i32, %arg1: i32) -> (i32, i32, i32, i32) {
    %c0_i32 = arith.constant 0 : i32
    %c0_i32_0 = arith.constant 0 : i32
    %c0_i32_1 = arith.constant 0 : i32
    %c0_i32_2 = arith.constant 0 : i32
    return %arg0, %c0_i32, %c0_i32_0, %c0_i32_1 : i32, i32, i32, i32
  }
  func.func @transform_1(%arg0: i32, %arg1: i32) -> (i32, i32, i32, i32) {
    %c0_i32 = arith.constant 0 : i32
    %c0_i32_0 = arith.constant 0 : i32
    %c0_i32_1 = arith.constant 0 : i32
    %c0_i32_2 = arith.constant 0 : i32
    return %arg0, %c0_i32, %c0_i32_0, %c0_i32_1 : i32, i32, i32, i32
  }
  func.func @transform_2(%arg0: i32, %arg1: i32) -> (i32, i32, i32) {
    %c0_i32 = arith.constant 0 : i32
    %c0_i32_0 = arith.constant 0 : i32
    %c0_i32_1 = arith.constant 0 : i32
    return %arg1, %c0_i32, %c0_i32_0 : i32, i32, i32
  }
  func.func @transform_3(%arg0: i32, %arg1: i32) -> (i32, i32, i32) {
    %c0_i32 = arith.constant 0 : i32
    %c0_i32_0 = arith.constant 0 : i32
    %c0_i32_1 = arith.constant 0 : i32
    return %arg1, %c0_i32, %c0_i32_0 : i32, i32, i32
  }
  func.func @transform_4(%arg0: i32, %arg1: i32) -> (i32, i32, i32) {
    %c0_i32 = arith.constant 0 : i32
    %c0_i32_0 = arith.constant 0 : i32
    %c0_i32_1 = arith.constant 0 : i32
    return %arg1, %c0_i32, %c0_i32_0 : i32, i32, i32
  }
  func.func @transform_5(%arg0: i32, %arg1: i32) -> (i32, i32, i32, i32) {
    %c0_i32 = arith.constant 0 : i32
    %c0_i32_0 = arith.constant 0 : i32
    %c0_i32_1 = arith.constant 0 : i32
    return %arg0, %c0_i32, %c0_i32_0, %arg1 : i32, i32, i32, i32
  }
}

</mosaic_0001>

<llo_original>
// kernel: psp_module_forward.1
$region0: #{psp_module_forward.1}
  #allocation0 [shape = 'u32[]', space=smem, size = 0x4, offset = 0x4, fixed_abs, tag = 'smem constant byte address 0x4 - core index']
  #allocation1 [shape = 'u32[72,128]{1,0:T(1,128)}', space=vmem, size = 0x9000, scoped, tag = 'internal scratch']
  #allocation2 [shape = 'f32[18,18,128]{2,1,0:T(8,128)}', space=vmem, size = 0x36000, scoped, tag = 'scratch operand']
  %s0 = inlined_call_operand.vmem [shape: bf16[2,16,16,16], index: 0, kind: input, shape index: {}]
  %s1 = inlined_call_operand.vmem [shape: bf16[2,16,16,16], index: 1, kind: input, shape index: {}]
  %s2 = inlined_call_operand.vmem [shape: bf16[1,16,1152], index: 2, kind: input, shape index: {}]
  %s3 = inlined_call_operand.vmem [shape: bf16[1,16,1152], index: 3, kind: input, shape index: {}]
  %s4 = inlined_call_operand.vmem [shape: f32[1,1,128], index: 4, kind: input, shape index: {}]
  %s5 = inlined_call_operand.vmem [shape: f32[2,16,16,128], index: 5, kind: output, shape index: {}]
  %s6 = sld [smem:[#allocation0]]
  $region53: #{psp_module_forward.1} parent=0
    _
  %s8 = ssub.s32 1, %s6
  %s9 = scalar_select 0, %s8, %s6
  loop: start=0, step=1, limit=4
  $region2: #{psp_module_forward.1} parent=0 // loop_pre_header
    _
  $region3: #{psp_module_forward.1} parent=0 // loop_header
    %s11 = sphi 0, %s15
    %p12 = scmp.ge.s32.totalorder %s11, 4
    %s18 = sphi 0, %s30
    %s19 = sphi 0, %s26
    %s20 = sphi 0, %s18
    %s21 = sphi 0, %s19
    %s22 = sphi 0, %s20
    %s23 = sphi 0, %s21
    %s33 = sphi 0, %s35
    %s36 = sphi 0, %s33
    %s37 = sphi 0, %s36
    %s53 = sphi 0, %s37
    %s59 = sphi 0, %s61
    %s62 = sphi 0, %s59
    %s63 = sphi 0, %s62
    %s79 = sphi 0, %s63
    %s85 = sphi 0, %s87
    %s88 = sphi 0, %s85
    %s89 = sphi 0, %s88
    %s105 = sphi 0, %s89
    %s111 = sphi 0, %s113
    %s114 = sphi 0, %s111
    %s115 = sphi 0, %s114
    %s131 = sphi 0, %s115
    %s137 = sphi 0, %s139
    %s140 = sphi 0, %s137
    %s141 = sphi 0, %s140
    %s157 = sphi 0, %s141
    %s165 = sphi 0, %s167
    %s168 = sphi 0, %s165
    %s169 = sphi 0, %s168
    %s185 = sphi 0, %s169
  $region4: #{psp_module_forward.1} parent=0 // loop_header_branch
    %14 = sbr.rel (%p12) target = $region8
  $region5: #{psp_module_forward.1} parent=0 // loop_body
    %s16 = ssub.s32 %s11, 1
    %s17 = ssub.s32 %s11, 2
    %s24 = sadd.s32 1, %s19
    %p25 = scmp.ge.s32.totalorder %s24, 1
    %s26 = scalar_select %p25, 0, %s24
    %s27 = sadd.s32 1, %s18
    %s28 = scalar_select %p25, %s27, %s18
    %p29 = scmp.ge.s32.totalorder %s28, 2
    %s30 = scalar_select %p29, 0, %s28
    %s31 = ssub.s32 %s18, %s30
    %p32 = scmp.eq.s32.totalorder %s31, 0
    %s34 = sadd.s32 %s33, 1
    %s35 = scalar_select %p32, %s33, %s34
    %p38 = pneg %p32
    %p39 = scmp.eq.s32.totalorder %s11, 1
    %p40 = por %p38, %p39
    %p41 = scmp.ne.s32.totalorder %s33, %s36
    %p42 = scmp.eq.s32.totalorder %s11, 0
    %p43 = por %p41, %p42
    %p44 = scmp.ne.s32.totalorder %s33, %s36
    %p45 = scmp.eq.s32.totalorder %s16, 1
    %p46 = por %p44, %p45
    %p47 = scmp.ne.s32.totalorder %s36, %s37
    %p48 = scmp.eq.s32.totalorder %s16, 0
    %p49 = por %p47, %p48
    %p50 = scmp.ne.s32.totalorder %s36, %s37
    %p51 = scmp.eq.s32.totalorder %s17, 1
    %p52 = por %p50, %p51
    %p54 = scmp.ne.s32.totalorder %s37, %s53
    %p55 = scmp.eq.s32.totalorder %s17, 0
    %p56 = por %p54, %p55
    %s57 = ssub.s32 %s18, %s30
    %p58 = scmp.eq.s32.totalorder %s57, 0
    %s60 = sadd.s32 %s59, 1
    %s61 = scalar_select %p58, %s59, %s60
    %p64 = pneg %p58
    %p65 = scmp.eq.s32.totalorder %s11, 1
    %p66 = por %p64, %p65
    %p67 = scmp.ne.s32.totalorder %s59, %s62
    %p68 = scmp.eq.s32.totalorder %s11, 0
    %p69 = por %p67, %p68
    %p70 = scmp.ne.s32.totalorder %s59, %s62
    %p71 = scmp.eq.s32.totalorder %s16, 1
    %p72 = por %p70, %p71
    %p73 = scmp.ne.s32.totalorder %s62, %s63
    %p74 = scmp.eq.s32.totalorder %s16, 0
    %p75 = por %p73, %p74
    %p76 = scmp.ne.s32.totalorder %s62, %s63
    %p77 = scmp.eq.s32.totalorder %s17, 1
    %p78 = por %p76, %p77
    %p80 = scmp.ne.s32.totalorder %s63, %s79
    %p81 = scmp.eq.s32.totalorder %s17, 0
    %p82 = por %p80, %p81
    %s83 = ssub.s32 %s19, %s26
    %p84 = scmp.eq.s32.totalorder %s83, 0
    %s86 = sadd.s32 %s85, 1
    %s87 = scalar_select %p84, %s85, %s86
    %p90 = pneg %p84
    %p91 = scmp.eq.s32.totalorder %s11, 1
    %p92 = por %p90, %p91
    %p93 = scmp.ne.s32.totalorder %s85, %s88
    %p94 = scmp.eq.s32.totalorder %s11, 0
    %p95 = por %p93, %p94
    %p96 = scmp.ne.s32.totalorder %s85, %s88
    %p97 = scmp.eq.s32.totalorder %s16, 1
    %p98 = por %p96, %p97
    %p99 = scmp.ne.s32.totalorder %s88, %s89
    %p100 = scmp.eq.s32.totalorder %s16, 0
    %p101 = por %p99, %p100
    %p102 = scmp.ne.s32.totalorder %s88, %s89
    %p103 = scmp.eq.s32.totalorder %s17, 1
    %p104 = por %p102, %p103
    %p106 = scmp.ne.s32.totalorder %s89, %s105
    %p107 = scmp.eq.s32.totalorder %s17, 0
    %p108 = por %p106, %p107
    %s109 = ssub.s32 %s19, %s26
    %p110 = scmp.eq.s32.totalorder %s109, 0
    %s112 = sadd.s32 %s111, 1
    %s113 = scalar_select %p110, %s111, %s112
    %p116 = pneg %p110
    %p117 = scmp.eq.s32.totalorder %s11, 1
    %p118 = por %p116, %p117
    %p119 = scmp.ne.s32.totalorder %s111, %s114
    %p120 = scmp.eq.s32.totalorder %s11, 0
    %p121 = por %p119, %p120
    %p122 = scmp.ne.s32.totalorder %s111, %s114
    %p123 = scmp.eq.s32.totalorder %s16, 1
    %p124 = por %p122, %p123
    %p125 = scmp.ne.s32.totalorder %s114, %s115
    %p126 = scmp.eq.s32.totalorder %s16, 0
    %p127 = por %p125, %p126
    %p128 = scmp.ne.s32.totalorder %s114, %s115
    %p129 = scmp.eq.s32.totalorder %s17, 1
    %p130 = por %p128, %p129
    %p132 = scmp.ne.s32.totalorder %s115, %s131
    %p133 = scmp.eq.s32.totalorder %s17, 0
    %p134 = por %p132, %p133
    %s135 = ssub.s32 %s19, %s26
    %p136 = scmp.eq.s32.totalorder %s135, 0
    %s138 = sadd.s32 %s137, 1
    %s139 = scalar_select %p136, %s137, %s138
    %p142 = pneg %p136
    %p143 = scmp.eq.s32.totalorder %s11, 1
    %p144 = por %p142, %p143
    %p145 = scmp.ne.s32.totalorder %s137, %s140
    %p146 = scmp.eq.s32.totalorder %s11, 0
    %p147 = por %p145, %p146
    %p148 = scmp.ne.s32.totalorder %s137, %s140
    %p149 = scmp.eq.s32.totalorder %s16, 1
    %p150 = por %p148, %p149
    %p151 = scmp.ne.s32.totalorder %s140, %s141
    %p152 = scmp.eq.s32.totalorder %s16, 0
    %p153 = por %p151, %p152
    %p154 = scmp.ne.s32.totalorder %s140, %s141
    %p155 = scmp.eq.s32.totalorder %s17, 1
    %p156 = por %p154, %p155
    %p158 = scmp.ne.s32.totalorder %s141, %s157
    %p159 = scmp.eq.s32.totalorder %s17, 0
    %p160 = por %p158, %p159
    %s161 = ssub.s32 %s18, %s30
    %s162 = ssub.s32 %s19, %s26
    %s163 = sor.u32 %s161, %s162
    %p164 = scmp.eq.s32.totalorder %s163, 0
    %s166 = sadd.s32 %s165, 1
    %s167 = scalar_select %p164, %s165, %s166
    %p170 = pneg %p164
    %p171 = scmp.eq.s32.totalorder %s11, 1
    %p172 = por %p170, %p171
    %p173 = scmp.ne.s32.totalorder %s165, %s168
    %p174 = scmp.eq.s32.totalorder %s11, 0
    %p175 = por %p173, %p174
    %p176 = scmp.ne.s32.totalorder %s165, %s168
    %p177 = scmp.eq.s32.totalorder %s16, 1
    %p178 = por %p176, %p177
    %p179 = scmp.ne.s32.totalorder %s168, %s169
    %p180 = scmp.eq.s32.totalorder %s16, 0
    %p181 = por %p179, %p180
    %p182 = scmp.ne.s32.totalorder %s168, %s169
    %p183 = scmp.eq.s32.totalorder %s17, 1
    %p184 = por %p182, %p183
    %p186 = scmp.ne.s32.totalorder %s169, %s185
    %p187 = scmp.eq.s32.totalorder %s17, 0
    %p188 = por %p186, %p187
    %p189 = scmp.le.s32.totalorder 1, %s11
    %p190 = scmp.lt.s32.totalorder %s11, 3
    %p191 = pnand %p189, %p190
    %p192 = pneg %p191
    // Predicated region
    $region9: #{psp_module_forward.1} parent=5 // pred_check
      _
    $region10: #{psp_module_forward.1} parent=5 // pred_check_branch
      %194 = sbr.rel (%p191) target = $region12
    $region11: #{psp_module_forward.1} parent=5 // pred_region
      %s195 = ssub.s32 %s11, 1
      // Predicated region
      $region13: #{psp_module_forward.1} parent=11 // pred_check
        %p196 = pneg %p101
      $region14: #{psp_module_forward.1} parent=11 // pred_check_branch
        %198 = sbr.rel (%p196) target = $region16
      $region15: #{psp_module_forward.1} parent=11 // pred_region
        %p199 = scmp.lt.s32.totalorder %s21, 0
        %s200 = scalar_select %p199, %s21, 0
        %s201 = smul.addr %s200, 18
        %s202 = smul.addr %s201, 4
        %s203 = scalar_lea.vmem %s2, %s202
      $region16: #{psp_module_forward.1} parent=11 // pred_fallthru
        _
      // Predicated region
      $region17: #{psp_module_forward.1} parent=11 // pred_check
        %p204 = pneg %p127
      $region18: #{psp_module_forward.1} parent=11 // pred_check_branch
        %206 = sbr.rel (%p204) target = $region20
      $region19: #{psp_module_forward.1} parent=11 // pred_region
        %p207 = scmp.lt.s32.totalorder %s21, 0
        %s208 = scalar_select %p207, %s21, 0
        %s209 = smul.addr %s208, 18
        %s210 = smul.addr %s209, 4
        %s211 = scalar_lea.vmem %s3, %s210
      $region20: #{psp_module_forward.1} parent=11 // pred_fallthru
        _
      // Predicated region
      $region21: #{psp_module_forward.1} parent=11 // pred_check
        %p212 = pneg %p153
      $region22: #{psp_module_forward.1} parent=11 // pred_check_branch
        %214 = sbr.rel (%p212) target = $region24
      $region23: #{psp_module_forward.1} parent=11 // pred_region
        %p215 = scmp.lt.s32.totalorder %s21, 0
        %s216 = scalar_select %p215, %s21, 0
        %s217 = scalar_lea.vmem %s4, %s216
      $region24: #{psp_module_forward.1} parent=11 // pred_fallthru
        _
    $region12: #{psp_module_forward.1} parent=5 // pred_fallthru
      _
    %p218 = scmp.lt.s32.totalorder %s11, 2
    // Predicated region
    $region25: #{psp_module_forward.1} parent=5 // pred_check
      %p219 = pneg %p218
    $region26: #{psp_module_forward.1} parent=5 // pred_check_branch
      %221 = sbr.rel (%p219) target = $region28
    $region27: #{psp_module_forward.1} parent=5 // pred_region
      // Predicated region
      $region29: #{psp_module_forward.1} parent=27 // pred_check
        %p222 = pneg %p43
      $region30: #{psp_module_forward.1} parent=27 // pred_check_branch
        %224 = sbr.rel (%p222) target = $region32
      $region31: #{psp_module_forward.1} parent=27 // pred_region
        %p225 = scmp.lt.s32.totalorder %s18, 1
        %s226 = scalar_select %p225, %s18, 1
        %s227 = smul.addr %s226, 32
        %s228 = smul.addr %s227, 4
        %s229 = scalar_lea.vmem %s0, %s228
      $region32: #{psp_module_forward.1} parent=27 // pred_fallthru
        _
      // Predicated region
      $region33: #{psp_module_forward.1} parent=27 // pred_check
        %p230 = pneg %p69
      $region34: #{psp_module_forward.1} parent=27 // pred_check_branch
        %232 = sbr.rel (%p230) target = $region36
      $region35: #{psp_module_forward.1} parent=27 // pred_region
        %p233 = scmp.lt.s32.totalorder %s18, 1
        %s234 = scalar_select %p233, %s18, 1
        %s235 = smul.addr %s234, 32
        %s236 = smul.addr %s235, 4
        %s237 = scalar_lea.vmem %s1, %s236
      $region36: #{psp_module_forward.1} parent=27 // pred_fallthru
        _
    $region28: #{psp_module_forward.1} parent=5 // pred_fallthru
      _
    %p238 = scmp.le.s32.totalorder 1, %s11
    %p239 = scmp.lt.s32.totalorder %s11, 3
    %p240 = pnand %p238, %p239
    %p241 = pneg %p240
    // Predicated region
    $region37: #{psp_module_forward.1} parent=5 // pred_check
      _
    $region38: #{psp_module_forward.1} parent=5 // pred_check_branch
      %243 = sbr.rel (%p240) target = $region40
    $region39: #{psp_module_forward.1} parent=5 // pred_region
      %s244 = ssub.s32 %s11, 1
      %p245 = scmp.lt.s32.totalorder %s20, 1
      %s246 = scalar_select %p245, %s20, 1
      %s247 = smul.addr %s246, 32
      %s248 = smul.addr %s247, 4
      %s249 = scalar_lea.vmem %s0, %s248
      %p250 = pneg %p49
      %p251 = pneg %p46
      %p252 = scmp.lt.s32.totalorder %s20, 1
      %s253 = scalar_select %p252, %s20, 1
      %s254 = smul.addr %s253, 32
      %s255 = smul.addr %s254, 4
      %s256 = scalar_lea.vmem %s1, %s255
      %p257 = pneg %p75
      %p258 = pneg %p72
      %p259 = scmp.lt.s32.totalorder %s21, 0
      %s260 = scalar_select %p259, %s21, 0
      %s261 = smul.addr %s260, 18
      %s262 = smul.addr %s261, 4
      %s263 = scalar_lea.vmem %s2, %s262
      %p264 = pneg %p101
      %p265 = pneg %p98
      %p266 = scmp.lt.s32.totalorder %s21, 0
      %s267 = scalar_select %p266, %s21, 0
      %s268 = smul.addr %s267, 18
      %s269 = smul.addr %s268, 4
      %s270 = scalar_lea.vmem %s3, %s269
      %p271 = pneg %p127
      %p272 = pneg %p124
      %p273 = scmp.lt.s32.totalorder %s21, 0
      %s274 = scalar_select %p273, %s21, 0
      %s275 = scalar_lea.vmem %s4, %s274
      %p276 = pneg %p153
      %p277 = pneg %p150
      %p278 = pneg %p181
      %p279 = pneg %p178
      %p280 = scmp.lt.s32.totalorder %s20, 1
      %s281 = scalar_select %p280, %s20, 1
      %p282 = scmp.lt.s32.totalorder %s21, 0
      %s283 = scalar_select %p282, %s21, 0
      %s284 = smul.addr %s281, 32
      %s285 = sadd.s32 %s283, %s284
      %s286 = smul.addr %s285, 8
      %s287 = scalar_lea.vmem %s5, %s286
      %p288 = scmp.lt.s32.totalorder %s20, 1
      %s289 = scalar_select %p288, %s20, 1
      %s290 = smul.addr %s289, 32
      %s291 = smul.addr %s290, 4
      %s292 = scalar_lea.vmem %s0, %s291
      %p293 = scmp.lt.s32.totalorder %s20, 1
      %s294 = scalar_select %p293, %s20, 1
      %s295 = smul.addr %s294, 32
      %s296 = smul.addr %s295, 4
      %s297 = scalar_lea.vmem %s1, %s296
      %p298 = scmp.lt.s32.totalorder %s21, 0
      %s299 = scalar_select %p298, %s21, 0
      %s300 = smul.addr %s299, 18
      %s301 = smul.addr %s300, 4
      %s302 = scalar_lea.vmem %s2, %s301
      %p303 = scmp.lt.s32.totalorder %s21, 0
      %s304 = scalar_select %p303, %s21, 0
      %s305 = smul.addr %s304, 18
      %s306 = smul.addr %s305, 4
      %s307 = scalar_lea.vmem %s3, %s306
      %p308 = scmp.lt.s32.totalorder %s21, 0
      %s309 = scalar_select %p308, %s21, 0
      %s310 = scalar_lea.vmem %s4, %s309
      %p311 = scmp.lt.s32.totalorder %s20, 1
      %s312 = scalar_select %p311, %s20, 1
      %p313 = scmp.lt.s32.totalorder %s21, 0
      %s314 = scalar_select %p313, %s21, 0
      %s315 = smul.addr %s312, 32
      %s316 = sadd.s32 %s314, %s315
      %s317 = smul.addr %s316, 8
      %s318 = scalar_lea.vmem %s5, %s317
      %v320 = vld [vmem:[%s292] sm:$0xf]
      %v321 = vld [vmem:[%s292 + $0x4] sm:$0xf]
      %v322 = vld [vmem:[%s292 + $0x8] sm:$0xf]
      %v323 = vld [vmem:[%s292 + $0xc] sm:$0xf]
      %v324 = vld [vmem:[%s292 + $0x10] sm:$0xf]
      %v325 = vld [vmem:[%s292 + $0x14] sm:$0xf]
      %v326 = vld [vmem:[%s292 + $0x18] sm:$0xf]
      %v327 = vld [vmem:[%s292 + $0x1c] sm:$0xf]
      %v328 = vld [vmem:[%s292 + $0x20] sm:$0xf]
      %v329 = vld [vmem:[%s292 + $0x24] sm:$0xf]
      %v330 = vld [vmem:[%s292 + $0x28] sm:$0xf]
      %v331 = vld [vmem:[%s292 + $0x2c] sm:$0xf]
      %v332 = vld [vmem:[%s292 + $0x30] sm:$0xf]
      %v333 = vld [vmem:[%s292 + $0x34] sm:$0xf]
      %v334 = vld [vmem:[%s292 + $0x38] sm:$0xf]
      %v335 = vld [vmem:[%s292 + $0x3c] sm:$0xf]
      %v336 = vld [vmem:[%s292 + $0x40] sm:$0xf]
      %v337 = vld [vmem:[%s292 + $0x44] sm:$0xf]
      %v338 = vld [vmem:[%s292 + $0x48] sm:$0xf]
      %v339 = vld [vmem:[%s292 + $0x4c] sm:$0xf]
      %v340 = vld [vmem:[%s292 + $0x50] sm:$0xf]
      %v341 = vld [vmem:[%s292 + $0x54] sm:$0xf]
      %v342 = vld [vmem:[%s292 + $0x58] sm:$0xf]
      %v343 = vld [vmem:[%s292 + $0x5c] sm:$0xf]
      %v344 = vld [vmem:[%s292 + $0x60] sm:$0xf]
      %v345 = vld [vmem:[%s292 + $0x64] sm:$0xf]
      %v346 = vld [vmem:[%s292 + $0x68] sm:$0xf]
      %v347 = vld [vmem:[%s292 + $0x6c] sm:$0xf]
      %v348 = vld [vmem:[%s292 + $0x70] sm:$0xf]
      %v349 = vld [vmem:[%s292 + $0x74] sm:$0xf]
      %v350 = vld [vmem:[%s292 + $0x78] sm:$0xf]
      %v351 = vld [vmem:[%s292 + $0x7c] sm:$0xf]
      %v352 = vld [vmem:[%s297] sm:$0xf]
      %v353 = vld [vmem:[%s297 + $0x4] sm:$0xf]
      %v354 = vld [vmem:[%s297 + $0x8] sm:$0xf]
      %v355 = vld [vmem:[%s297 + $0xc] sm:$0xf]
      %v356 = vld [vmem:[%s297 + $0x10] sm:$0xf]
      %v357 = vld [vmem:[%s297 + $0x14] sm:$0xf]
      %v358 = vld [vmem:[%s297 + $0x18] sm:$0xf]
      %v359 = vld [vmem:[%s297 + $0x1c] sm:$0xf]
      %v360 = vld [vmem:[%s297 + $0x20] sm:$0xf]
      %v361 = vld [vmem:[%s297 + $0x24] sm:$0xf]
      %v362 = vld [vmem:[%s297 + $0x28] sm:$0xf]
      %v363 = vld [vmem:[%s297 + $0x2c] sm:$0xf]
      %v364 = vld [vmem:[%s297 + $0x30] sm:$0xf]
      %v365 = vld [vmem:[%s297 + $0x34] sm:$0xf]
      %v366 = vld [vmem:[%s297 + $0x38] sm:$0xf]
      %v367 = vld [vmem:[%s297 + $0x3c] sm:$0xf]
      %v368 = vld [vmem:[%s297 + $0x40] sm:$0xf]
      %v369 = vld [vmem:[%s297 + $0x44] sm:$0xf]
      %v370 = vld [vmem:[%s297 + $0x48] sm:$0xf]
      %v371 = vld [vmem:[%s297 + $0x4c] sm:$0xf]
      %v372 = vld [vmem:[%s297 + $0x50] sm:$0xf]
      %v373 = vld [vmem:[%s297 + $0x54] sm:$0xf]
      %v374 = vld [vmem:[%s297 + $0x58] sm:$0xf]
      %v375 = vld [vmem:[%s297 + $0x5c] sm:$0xf]
      %v376 = vld [vmem:[%s297 + $0x60] sm:$0xf]
      %v377 = vld [vmem:[%s297 + $0x64] sm:$0xf]
      %v378 = vld [vmem:[%s297 + $0x68] sm:$0xf]
      %v379 = vld [vmem:[%s297 + $0x6c] sm:$0xf]
      %v380 = vld [vmem:[%s297 + $0x70] sm:$0xf]
      %v381 = vld [vmem:[%s297 + $0x74] sm:$0xf]
      %v382 = vld [vmem:[%s297 + $0x78] sm:$0xf]
      %v383 = vld [vmem:[%s297 + $0x7c] sm:$0xf]
      %v384 = vld [vmem:[%s302] sm:$0xff]
      %v385 = vld [vmem:[%s302 + $0x8] sm:$0xff]
      %v386 = vld [vmem:[%s302 + $0x10] sm:$0xff]
      %v387 = vld [vmem:[%s302 + $0x18] sm:$0xff]
      %v388 = vld [vmem:[%s302 + $0x20] sm:$0xf]
      %v389 = vld [vmem:[%s302 + $0x24] sm:$0xff]
      %v390 = vld [vmem:[%s302 + $0x2c] sm:$0xff]
      %v391 = vld [vmem:[%s302 + $0x34] sm:$0xff]
      %v392 = vld [vmem:[%s302 + $0x3c] sm:$0xff]
      %v393 = vld [vmem:[%s302 + $0x44] sm:$0xf]
      %v394 = vld [vmem:[%s307] sm:$0xff]
      %v395 = vld [vmem:[%s307 + $0x8] sm:$0xff]
      %v396 = vld [vmem:[%s307 + $0x10] sm:$0xff]
      %v397 = vld [vmem:[%s307 + $0x18] sm:$0xff]
      %v398 = vld [vmem:[%s307 + $0x20] sm:$0xf]
      %v399 = vld [vmem:[%s307 + $0x24] sm:$0xff]
      %v400 = vld [vmem:[%s307 + $0x2c] sm:$0xff]
      %v401 = vld [vmem:[%s307 + $0x34] sm:$0xff]
      %v402 = vld [vmem:[%s307 + $0x3c] sm:$0xff]
      %v403 = vld [vmem:[%s307 + $0x44] sm:$0xf]
      %v436 = vunpack.c.l.b16 %v352
      %v437 = vunpack.c.l.b16 %v353
      %v438 = vunpack.c.l.b16 %v354
      %v439 = vunpack.c.l.b16 %v355
      %v440 = vunpack.c.l.b16 %v356
      %v441 = vunpack.c.l.b16 %v357
      %v442 = vunpack.c.l.b16 %v358
      %v443 = vunpack.c.l.b16 %v359
      %v444 = vunpack.c.l.b16 %v360
      %v445 = vunpack.c.l.b16 %v361
      %v446 = vunpack.c.l.b16 %v362
      %v447 = vunpack.c.l.b16 %v363
      %v448 = vunpack.c.l.b16 %v364
      %v449 = vunpack.c.l.b16 %v365
      %v450 = vunpack.c.l.b16 %v366
      %v451 = vunpack.c.l.b16 %v367
      %v452 = vunpack.c.l.b16 %v368
      %v453 = vunpack.c.l.b16 %v369
      %v454 = vunpack.c.l.b16 %v370
      %v455 = vunpack.c.l.b16 %v371
      %v456 = vunpack.c.l.b16 %v372
      %v457 = vunpack.c.l.b16 %v373
      %v458 = vunpack.c.l.b16 %v374
      %v459 = vunpack.c.l.b16 %v375
      %v460 = vunpack.c.l.b16 %v376
      %v461 = vunpack.c.l.b16 %v377
      %v462 = vunpack.c.l.b16 %v378
      %v463 = vunpack.c.l.b16 %v379
      %v464 = vunpack.c.l.b16 %v380
      %v465 = vunpack.c.l.b16 %v381
      %v466 = vunpack.c.l.b16 %v382
      %v467 = vunpack.c.l.b16 %v383
      %v468 = vpack.c.b16 %v437, %v436
      %v469 = vpack.c.b16 %v439, %v438
      %v470 = vpack.c.b16 %v441, %v440
      %v471 = vpack.c.b16 %v443, %v442
      %v472 = vpack.c.b16 %v445, %v444
      %v473 = vpack.c.b16 %v447, %v446
      %v474 = vpack.c.b16 %v449, %v448
      %v475 = vpack.c.b16 %v451, %v450
      %v476 = vpack.c.b16 %v453, %v452
      %v477 = vpack.c.b16 %v455, %v454
      %v478 = vpack.c.b16 %v457, %v456
      %v479 = vpack.c.b16 %v459, %v458
      %v480 = vpack.c.b16 %v461, %v460
      %v481 = vpack.c.b16 %v463, %v462
      %v482 = vpack.c.b16 %v465, %v464
      %v483 = vpack.c.b16 %v467, %v466
      %v494 = vunpack.c.l.b16 %v394
      %v495 = vunpack.c.h.b16 %v394
      %v496 = vunpack.c.l.b16 %v395
      %v497 = vunpack.c.h.b16 %v395
      %v498 = vunpack.c.l.b16 %v396
      %v499 = vunpack.c.h.b16 %v396
      %v500 = vunpack.c.l.b16 %v397
      %v501 = vunpack.c.h.b16 %v397
      %v502 = vunpack.c.l.b16 %v398
      %v503 = vunpack.c.l.b16 %v399
      %v504 = vunpack.c.h.b16 %v399
      %v505 = vunpack.c.l.b16 %v400
      %v506 = vunpack.c.h.b16 %v400
      %v507 = vunpack.c.l.b16 %v401
      %v508 = vunpack.c.h.b16 %v401
      %v509 = vunpack.c.l.b16 %v402
      %v510 = vunpack.c.h.b16 %v402
      %v511 = vunpack.c.l.b16 %v403
      %v512 = vpack.c.b16 %v503, %v494
      %v513 = vpack.c.b16 %v504, %v495
      %v514 = vpack.c.b16 %v505, %v496
      %v515 = vpack.c.b16 %v506, %v497
      %v516 = vpack.c.b16 %v507, %v498
      %v517 = vpack.c.b16 %v508, %v499
      %v518 = vpack.c.b16 %v509, %v500
      %v519 = vpack.c.b16 %v510, %v501
      %v520 = vpack.c.b16 %v511, %v502
      %vm530 = vcmask 130048
      %v532 = vsel %vm530, %v468, 0
      %v535 = vsel %vm530, %v469, 0
      %v538 = vsel %vm530, %v470, 0
      %v541 = vsel %vm530, %v471, 0
      %v544 = vsel %vm530, %v472, 0
      %v547 = vsel %vm530, %v473, 0
      %v550 = vsel %vm530, %v474, 0
      %v553 = vsel %vm530, %v475, 0
      %v556 = vsel %vm530, %v476, 0
      %v559 = vsel %vm530, %v477, 0
      %v562 = vsel %vm530, %v478, 0
      %v565 = vsel %vm530, %v479, 0
      %v568 = vsel %vm530, %v480, 0
      %v571 = vsel %vm530, %v481, 0
      %v574 = vsel %vm530, %v482, 0
      %v577 = vsel %vm530, %v483, 0
      %579 = vmatpush.bf16.msra.mxu0 0
      %580 = vmatpush.bf16.msra.mxu0 0
      %581 = vmatpush.bf16.msra.mxu0 0
      %582 = vmatpush.bf16.msra.mxu0 0
      %583 = vmatpush.bf16.msra.mxu0 0
      %584 = vmatpush.bf16.msra.mxu0 0
      %585 = vmatpush.bf16.msra.mxu0 0
      %586 = vmatpush.bf16.msra.mxu0 %v512
      %587 = vmatmul.bf16.gmra.mxu0 %v532
      %v588 = vpop.f32.mrf.mxu0
      %v589 = vadd.f32 0.0, %v588
      %v590 = vpop.f32.mrf.mxu0
      %v591 = vadd.f32 0.0, %v590
      %592 = vmatmul.bf16.gmra.mxu0 %v535
      %v593 = vpop.f32.mrf.mxu0
      %v594 = vadd.f32 0.0, %v593
      %v595 = vpop.f32.mrf.mxu0
      %v596 = vadd.f32 0.0, %v595
      %597 = vmatmul.bf16.gmra.mxu0 %v538
      %v598 = vpop.f32.mrf.mxu0
      %v599 = vadd.f32 0.0, %v598
      %v600 = vpop.f32.mrf.mxu0
      %v601 = vadd.f32 0.0, %v600
      %602 = vmatmul.bf16.gmra.mxu0 %v541
      %v603 = vpop.f32.mrf.mxu0
      %v604 = vadd.f32 0.0, %v603
      %v605 = vpop.f32.mrf.mxu0
      %v606 = vadd.f32 0.0, %v605
      %607 = vmatmul.bf16.gmra.mxu0 %v544
      %v608 = vpop.f32.mrf.mxu0
      %v609 = vadd.f32 0.0, %v608
      %v610 = vpop.f32.mrf.mxu0
      %v611 = vadd.f32 0.0, %v610
      %612 = vmatmul.bf16.gmra.mxu0 %v547
      %v613 = vpop.f32.mrf.mxu0
      %v614 = vadd.f32 0.0, %v613
      %v615 = vpop.f32.mrf.mxu0
      %v616 = vadd.f32 0.0, %v615
      %617 = vmatmul.bf16.gmra.mxu0 %v550
      %v618 = vpop.f32.mrf.mxu0
      %v619 = vadd.f32 0.0, %v618
      %v620 = vpop.f32.mrf.mxu0
      %v621 = vadd.f32 0.0, %v620
      %622 = vmatmul.bf16.gmra.mxu0 %v553
      %v623 = vpop.f32.mrf.mxu0
      %v624 = vadd.f32 0.0, %v623
      %v625 = vpop.f32.mrf.mxu0
      %v626 = vadd.f32 0.0, %v625
      %627 = vmatmul.bf16.gmra.mxu0 %v556
      %v628 = vpop.f32.mrf.mxu0
      %v629 = vadd.f32 0.0, %v628
      %v630 = vpop.f32.mrf.mxu0
      %v631 = vadd.f32 0.0, %v630
      %632 = vmatmul.bf16.gmra.mxu0 %v559
      %v633 = vpop.f32.mrf.mxu0
      %v634 = vadd.f32 0.0, %v633
      %v635 = vpop.f32.mrf.mxu0
      %v636 = vadd.f32 0.0, %v635
      %637 = vmatmul.bf16.gmra.mxu0 %v562
      %v638 = vpop.f32.mrf.mxu0
      %v639 = vadd.f32 0.0, %v638
      %v640 = vpop.f32.mrf.mxu0
      %v641 = vadd.f32 0.0, %v640
      %642 = vmatmul.bf16.gmra.mxu0 %v565
      %v643 = vpop.f32.mrf.mxu0
      %v644 = vadd.f32 0.0, %v643
      %v645 = vpop.f32.mrf.mxu0
      %v646 = vadd.f32 0.0, %v645
      %647 = vmatmul.bf16.gmra.mxu0 %v568
      %v648 = vpop.f32.mrf.mxu0
      %v649 = vadd.f32 0.0, %v648
      %v650 = vpop.f32.mrf.mxu0
      %v651 = vadd.f32 0.0, %v650
      %652 = vmatmul.bf16.gmra.mxu0 %v571
      %v653 = vpop.f32.mrf.mxu0
      %v654 = vadd.f32 0.0, %v653
      %v655 = vpop.f32.mrf.mxu0
      %v656 = vadd.f32 0.0, %v655
      %657 = vmatmul.bf16.gmra.mxu0 %v574
      %v658 = vpop.f32.mrf.mxu0
      %v659 = vadd.f32 0.0, %v658
      %v660 = vpop.f32.mrf.mxu0
      %v661 = vadd.f32 0.0, %v660
      %662 = vmatmul.bf16.gmra.mxu0 %v577
      %v663 = vpop.f32.mrf.mxu0
      %v664 = vadd.f32 0.0, %v663
      %v665 = vpop.f32.mrf.mxu0
      %v666 = vadd.f32 0.0, %v665
      %667 = vdwg.mxu0
      %668 = vmatpush.bf16.msra.mxu0 0
      %669 = vmatpush.bf16.msra.mxu0 0
      %670 = vmatpush.bf16.msra.mxu0 0
      %671 = vmatpush.bf16.msra.mxu0 0
      %672 = vmatpush.bf16.msra.mxu0 0
      %673 = vmatpush.bf16.msra.mxu0 0
      %674 = vmatpush.bf16.msra.mxu0 0
      %675 = vmatpush.bf16.msra.mxu0 %v513
      %676 = vmatmul.bf16.gmra.mxu0 %v532
      %v677 = vpop.f32.mrf.mxu0
      %v678 = vadd.f32 0.0, %v677
      %v679 = vpop.f32.mrf.mxu0
      %v680 = vadd.f32 0.0, %v679
      %681 = vmatmul.bf16.gmra.mxu0 %v535
      %v682 = vpop.f32.mrf.mxu0
      %v683 = vadd.f32 0.0, %v682
      %v684 = vpop.f32.mrf.mxu0
      %v685 = vadd.f32 0.0, %v684
      %686 = vmatmul.bf16.gmra.mxu0 %v538
      %v687 = vpop.f32.mrf.mxu0
      %v688 = vadd.f32 0.0, %v687
      %v689 = vpop.f32.mrf.mxu0
      %v690 = vadd.f32 0.0, %v689
      %691 = vmatmul.bf16.gmra.mxu0 %v541
      %v692 = vpop.f32.mrf.mxu0
      %v693 = vadd.f32 0.0, %v692
      %v694 = vpop.f32.mrf.mxu0
      %v695 = vadd.f32 0.0, %v694
      %696 = vmatmul.bf16.gmra.mxu0 %v544
      %v697 = vpop.f32.mrf.mxu0
      %v698 = vadd.f32 0.0, %v697
      %v699 = vpop.f32.mrf.mxu0
      %v700 = vadd.f32 0.0, %v699
      %701 = vmatmul.bf16.gmra.mxu0 %v547
      %v702 = vpop.f32.mrf.mxu0
      %v703 = vadd.f32 0.0, %v702
      %v704 = vpop.f32.mrf.mxu0
      %v705 = vadd.f32 0.0, %v704
      %706 = vmatmul.bf16.gmra.mxu0 %v550
      %v707 = vpop.f32.mrf.mxu0
      %v708 = vadd.f32 0.0, %v707
      %v709 = vpop.f32.mrf.mxu0
      %v710 = vadd.f32 0.0, %v709
      %711 = vmatmul.bf16.gmra.mxu0 %v553
      %v712 = vpop.f32.mrf.mxu0
      %v713 = vadd.f32 0.0, %v712
      %v714 = vpop.f32.mrf.mxu0
      %v715 = vadd.f32 0.0, %v714
      %716 = vmatmul.bf16.gmra.mxu0 %v556
      %v717 = vpop.f32.mrf.mxu0
      %v718 = vadd.f32 0.0, %v717
      %v719 = vpop.f32.mrf.mxu0
      %v720 = vadd.f32 0.0, %v719
      %721 = vmatmul.bf16.gmra.mxu0 %v559
      %v722 = vpop.f32.mrf.mxu0
      %v723 = vadd.f32 0.0, %v722
      %v724 = vpop.f32.mrf.mxu0
      %v725 = vadd.f32 0.0, %v724
      %726 = vmatmul.bf16.gmra.mxu0 %v562
      %v727 = vpop.f32.mrf.mxu0
      %v728 = vadd.f32 0.0, %v727
      %v729 = vpop.f32.mrf.mxu0
      %v730 = vadd.f32 0.0, %v729
      %731 = vmatmul.bf16.gmra.mxu0 %v565
      %v732 = vpop.f32.mrf.mxu0
      %v733 = vadd.f32 0.0, %v732
      %v734 = vpop.f32.mrf.mxu0
      %v735 = vadd.f32 0.0, %v734
      %736 = vmatmul.bf16.gmra.mxu0 %v568
      %v737 = vpop.f32.mrf.mxu0
      %v738 = vadd.f32 0.0, %v737
      %v739 = vpop.f32.mrf.mxu0
      %v740 = vadd.f32 0.0, %v739
      %741 = vmatmul.bf16.gmra.mxu0 %v571
      %v742 = vpop.f32.mrf.mxu0
      %v743 = vadd.f32 0.0, %v742
      %v744 = vpop.f32.mrf.mxu0
      %v745 = vadd.f32 0.0, %v744
      %746 = vmatmul.bf16.gmra.mxu0 %v574
      %v747 = vpop.f32.mrf.mxu0
      %v748 = vadd.f32 0.0, %v747
      %v749 = vpop.f32.mrf.mxu0
      %v750 = vadd.f32 0.0, %v749
      %751 = vmatmul.bf16.gmra.mxu0 %v577
      %v752 = vpop.f32.mrf.mxu0
      %v753 = vadd.f32 0.0, %v752
      %v754 = vpop.f32.mrf.mxu0
      %v755 = vadd.f32 0.0, %v754
      %756 = vdwg.mxu0
      %757 = vmatpush.bf16.msra.mxu0 0
      %758 = vmatpush.bf16.msra.mxu0 0
      %759 = vmatpush.bf16.msra.mxu0 0
      %760 = vmatpush.bf16.msra.mxu0 0
      %761 = vmatpush.bf16.msra.mxu0 0
      %762 = vmatpush.bf16.msra.mxu0 0
      %763 = vmatpush.bf16.msra.mxu0 0
      %764 = vmatpush.bf16.msra.mxu0 %v514
      %765 = vmatmul.bf16.gmra.mxu0 %v532
      %v766 = vpop.f32.mrf.mxu0
      %v767 = vadd.f32 0.0, %v766
      %v768 = vpop.f32.mrf.mxu0
      %v769 = vadd.f32 0.0, %v768
      %770 = vmatmul.bf16.gmra.mxu0 %v535
      %v771 = vpop.f32.mrf.mxu0
      %v772 = vadd.f32 0.0, %v771
      %v773 = vpop.f32.mrf.mxu0
      %v774 = vadd.f32 0.0, %v773
      %775 = vmatmul.bf16.gmra.mxu0 %v538
      %v776 = vpop.f32.mrf.mxu0
      %v777 = vadd.f32 0.0, %v776
      %v778 = vpop.f32.mrf.mxu0
      %v779 = vadd.f32 0.0, %v778
      %780 = vmatmul.bf16.gmra.mxu0 %v541
      %v781 = vpop.f32.mrf.mxu0
      %v782 = vadd.f32 0.0, %v781
      %v783 = vpop.f32.mrf.mxu0
      %v784 = vadd.f32 0.0, %v783
      %785 = vmatmul.bf16.gmra.mxu0 %v544
      %v786 = vpop.f32.mrf.mxu0
      %v787 = vadd.f32 0.0, %v786
      %v788 = vpop.f32.mrf.mxu0
      %v789 = vadd.f32 0.0, %v788
      %790 = vmatmul.bf16.gmra.mxu0 %v547
      %v791 = vpop.f32.mrf.mxu0
      %v792 = vadd.f32 0.0, %v791
      %v793 = vpop.f32.mrf.mxu0
      %v794 = vadd.f32 0.0, %v793
      %795 = vmatmul.bf16.gmra.mxu0 %v550
      %v796 = vpop.f32.mrf.mxu0
      %v797 = vadd.f32 0.0, %v796
      %v798 = vpop.f32.mrf.mxu0
      %v799 = vadd.f32 0.0, %v798
      %800 = vmatmul.bf16.gmra.mxu0 %v553
      %v801 = vpop.f32.mrf.mxu0
      %v802 = vadd.f32 0.0, %v801
      %v803 = vpop.f32.mrf.mxu0
      %v804 = vadd.f32 0.0, %v803
      %805 = vmatmul.bf16.gmra.mxu0 %v556
      %v806 = vpop.f32.mrf.mxu0
      %v807 = vadd.f32 0.0, %v806
      %v808 = vpop.f32.mrf.mxu0
      %v809 = vadd.f32 0.0, %v808
      %810 = vmatmul.bf16.gmra.mxu0 %v559
      %v811 = vpop.f32.mrf.mxu0
      %v812 = vadd.f32 0.0, %v811
      %v813 = vpop.f32.mrf.mxu0
      %v814 = vadd.f32 0.0, %v813
      %815 = vmatmul.bf16.gmra.mxu0 %v562
      %v816 = vpop.f32.mrf.mxu0
      %v817 = vadd.f32 0.0, %v816
      %v818 = vpop.f32.mrf.mxu0
      %v819 = vadd.f32 0.0, %v818
      %820 = vmatmul.bf16.gmra.mxu0 %v565
      %v821 = vpop.f32.mrf.mxu0
      %v822 = vadd.f32 0.0, %v821
      %v823 = vpop.f32.mrf.mxu0
      %v824 = vadd.f32 0.0, %v823
      %825 = vmatmul.bf16.gmra.mxu0 %v568
      %v826 = vpop.f32.mrf.mxu0
      %v827 = vadd.f32 0.0, %v826
      %v828 = vpop.f32.mrf.mxu0
      %v829 = vadd.f32 0.0, %v828
      %830 = vmatmul.bf16.gmra.mxu0 %v571
      %v831 = vpop.f32.mrf.mxu0
      %v832 = vadd.f32 0.0, %v831
      %v833 = vpop.f32.mrf.mxu0
      %v834 = vadd.f32 0.0, %v833
      %835 = vmatmul.bf16.gmra.mxu0 %v574
      %v836 = vpop.f32.mrf.mxu0
      %v837 = vadd.f32 0.0, %v836
      %v838 = vpop.f32.mrf.mxu0
      %v839 = vadd.f32 0.0, %v838
      %840 = vmatmul.bf16.gmra.mxu0 %v577
      %v841 = vpop.f32.mrf.mxu0
      %v842 = vadd.f32 0.0, %v841
      %v843 = vpop.f32.mrf.mxu0
      %v844 = vadd.f32 0.0, %v843
      %845 = vdwg.mxu0
      %846 = vmatpush.bf16.msra.mxu0 0
      %847 = vmatpush.bf16.msra.mxu0 0
      %848 = vmatpush.bf16.msra.mxu0 0
      %849 = vmatpush.bf16.msra.mxu0 0
      %850 = vmatpush.bf16.msra.mxu0 0
      %851 = vmatpush.bf16.msra.mxu0 0
      %852 = vmatpush.bf16.msra.mxu0 0
      %853 = vmatpush.bf16.msra.mxu0 %v515
      %854 = vmatmul.bf16.gmra.mxu0 %v532
      %v855 = vpop.f32.mrf.mxu0
      %v856 = vadd.f32 0.0, %v855
      %v857 = vpop.f32.mrf.mxu0
      %v858 = vadd.f32 0.0, %v857
      %859 = vmatmul.bf16.gmra.mxu0 %v535
      %v860 = vpop.f32.mrf.mxu0
      %v861 = vadd.f32 0.0, %v860
      %v862 = vpop.f32.mrf.mxu0
      %v863 = vadd.f32 0.0, %v862
      %864 = vmatmul.bf16.gmra.mxu0 %v538
      %v865 = vpop.f32.mrf.mxu0
      %v866 = vadd.f32 0.0, %v865
      %v867 = vpop.f32.mrf.mxu0
      %v868 = vadd.f32 0.0, %v867
      %869 = vmatmul.bf16.gmra.mxu0 %v541
      %v870 = vpop.f32.mrf.mxu0
      %v871 = vadd.f32 0.0, %v870
      %v872 = vpop.f32.mrf.mxu0
      %v873 = vadd.f32 0.0, %v872
      %874 = vmatmul.bf16.gmra.mxu0 %v544
      %v875 = vpop.f32.mrf.mxu0
      %v876 = vadd.f32 0.0, %v875
      %v877 = vpop.f32.mrf.mxu0
      %v878 = vadd.f32 0.0, %v877
      %879 = vmatmul.bf16.gmra.mxu0 %v547
      %v880 = vpop.f32.mrf.mxu0
      %v881 = vadd.f32 0.0, %v880
      %v882 = vpop.f32.mrf.mxu0
      %v883 = vadd.f32 0.0, %v882
      %884 = vmatmul.bf16.gmra.mxu0 %v550
      %v885 = vpop.f32.mrf.mxu0
      %v886 = vadd.f32 0.0, %v885
      %v887 = vpop.f32.mrf.mxu0
      %v888 = vadd.f32 0.0, %v887
      %889 = vmatmul.bf16.gmra.mxu0 %v553
      %v890 = vpop.f32.mrf.mxu0
      %v891 = vadd.f32 0.0, %v890
      %v892 = vpop.f32.mrf.mxu0
      %v893 = vadd.f32 0.0, %v892
      %894 = vmatmul.bf16.gmra.mxu0 %v556
      %v895 = vpop.f32.mrf.mxu0
      %v896 = vadd.f32 0.0, %v895
      %v897 = vpop.f32.mrf.mxu0
      %v898 = vadd.f32 0.0, %v897
      %899 = vmatmul.bf16.gmra.mxu0 %v559
      %v900 = vpop.f32.mrf.mxu0
      %v901 = vadd.f32 0.0, %v900
      %v902 = vpop.f32.mrf.mxu0
      %v903 = vadd.f32 0.0, %v902
      %904 = vmatmul.bf16.gmra.mxu0 %v562
      %v905 = vpop.f32.mrf.mxu0
      %v906 = vadd.f32 0.0, %v905
      %v907 = vpop.f32.mrf.mxu0
      %v908 = vadd.f32 0.0, %v907
      %909 = vmatmul.bf16.gmra.mxu0 %v565
      %v910 = vpop.f32.mrf.mxu0
      %v911 = vadd.f32 0.0, %v910
      %v912 = vpop.f32.mrf.mxu0
      %v913 = vadd.f32 0.0, %v912
      %914 = vmatmul.bf16.gmra.mxu0 %v568
      %v915 = vpop.f32.mrf.mxu0
      %v916 = vadd.f32 0.0, %v915
      %v917 = vpop.f32.mrf.mxu0
      %v918 = vadd.f32 0.0, %v917
      %919 = vmatmul.bf16.gmra.mxu0 %v571
      %v920 = vpop.f32.mrf.mxu0
      %v921 = vadd.f32 0.0, %v920
      %v922 = vpop.f32.mrf.mxu0
      %v923 = vadd.f32 0.0, %v922
      %924 = vmatmul.bf16.gmra.mxu0 %v574
      %v925 = vpop.f32.mrf.mxu0
      %v926 = vadd.f32 0.0, %v925
      %v927 = vpop.f32.mrf.mxu0
      %v928 = vadd.f32 0.0, %v927
      %929 = vmatmul.bf16.gmra.mxu0 %v577
      %v930 = vpop.f32.mrf.mxu0
      %v931 = vadd.f32 0.0, %v930
      %v932 = vpop.f32.mrf.mxu0
      %v933 = vadd.f32 0.0, %v932
      %934 = vdwg.mxu0
      %935 = vmatpush.bf16.msra.mxu0 0
      %936 = vmatpush.bf16.msra.mxu0 0
      %937 = vmatpush.bf16.msra.mxu0 0
      %938 = vmatpush.bf16.msra.mxu0 0
      %939 = vmatpush.bf16.msra.mxu0 0
      %940 = vmatpush.bf16.msra.mxu0 0
      %941 = vmatpush.bf16.msra.mxu0 0
      %942 = vmatpush.bf16.msra.mxu0 %v516
      %943 = vmatmul.bf16.gmra.mxu0 %v532
      %v944 = vpop.f32.mrf.mxu0
      %v945 = vadd.f32 0.0, %v944
      %v946 = vpop.f32.mrf.mxu0
      %v947 = vadd.f32 0.0, %v946
      %948 = vmatmul.bf16.gmra.mxu0 %v535
      %v949 = vpop.f32.mrf.mxu0
      %v950 = vadd.f32 0.0, %v949
      %v951 = vpop.f32.mrf.mxu0
      %v952 = vadd.f32 0.0, %v951
      %953 = vmatmul.bf16.gmra.mxu0 %v538
      %v954 = vpop.f32.mrf.mxu0
      %v955 = vadd.f32 0.0, %v954
      %v956 = vpop.f32.mrf.mxu0
      %v957 = vadd.f32 0.0, %v956
      %958 = vmatmul.bf16.gmra.mxu0 %v541
      %v959 = vpop.f32.mrf.mxu0
      %v960 = vadd.f32 0.0, %v959
      %v961 = vpop.f32.mrf.mxu0
      %v962 = vadd.f32 0.0, %v961
      %963 = vmatmul.bf16.gmra.mxu0 %v544
      %v964 = vpop.f32.mrf.mxu0
      %v965 = vadd.f32 0.0, %v964
      %v966 = vpop.f32.mrf.mxu0
      %v967 = vadd.f32 0.0, %v966
      %968 = vmatmul.bf16.gmra.mxu0 %v547
      %v969 = vpop.f32.mrf.mxu0
      %v970 = vadd.f32 0.0, %v969
      %v971 = vpop.f32.mrf.mxu0
      %v972 = vadd.f32 0.0, %v971
      %973 = vmatmul.bf16.gmra.mxu0 %v550
      %v974 = vpop.f32.mrf.mxu0
      %v975 = vadd.f32 0.0, %v974
      %v976 = vpop.f32.mrf.mxu0
      %v977 = vadd.f32 0.0, %v976
      %978 = vmatmul.bf16.gmra.mxu0 %v553
      %v979 = vpop.f32.mrf.mxu0
      %v980 = vadd.f32 0.0, %v979
      %v981 = vpop.f32.mrf.mxu0
      %v982 = vadd.f32 0.0, %v981
      %983 = vmatmul.bf16.gmra.mxu0 %v556
      %v984 = vpop.f32.mrf.mxu0
      %v985 = vadd.f32 0.0, %v984
      %v986 = vpop.f32.mrf.mxu0
      %v987 = vadd.f32 0.0, %v986
      %988 = vmatmul.bf16.gmra.mxu0 %v559
      %v989 = vpop.f32.mrf.mxu0
      %v990 = vadd.f32 0.0, %v989
      %v991 = vpop.f32.mrf.mxu0
      %v992 = vadd.f32 0.0, %v991
      %993 = vmatmul.bf16.gmra.mxu0 %v562
      %v994 = vpop.f32.mrf.mxu0
      %v995 = vadd.f32 0.0, %v994
      %v996 = vpop.f32.mrf.mxu0
      %v997 = vadd.f32 0.0, %v996
      %998 = vmatmul.bf16.gmra.mxu0 %v565
      %v999 = vpop.f32.mrf.mxu0
      %v1000 = vadd.f32 0.0, %v999
      %v1001 = vpop.f32.mrf.mxu0
      %v1002 = vadd.f32 0.0, %v1001
      %1003 = vmatmul.bf16.gmra.mxu0 %v568
      %v1004 = vpop.f32.mrf.mxu0
      %v1005 = vadd.f32 0.0, %v1004
      %v1006 = vpop.f32.mrf.mxu0
      %v1007 = vadd.f32 0.0, %v1006
      %1008 = vmatmul.bf16.gmra.mxu0 %v571
      %v1009 = vpop.f32.mrf.mxu0
      %v1010 = vadd.f32 0.0, %v1009
      %v1011 = vpop.f32.mrf.mxu0
      %v1012 = vadd.f32 0.0, %v1011
      %1013 = vmatmul.bf16.gmra.mxu0 %v574
      %v1014 = vpop.f32.mrf.mxu0
      %v1015 = vadd.f32 0.0, %v1014
      %v1016 = vpop.f32.mrf.mxu0
      %v1017 = vadd.f32 0.0, %v1016
      %1018 = vmatmul.bf16.gmra.mxu0 %v577
      %v1019 = vpop.f32.mrf.mxu0
      %v1020 = vadd.f32 0.0, %v1019
      %v1021 = vpop.f32.mrf.mxu0
      %v1022 = vadd.f32 0.0, %v1021
      %1023 = vdwg.mxu0
      %1024 = vmatpush.bf16.msra.mxu0 0
      %1025 = vmatpush.bf16.msra.mxu0 0
      %1026 = vmatpush.bf16.msra.mxu0 0
      %1027 = vmatpush.bf16.msra.mxu0 0
      %1028 = vmatpush.bf16.msra.mxu0 0
      %1029 = vmatpush.bf16.msra.mxu0 0
      %1030 = vmatpush.bf16.msra.mxu0 0
      %1031 = vmatpush.bf16.msra.mxu0 %v517
      %1032 = vmatmul.bf16.gmra.mxu0 %v532
      %v1033 = vpop.f32.mrf.mxu0
      %v1034 = vadd.f32 0.0, %v1033
      %v1035 = vpop.f32.mrf.mxu0
      %v1036 = vadd.f32 0.0, %v1035
      %1037 = vmatmul.bf16.gmra.mxu0 %v535
      %v1038 = vpop.f32.mrf.mxu0
      %v1039 = vadd.f32 0.0, %v1038
      %v1040 = vpop.f32.mrf.mxu0
      %v1041 = vadd.f32 0.0, %v1040
      %1042 = vmatmul.bf16.gmra.mxu0 %v538
      %v1043 = vpop.f32.mrf.mxu0
      %v1044 = vadd.f32 0.0, %v1043
      %v1045 = vpop.f32.mrf.mxu0
      %v1046 = vadd.f32 0.0, %v1045
      %1047 = vmatmul.bf16.gmra.mxu0 %v541
      %v1048 = vpop.f32.mrf.mxu0
      %v1049 = vadd.f32 0.0, %v1048
      %v1050 = vpop.f32.mrf.mxu0
      %v1051 = vadd.f32 0.0, %v1050
      %1052 = vmatmul.bf16.gmra.mxu0 %v544
      %v1053 = vpop.f32.mrf.mxu0
      %v1054 = vadd.f32 0.0, %v1053
      %v1055 = vpop.f32.mrf.mxu0
      %v1056 = vadd.f32 0.0, %v1055
      %1057 = vmatmul.bf16.gmra.mxu0 %v547
      %v1058 = vpop.f32.mrf.mxu0
      %v1059 = vadd.f32 0.0, %v1058
      %v1060 = vpop.f32.mrf.mxu0
      %v1061 = vadd.f32 0.0, %v1060
      %1062 = vmatmul.bf16.gmra.mxu0 %v550
      %v1063 = vpop.f32.mrf.mxu0
      %v1064 = vadd.f32 0.0, %v1063
      %v1065 = vpop.f32.mrf.mxu0
      %v1066 = vadd.f32 0.0, %v1065
      %1067 = vmatmul.bf16.gmra.mxu0 %v553
      %v1068 = vpop.f32.mrf.mxu0
      %v1069 = vadd.f32 0.0, %v1068
      %v1070 = vpop.f32.mrf.mxu0
      %v1071 = vadd.f32 0.0, %v1070
      %1072 = vmatmul.bf16.gmra.mxu0 %v556
      %v1073 = vpop.f32.mrf.mxu0
      %v1074 = vadd.f32 0.0, %v1073
      %v1075 = vpop.f32.mrf.mxu0
      %v1076 = vadd.f32 0.0, %v1075
      %1077 = vmatmul.bf16.gmra.mxu0 %v559
      %v1078 = vpop.f32.mrf.mxu0
      %v1079 = vadd.f32 0.0, %v1078
      %v1080 = vpop.f32.mrf.mxu0
      %v1081 = vadd.f32 0.0, %v1080
      %1082 = vmatmul.bf16.gmra.mxu0 %v562
      %v1083 = vpop.f32.mrf.mxu0
      %v1084 = vadd.f32 0.0, %v1083
      %v1085 = vpop.f32.mrf.mxu0
      %v1086 = vadd.f32 0.0, %v1085
      %1087 = vmatmul.bf16.gmra.mxu0 %v565
      %v1088 = vpop.f32.mrf.mxu0
      %v1089 = vadd.f32 0.0, %v1088
      %v1090 = vpop.f32.mrf.mxu0
      %v1091 = vadd.f32 0.0, %v1090
      %1092 = vmatmul.bf16.gmra.mxu0 %v568
      %v1093 = vpop.f32.mrf.mxu0
      %v1094 = vadd.f32 0.0, %v1093
      %v1095 = vpop.f32.mrf.mxu0
      %v1096 = vadd.f32 0.0, %v1095
      %1097 = vmatmul.bf16.gmra.mxu0 %v571
      %v1098 = vpop.f32.mrf.mxu0
      %v1099 = vadd.f32 0.0, %v1098
      %v1100 = vpop.f32.mrf.mxu0
      %v1101 = vadd.f32 0.0, %v1100
      %1102 = vmatmul.bf16.gmra.mxu0 %v574
      %v1103 = vpop.f32.mrf.mxu0
      %v1104 = vadd.f32 0.0, %v1103
      %v1105 = vpop.f32.mrf.mxu0
      %v1106 = vadd.f32 0.0, %v1105
      %1107 = vmatmul.bf16.gmra.mxu0 %v577
      %v1108 = vpop.f32.mrf.mxu0
      %v1109 = vadd.f32 0.0, %v1108
      %v1110 = vpop.f32.mrf.mxu0
      %v1111 = vadd.f32 0.0, %v1110
      %1112 = vdwg.mxu0
      %1113 = vmatpush.bf16.msra.mxu0 0
      %1114 = vmatpush.bf16.msra.mxu0 0
      %1115 = vmatpush.bf16.msra.mxu0 0
      %1116 = vmatpush.bf16.msra.mxu0 0
      %1117 = vmatpush.bf16.msra.mxu0 0
      %1118 = vmatpush.bf16.msra.mxu0 0
      %1119 = vmatpush.bf16.msra.mxu0 0
      %1120 = vmatpush.bf16.msra.mxu0 %v518
      %1121 = vmatmul.bf16.gmra.mxu0 %v532
      %v1122 = vpop.f32.mrf.mxu0
      %v1123 = vadd.f32 0.0, %v1122
      %v1124 = vpop.f32.mrf.mxu0
      %v1125 = vadd.f32 0.0, %v1124
      %1126 = vmatmul.bf16.gmra.mxu0 %v535
      %v1127 = vpop.f32.mrf.mxu0
      %v1128 = vadd.f32 0.0, %v1127
      %v1129 = vpop.f32.mrf.mxu0
      %v1130 = vadd.f32 0.0, %v1129
      %1131 = vmatmul.bf16.gmra.mxu0 %v538
      %v1132 = vpop.f32.mrf.mxu0
      %v1133 = vadd.f32 0.0, %v1132
      %v1134 = vpop.f32.mrf.mxu0
      %v1135 = vadd.f32 0.0, %v1134
      %1136 = vmatmul.bf16.gmra.mxu0 %v541
      %v1137 = vpop.f32.mrf.mxu0
      %v1138 = vadd.f32 0.0, %v1137
      %v1139 = vpop.f32.mrf.mxu0
      %v1140 = vadd.f32 0.0, %v1139
      %1141 = vmatmul.bf16.gmra.mxu0 %v544
      %v1142 = vpop.f32.mrf.mxu0
      %v1143 = vadd.f32 0.0, %v1142
      %v1144 = vpop.f32.mrf.mxu0
      %v1145 = vadd.f32 0.0, %v1144
      %1146 = vmatmul.bf16.gmra.mxu0 %v547
      %v1147 = vpop.f32.mrf.mxu0
      %v1148 = vadd.f32 0.0, %v1147
      %v1149 = vpop.f32.mrf.mxu0
      %v1150 = vadd.f32 0.0, %v1149
      %1151 = vmatmul.bf16.gmra.mxu0 %v550
      %v1152 = vpop.f32.mrf.mxu0
      %v1153 = vadd.f32 0.0, %v1152
      %v1154 = vpop.f32.mrf.mxu0
      %v1155 = vadd.f32 0.0, %v1154
      %1156 = vmatmul.bf16.gmra.mxu0 %v553
      %v1157 = vpop.f32.mrf.mxu0
      %v1158 = vadd.f32 0.0, %v1157
      %v1159 = vpop.f32.mrf.mxu0
      %v1160 = vadd.f32 0.0, %v1159
      %1161 = vmatmul.bf16.gmra.mxu0 %v556
      %v1162 = vpop.f32.mrf.mxu0
      %v1163 = vadd.f32 0.0, %v1162
      %v1164 = vpop.f32.mrf.mxu0
      %v1165 = vadd.f32 0.0, %v1164
      %1166 = vmatmul.bf16.gmra.mxu0 %v559
      %v1167 = vpop.f32.mrf.mxu0
      %v1168 = vadd.f32 0.0, %v1167
      %v1169 = vpop.f32.mrf.mxu0
      %v1170 = vadd.f32 0.0, %v1169
      %1171 = vmatmul.bf16.gmra.mxu0 %v562
      %v1172 = vpop.f32.mrf.mxu0
      %v1173 = vadd.f32 0.0, %v1172
      %v1174 = vpop.f32.mrf.mxu0
      %v1175 = vadd.f32 0.0, %v1174
      %1176 = vmatmul.bf16.gmra.mxu0 %v565
      %v1177 = vpop.f32.mrf.mxu0
      %v1178 = vadd.f32 0.0, %v1177
      %v1179 = vpop.f32.mrf.mxu0
      %v1180 = vadd.f32 0.0, %v1179
      %1181 = vmatmul.bf16.gmra.mxu0 %v568
      %v1182 = vpop.f32.mrf.mxu0
      %v1183 = vadd.f32 0.0, %v1182
      %v1184 = vpop.f32.mrf.mxu0
      %v1185 = vadd.f32 0.0, %v1184
      %1186 = vmatmul.bf16.gmra.mxu0 %v571
      %v1187 = vpop.f32.mrf.mxu0
      %v1188 = vadd.f32 0.0, %v1187
      %v1189 = vpop.f32.mrf.mxu0
      %v1190 = vadd.f32 0.0, %v1189
      %1191 = vmatmul.bf16.gmra.mxu0 %v574
      %v1192 = vpop.f32.mrf.mxu0
      %v1193 = vadd.f32 0.0, %v1192
      %v1194 = vpop.f32.mrf.mxu0
      %v1195 = vadd.f32 0.0, %v1194
      %1196 = vmatmul.bf16.gmra.mxu0 %v577
      %v1197 = vpop.f32.mrf.mxu0
      %v1198 = vadd.f32 0.0, %v1197
      %v1199 = vpop.f32.mrf.mxu0
      %v1200 = vadd.f32 0.0, %v1199
      %1201 = vdwg.mxu0
      %1202 = vmatpush.bf16.msra.mxu0 0
      %1203 = vmatpush.bf16.msra.mxu0 0
      %1204 = vmatpush.bf16.msra.mxu0 0
      %1205 = vmatpush.bf16.msra.mxu0 0
      %1206 = vmatpush.bf16.msra.mxu0 0
      %1207 = vmatpush.bf16.msra.mxu0 0
      %1208 = vmatpush.bf16.msra.mxu0 0
      %1209 = vmatpush.bf16.msra.mxu0 %v519
      %1210 = vmatmul.bf16.gmra.mxu0 %v532
      %v1211 = vpop.f32.mrf.mxu0
      %v1212 = vadd.f32 0.0, %v1211
      %v1213 = vpop.f32.mrf.mxu0
      %v1214 = vadd.f32 0.0, %v1213
      %1215 = vmatmul.bf16.gmra.mxu0 %v535
      %v1216 = vpop.f32.mrf.mxu0
      %v1217 = vadd.f32 0.0, %v1216
      %v1218 = vpop.f32.mrf.mxu0
      %v1219 = vadd.f32 0.0, %v1218
      %1220 = vmatmul.bf16.gmra.mxu0 %v538
      %v1221 = vpop.f32.mrf.mxu0
      %v1222 = vadd.f32 0.0, %v1221
      %v1223 = vpop.f32.mrf.mxu0
      %v1224 = vadd.f32 0.0, %v1223
      %1225 = vmatmul.bf16.gmra.mxu0 %v541
      %v1226 = vpop.f32.mrf.mxu0
      %v1227 = vadd.f32 0.0, %v1226
      %v1228 = vpop.f32.mrf.mxu0
      %v1229 = vadd.f32 0.0, %v1228
      %1230 = vmatmul.bf16.gmra.mxu0 %v544
      %v1231 = vpop.f32.mrf.mxu0
      %v1232 = vadd.f32 0.0, %v1231
      %v1233 = vpop.f32.mrf.mxu0
      %v1234 = vadd.f32 0.0, %v1233
      %1235 = vmatmul.bf16.gmra.mxu0 %v547
      %v1236 = vpop.f32.mrf.mxu0
      %v1237 = vadd.f32 0.0, %v1236
      %v1238 = vpop.f32.mrf.mxu0
      %v1239 = vadd.f32 0.0, %v1238
      %1240 = vmatmul.bf16.gmra.mxu0 %v550
      %v1241 = vpop.f32.mrf.mxu0
      %v1242 = vadd.f32 0.0, %v1241
      %v1243 = vpop.f32.mrf.mxu0
      %v1244 = vadd.f32 0.0, %v1243
      %1245 = vmatmul.bf16.gmra.mxu0 %v553
      %v1246 = vpop.f32.mrf.mxu0
      %v1247 = vadd.f32 0.0, %v1246
      %v1248 = vpop.f32.mrf.mxu0
      %v1249 = vadd.f32 0.0, %v1248
      %1250 = vmatmul.bf16.gmra.mxu0 %v556
      %v1251 = vpop.f32.mrf.mxu0
      %v1252 = vadd.f32 0.0, %v1251
      %v1253 = vpop.f32.mrf.mxu0
      %v1254 = vadd.f32 0.0, %v1253
      %1255 = vmatmul.bf16.gmra.mxu0 %v559
      %v1256 = vpop.f32.mrf.mxu0
      %v1257 = vadd.f32 0.0, %v1256
      %v1258 = vpop.f32.mrf.mxu0
      %v1259 = vadd.f32 0.0, %v1258
      %1260 = vmatmul.bf16.gmra.mxu0 %v562
      %v1261 = vpop.f32.mrf.mxu0
      %v1262 = vadd.f32 0.0, %v1261
      %v1263 = vpop.f32.mrf.mxu0
      %v1264 = vadd.f32 0.0, %v1263
      %1265 = vmatmul.bf16.gmra.mxu0 %v565
      %v1266 = vpop.f32.mrf.mxu0
      %v1267 = vadd.f32 0.0, %v1266
      %v1268 = vpop.f32.mrf.mxu0
      %v1269 = vadd.f32 0.0, %v1268
      %1270 = vmatmul.bf16.gmra.mxu0 %v568
      %v1271 = vpop.f32.mrf.mxu0
      %v1272 = vadd.f32 0.0, %v1271
      %v1273 = vpop.f32.mrf.mxu0
      %v1274 = vadd.f32 0.0, %v1273
      %1275 = vmatmul.bf16.gmra.mxu0 %v571
      %v1276 = vpop.f32.mrf.mxu0
      %v1277 = vadd.f32 0.0, %v1276
      %v1278 = vpop.f32.mrf.mxu0
      %v1279 = vadd.f32 0.0, %v1278
      %1280 = vmatmul.bf16.gmra.mxu0 %v574
      %v1281 = vpop.f32.mrf.mxu0
      %v1282 = vadd.f32 0.0, %v1281
      %v1283 = vpop.f32.mrf.mxu0
      %v1284 = vadd.f32 0.0, %v1283
      %1285 = vmatmul.bf16.gmra.mxu0 %v577
      %v1286 = vpop.f32.mrf.mxu0
      %v1287 = vadd.f32 0.0, %v1286
      %v1288 = vpop.f32.mrf.mxu0
      %v1289 = vadd.f32 0.0, %v1288
      %1290 = vdwg.mxu0
      %1291 = vmatpush.bf16.msra.mxu0 0
      %1292 = vmatpush.bf16.msra.mxu0 0
      %1293 = vmatpush.bf16.msra.mxu0 0
      %1294 = vmatpush.bf16.msra.mxu0 0
      %1295 = vmatpush.bf16.msra.mxu0 0
      %1296 = vmatpush.bf16.msra.mxu0 0
      %1297 = vmatpush.bf16.msra.mxu0 0
      %1298 = vmatpush.bf16.msra.mxu0 %v520
      %1299 = vmatmul.bf16.gmra.mxu0 %v532
      %v1300 = vpop.f32.mrf.mxu0
      %v1301 = vadd.f32 0.0, %v1300
      %v1302 = vpop.f32.mrf.mxu0
      %v1303 = vadd.f32 0.0, %v1302
      %1304 = vmatmul.bf16.gmra.mxu0 %v535
      %v1305 = vpop.f32.mrf.mxu0
      %v1306 = vadd.f32 0.0, %v1305
      %v1307 = vpop.f32.mrf.mxu0
      %v1308 = vadd.f32 0.0, %v1307
      %1309 = vmatmul.bf16.gmra.mxu0 %v538
      %v1310 = vpop.f32.mrf.mxu0
      %v1311 = vadd.f32 0.0, %v1310
      %v1312 = vpop.f32.mrf.mxu0
      %v1313 = vadd.f32 0.0, %v1312
      %1314 = vmatmul.bf16.gmra.mxu0 %v541
      %v1315 = vpop.f32.mrf.mxu0
      %v1316 = vadd.f32 0.0, %v1315
      %v1317 = vpop.f32.mrf.mxu0
      %v1318 = vadd.f32 0.0, %v1317
      %1319 = vmatmul.bf16.gmra.mxu0 %v544
      %v1320 = vpop.f32.mrf.mxu0
      %v1321 = vadd.f32 0.0, %v1320
      %v1322 = vpop.f32.mrf.mxu0
      %v1323 = vadd.f32 0.0, %v1322
      %1324 = vmatmul.bf16.gmra.mxu0 %v547
      %v1325 = vpop.f32.mrf.mxu0
      %v1326 = vadd.f32 0.0, %v1325
      %v1327 = vpop.f32.mrf.mxu0
      %v1328 = vadd.f32 0.0, %v1327
      %1329 = vmatmul.bf16.gmra.mxu0 %v550
      %v1330 = vpop.f32.mrf.mxu0
      %v1331 = vadd.f32 0.0, %v1330
      %v1332 = vpop.f32.mrf.mxu0
      %v1333 = vadd.f32 0.0, %v1332
      %1334 = vmatmul.bf16.gmra.mxu0 %v553
      %v1335 = vpop.f32.mrf.mxu0
      %v1336 = vadd.f32 0.0, %v1335
      %v1337 = vpop.f32.mrf.mxu0
      %v1338 = vadd.f32 0.0, %v1337
      %1339 = vmatmul.bf16.gmra.mxu0 %v556
      %v1340 = vpop.f32.mrf.mxu0
      %v1341 = vadd.f32 0.0, %v1340
      %v1342 = vpop.f32.mrf.mxu0
      %v1343 = vadd.f32 0.0, %v1342
      %1344 = vmatmul.bf16.gmra.mxu0 %v559
      %v1345 = vpop.f32.mrf.mxu0
      %v1346 = vadd.f32 0.0, %v1345
      %v1347 = vpop.f32.mrf.mxu0
      %v1348 = vadd.f32 0.0, %v1347
      %1349 = vmatmul.bf16.gmra.mxu0 %v562
      %v1350 = vpop.f32.mrf.mxu0
      %v1351 = vadd.f32 0.0, %v1350
      %v1352 = vpop.f32.mrf.mxu0
      %v1353 = vadd.f32 0.0, %v1352
      %1354 = vmatmul.bf16.gmra.mxu0 %v565
      %v1355 = vpop.f32.mrf.mxu0
      %v1356 = vadd.f32 0.0, %v1355
      %v1357 = vpop.f32.mrf.mxu0
      %v1358 = vadd.f32 0.0, %v1357
      %1359 = vmatmul.bf16.gmra.mxu0 %v568
      %v1360 = vpop.f32.mrf.mxu0
      %v1361 = vadd.f32 0.0, %v1360
      %v1362 = vpop.f32.mrf.mxu0
      %v1363 = vadd.f32 0.0, %v1362
      %1364 = vmatmul.bf16.gmra.mxu0 %v571
      %v1365 = vpop.f32.mrf.mxu0
      %v1366 = vadd.f32 0.0, %v1365
      %v1367 = vpop.f32.mrf.mxu0
      %v1368 = vadd.f32 0.0, %v1367
      %1369 = vmatmul.bf16.gmra.mxu0 %v574
      %v1370 = vpop.f32.mrf.mxu0
      %v1371 = vadd.f32 0.0, %v1370
      %v1372 = vpop.f32.mrf.mxu0
      %v1373 = vadd.f32 0.0, %v1372
      %1374 = vmatmul.bf16.gmra.mxu0 %v577
      %v1375 = vpop.f32.mrf.mxu0
      %v1376 = vadd.f32 0.0, %v1375
      %v1377 = vpop.f32.mrf.mxu0
      %v1378 = vadd.f32 0.0, %v1377
      %1379 = vdwg.mxu0
      %v1412 = vunpack.c.l.b16 %v320
      %v1413 = vunpack.c.l.b16 %v321
      %v1414 = vunpack.c.l.b16 %v322
      %v1415 = vunpack.c.l.b16 %v323
      %v1416 = vunpack.c.l.b16 %v324
      %v1417 = vunpack.c.l.b16 %v325
      %v1418 = vunpack.c.l.b16 %v326
      %v1419 = vunpack.c.l.b16 %v327
      %v1420 = vunpack.c.l.b16 %v328
      %v1421 = vunpack.c.l.b16 %v329
      %v1422 = vunpack.c.l.b16 %v330
      %v1423 = vunpack.c.l.b16 %v331
      %v1424 = vunpack.c.l.b16 %v332
      %v1425 = vunpack.c.l.b16 %v333
      %v1426 = vunpack.c.l.b16 %v334
      %v1427 = vunpack.c.l.b16 %v335
      %v1428 = vunpack.c.l.b16 %v336
      %v1429 = vunpack.c.l.b16 %v337
      %v1430 = vunpack.c.l.b16 %v338
      %v1431 = vunpack.c.l.b16 %v339
      %v1432 = vunpack.c.l.b16 %v340
      %v1433 = vunpack.c.l.b16 %v341
      %v1434 = vunpack.c.l.b16 %v342
      %v1435 = vunpack.c.l.b16 %v343
      %v1436 = vunpack.c.l.b16 %v344
      %v1437 = vunpack.c.l.b16 %v345
      %v1438 = vunpack.c.l.b16 %v346
      %v1439 = vunpack.c.l.b16 %v347
      %v1440 = vunpack.c.l.b16 %v348
      %v1441 = vunpack.c.l.b16 %v349
      %v1442 = vunpack.c.l.b16 %v350
      %v1443 = vunpack.c.l.b16 %v351
      %v1444 = vpack.c.b16 %v1413, %v1412
      %v1445 = vpack.c.b16 %v1415, %v1414
      %v1446 = vpack.c.b16 %v1417, %v1416
      %v1447 = vpack.c.b16 %v1419, %v1418
      %v1448 = vpack.c.b16 %v1421, %v1420
      %v1449 = vpack.c.b16 %v1423, %v1422
      %v1450 = vpack.c.b16 %v1425, %v1424
      %v1451 = vpack.c.b16 %v1427, %v1426
      %v1452 = vpack.c.b16 %v1429, %v1428
      %v1453 = vpack.c.b16 %v1431, %v1430
      %v1454 = vpack.c.b16 %v1433, %v1432
      %v1455 = vpack.c.b16 %v1435, %v1434
      %v1456 = vpack.c.b16 %v1437, %v1436
      %v1457 = vpack.c.b16 %v1439, %v1438
      %v1458 = vpack.c.b16 %v1441, %v1440
      %v1459 = vpack.c.b16 %v1443, %v1442
      %v1470 = vunpack.c.l.b16 %v384
      %v1471 = vunpack.c.h.b16 %v384
      %v1472 = vunpack.c.l.b16 %v385
      %v1473 = vunpack.c.h.b16 %v385
      %v1474 = vunpack.c.l.b16 %v386
      %v1475 = vunpack.c.h.b16 %v386
      %v1476 = vunpack.c.l.b16 %v387
      %v1477 = vunpack.c.h.b16 %v387
      %v1478 = vunpack.c.l.b16 %v388
      %v1479 = vunpack.c.l.b16 %v389
      %v1480 = vunpack.c.h.b16 %v389
      %v1481 = vunpack.c.l.b16 %v390
      %v1482 = vunpack.c.h.b16 %v390
      %v1483 = vunpack.c.l.b16 %v391
      %v1484 = vunpack.c.h.b16 %v391
      %v1485 = vunpack.c.l.b16 %v392
      %v1486 = vunpack.c.h.b16 %v392
      %v1487 = vunpack.c.l.b16 %v393
      %v1488 = vpack.c.b16 %v1479, %v1470
      %v1489 = vpack.c.b16 %v1480, %v1471
      %v1490 = vpack.c.b16 %v1481, %v1472
      %v1491 = vpack.c.b16 %v1482, %v1473
      %v1492 = vpack.c.b16 %v1483, %v1474
      %v1493 = vpack.c.b16 %v1484, %v1475
      %v1494 = vpack.c.b16 %v1485, %v1476
      %v1495 = vpack.c.b16 %v1486, %v1477
      %v1496 = vpack.c.b16 %v1487, %v1478
      %v1507 = vsel %vm530, %v1444, 0
      %v1510 = vsel %vm530, %v1445, 0
      %v1513 = vsel %vm530, %v1446, 0
      %v1516 = vsel %vm530, %v1447, 0
      %v1519 = vsel %vm530, %v1448, 0
      %v1522 = vsel %vm530, %v1449, 0
      %v1525 = vsel %vm530, %v1450, 0
      %v1528 = vsel %vm530, %v1451, 0
      %v1531 = vsel %vm530, %v1452, 0
      %v1534 = vsel %vm530, %v1453, 0
      %v1537 = vsel %vm530, %v1454, 0
      %v1540 = vsel %vm530, %v1455, 0
      %v1543 = vsel %vm530, %v1456, 0
      %v1546 = vsel %vm530, %v1457, 0
      %v1549 = vsel %vm530, %v1458, 0
      %v1552 = vsel %vm530, %v1459, 0
      %1554 = vmatpush.bf16.msra.mxu0 0
      %1555 = vmatpush.bf16.msra.mxu0 0
      %1556 = vmatpush.bf16.msra.mxu0 0
      %1557 = vmatpush.bf16.msra.mxu0 0
      %1558 = vmatpush.bf16.msra.mxu0 0
      %1559 = vmatpush.bf16.msra.mxu0 0
      %1560 = vmatpush.bf16.msra.mxu0 0
      %1561 = vmatpush.bf16.msra.mxu0 %v1488
      %1562 = vmatmul.bf16.gmra.mxu0 %v1507
      %v1563 = vpop.f32.mrf.mxu0
      %v1564 = vadd.f32 %v589, %v1563
      %v1565 = vpop.f32.mrf.mxu0
      %v1566 = vadd.f32 %v591, %v1565
      %1567 = vmatmul.bf16.gmra.mxu0 %v1510
      %v1568 = vpop.f32.mrf.mxu0
      %v1569 = vadd.f32 %v594, %v1568
      %v1570 = vpop.f32.mrf.mxu0
      %v1571 = vadd.f32 %v596, %v1570
      %1572 = vmatmul.bf16.gmra.mxu0 %v1513
      %v1573 = vpop.f32.mrf.mxu0
      %v1574 = vadd.f32 %v599, %v1573
      %v1575 = vpop.f32.mrf.mxu0
      %v1576 = vadd.f32 %v601, %v1575
      %1577 = vmatmul.bf16.gmra.mxu0 %v1516
      %v1578 = vpop.f32.mrf.mxu0
      %v1579 = vadd.f32 %v604, %v1578
      %v1580 = vpop.f32.mrf.mxu0
      %v1581 = vadd.f32 %v606, %v1580
      %1582 = vmatmul.bf16.gmra.mxu0 %v1519
      %v1583 = vpop.f32.mrf.mxu0
      %v1584 = vadd.f32 %v609, %v1583
      %v1585 = vpop.f32.mrf.mxu0
      %v1586 = vadd.f32 %v611, %v1585
      %1587 = vmatmul.bf16.gmra.mxu0 %v1522
      %v1588 = vpop.f32.mrf.mxu0
      %v1589 = vadd.f32 %v614, %v1588
      %v1590 = vpop.f32.mrf.mxu0
      %v1591 = vadd.f32 %v616, %v1590
      %1592 = vmatmul.bf16.gmra.mxu0 %v1525
      %v1593 = vpop.f32.mrf.mxu0
      %v1594 = vadd.f32 %v619, %v1593
      %v1595 = vpop.f32.mrf.mxu0
      %v1596 = vadd.f32 %v621, %v1595
      %1597 = vmatmul.bf16.gmra.mxu0 %v1528
      %v1598 = vpop.f32.mrf.mxu0
      %v1599 = vadd.f32 %v624, %v1598
      %v1600 = vpop.f32.mrf.mxu0
      %v1601 = vadd.f32 %v626, %v1600
      %1602 = vmatmul.bf16.gmra.mxu0 %v1531
      %v1603 = vpop.f32.mrf.mxu0
      %v1604 = vadd.f32 %v629, %v1603
      %v1605 = vpop.f32.mrf.mxu0
      %v1606 = vadd.f32 %v631, %v1605
      %1607 = vmatmul.bf16.gmra.mxu0 %v1534
      %v1608 = vpop.f32.mrf.mxu0
      %v1609 = vadd.f32 %v634, %v1608
      %v1610 = vpop.f32.mrf.mxu0
      %v1611 = vadd.f32 %v636, %v1610
      %1612 = vmatmul.bf16.gmra.mxu0 %v1537
      %v1613 = vpop.f32.mrf.mxu0
      %v1614 = vadd.f32 %v639, %v1613
      %v1615 = vpop.f32.mrf.mxu0
      %v1616 = vadd.f32 %v641, %v1615
      %1617 = vmatmul.bf16.gmra.mxu0 %v1540
      %v1618 = vpop.f32.mrf.mxu0
      %v1619 = vadd.f32 %v644, %v1618
      %v1620 = vpop.f32.mrf.mxu0
      %v1621 = vadd.f32 %v646, %v1620
      %1622 = vmatmul.bf16.gmra.mxu0 %v1543
      %v1623 = vpop.f32.mrf.mxu0
      %v1624 = vadd.f32 %v649, %v1623
      %v1625 = vpop.f32.mrf.mxu0
      %v1626 = vadd.f32 %v651, %v1625
      %1627 = vmatmul.bf16.gmra.mxu0 %v1546
      %v1628 = vpop.f32.mrf.mxu0
      %v1629 = vadd.f32 %v654, %v1628
      %v1630 = vpop.f32.mrf.mxu0
      %v1631 = vadd.f32 %v656, %v1630
      %1632 = vmatmul.bf16.gmra.mxu0 %v1549
      %v1633 = vpop.f32.mrf.mxu0
      %v1634 = vadd.f32 %v659, %v1633
      %v1635 = vpop.f32.mrf.mxu0
      %v1636 = vadd.f32 %v661, %v1635
      %1637 = vmatmul.bf16.gmra.mxu0 %v1552
      %v1638 = vpop.f32.mrf.mxu0
      %v1639 = vadd.f32 %v664, %v1638
      %v1640 = vpop.f32.mrf.mxu0
      %v1641 = vadd.f32 %v666, %v1640
      %1642 = vdwg.mxu0
      %1643 = vmatpush.bf16.msra.mxu0 0
      %1644 = vmatpush.bf16.msra.mxu0 0
      %1645 = vmatpush.bf16.msra.mxu0 0
      %1646 = vmatpush.bf16.msra.mxu0 0
      %1647 = vmatpush.bf16.msra.mxu0 0
      %1648 = vmatpush.bf16.msra.mxu0 0
      %1649 = vmatpush.bf16.msra.mxu0 0
      %1650 = vmatpush.bf16.msra.mxu0 %v1489
      %1651 = vmatmul.bf16.gmra.mxu0 %v1507
      %v1652 = vpop.f32.mrf.mxu0
      %v1653 = vadd.f32 %v678, %v1652
      %v1654 = vpop.f32.mrf.mxu0
      %v1655 = vadd.f32 %v680, %v1654
      %1656 = vmatmul.bf16.gmra.mxu0 %v1510
      %v1657 = vpop.f32.mrf.mxu0
      %v1658 = vadd.f32 %v683, %v1657
      %v1659 = vpop.f32.mrf.mxu0
      %v1660 = vadd.f32 %v685, %v1659
      %1661 = vmatmul.bf16.gmra.mxu0 %v1513
      %v1662 = vpop.f32.mrf.mxu0
      %v1663 = vadd.f32 %v688, %v1662
      %v1664 = vpop.f32.mrf.mxu0
      %v1665 = vadd.f32 %v690, %v1664
      %1666 = vmatmul.bf16.gmra.mxu0 %v1516
      %v1667 = vpop.f32.mrf.mxu0
      %v1668 = vadd.f32 %v693, %v1667
      %v1669 = vpop.f32.mrf.mxu0
      %v1670 = vadd.f32 %v695, %v1669
      %1671 = vmatmul.bf16.gmra.mxu0 %v1519
      %v1672 = vpop.f32.mrf.mxu0
      %v1673 = vadd.f32 %v698, %v1672
      %v1674 = vpop.f32.mrf.mxu0
      %v1675 = vadd.f32 %v700, %v1674
      %1676 = vmatmul.bf16.gmra.mxu0 %v1522
      %v1677 = vpop.f32.mrf.mxu0
      %v1678 = vadd.f32 %v703, %v1677
      %v1679 = vpop.f32.mrf.mxu0
      %v1680 = vadd.f32 %v705, %v1679
      %1681 = vmatmul.bf16.gmra.mxu0 %v1525
      %v1682 = vpop.f32.mrf.mxu0
      %v1683 = vadd.f32 %v708, %v1682
      %v1684 = vpop.f32.mrf.mxu0
      %v1685 = vadd.f32 %v710, %v1684
      %1686 = vmatmul.bf16.gmra.mxu0 %v1528
      %v1687 = vpop.f32.mrf.mxu0
      %v1688 = vadd.f32 %v713, %v1687
      %v1689 = vpop.f32.mrf.mxu0
      %v1690 = vadd.f32 %v715, %v1689
      %1691 = vmatmul.bf16.gmra.mxu0 %v1531
      %v1692 = vpop.f32.mrf.mxu0
      %v1693 = vadd.f32 %v718, %v1692
      %v1694 = vpop.f32.mrf.mxu0
      %v1695 = vadd.f32 %v720, %v1694
      %1696 = vmatmul.bf16.gmra.mxu0 %v1534
      %v1697 = vpop.f32.mrf.mxu0
      %v1698 = vadd.f32 %v723, %v1697
      %v1699 = vpop.f32.mrf.mxu0
      %v1700 = vadd.f32 %v725, %v1699
      %1701 = vmatmul.bf16.gmra.mxu0 %v1537
      %v1702 = vpop.f32.mrf.mxu0
      %v1703 = vadd.f32 %v728, %v1702
      %v1704 = vpop.f32.mrf.mxu0
      %v1705 = vadd.f32 %v730, %v1704
      %1706 = vmatmul.bf16.gmra.mxu0 %v1540
      %v1707 = vpop.f32.mrf.mxu0
      %v1708 = vadd.f32 %v733, %v1707
      %v1709 = vpop.f32.mrf.mxu0
      %v1710 = vadd.f32 %v735, %v1709
      %1711 = vmatmul.bf16.gmra.mxu0 %v1543
      %v1712 = vpop.f32.mrf.mxu0
      %v1713 = vadd.f32 %v738, %v1712
      %v1714 = vpop.f32.mrf.mxu0
      %v1715 = vadd.f32 %v740, %v1714
      %1716 = vmatmul.bf16.gmra.mxu0 %v1546
      %v1717 = vpop.f32.mrf.mxu0
      %v1718 = vadd.f32 %v743, %v1717
      %v1719 = vpop.f32.mrf.mxu0
      %v1720 = vadd.f32 %v745, %v1719
      %1721 = vmatmul.bf16.gmra.mxu0 %v1549
      %v1722 = vpop.f32.mrf.mxu0
      %v1723 = vadd.f32 %v748, %v1722
      %v1724 = vpop.f32.mrf.mxu0
      %v1725 = vadd.f32 %v750, %v1724
      %1726 = vmatmul.bf16.gmra.mxu0 %v1552
      %v1727 = vpop.f32.mrf.mxu0
      %v1728 = vadd.f32 %v753, %v1727
      %v1729 = vpop.f32.mrf.mxu0
      %v1730 = vadd.f32 %v755, %v1729
      %1731 = vdwg.mxu0
      %1732 = vmatpush.bf16.msra.mxu0 0
      %1733 = vmatpush.bf16.msra.mxu0 0
      %1734 = vmatpush.bf16.msra.mxu0 0
      %1735 = vmatpush.bf16.msra.mxu0 0
      %1736 = vmatpush.bf16.msra.mxu0 0
      %1737 = vmatpush.bf16.msra.mxu0 0
      %1738 = vmatpush.bf16.msra.mxu0 0
      %1739 = vmatpush.bf16.msra.mxu0 %v1490
      %1740 = vmatmul.bf16.gmra.mxu0 %v1507
      %v1741 = vpop.f32.mrf.mxu0
      %v1742 = vadd.f32 %v767, %v1741
      %v1743 = vpop.f32.mrf.mxu0
      %v1744 = vadd.f32 %v769, %v1743
      %1745 = vmatmul.bf16.gmra.mxu0 %v1510
      %v1746 = vpop.f32.mrf.mxu0
      %v1747 = vadd.f32 %v772, %v1746
      %v1748 = vpop.f32.mrf.mxu0
      %v1749 = vadd.f32 %v774, %v1748
      %1750 = vmatmul.bf16.gmra.mxu0 %v1513
      %v1751 = vpop.f32.mrf.mxu0
      %v1752 = vadd.f32 %v777, %v1751
      %v1753 = vpop.f32.mrf.mxu0
      %v1754 = vadd.f32 %v779, %v1753
      %1755 = vmatmul.bf16.gmra.mxu0 %v1516
      %v1756 = vpop.f32.mrf.mxu0
      %v1757 = vadd.f32 %v782, %v1756
      %v1758 = vpop.f32.mrf.mxu0
      %v1759 = vadd.f32 %v784, %v1758
      %1760 = vmatmul.bf16.gmra.mxu0 %v1519
      %v1761 = vpop.f32.mrf.mxu0
      %v1762 = vadd.f32 %v787, %v1761
      %v1763 = vpop.f32.mrf.mxu0
      %v1764 = vadd.f32 %v789, %v1763
      %1765 = vmatmul.bf16.gmra.mxu0 %v1522
      %v1766 = vpop.f32.mrf.mxu0
      %v1767 = vadd.f32 %v792, %v1766
      %v1768 = vpop.f32.mrf.mxu0
      %v1769 = vadd.f32 %v794, %v1768
      %1770 = vmatmul.bf16.gmra.mxu0 %v1525
      %v1771 = vpop.f32.mrf.mxu0
      %v1772 = vadd.f32 %v797, %v1771
      %v1773 = vpop.f32.mrf.mxu0
      %v1774 = vadd.f32 %v799, %v1773
      %1775 = vmatmul.bf16.gmra.mxu0 %v1528
      %v1776 = vpop.f32.mrf.mxu0
      %v1777 = vadd.f32 %v802, %v1776
      %v1778 = vpop.f32.mrf.mxu0
      %v1779 = vadd.f32 %v804, %v1778
      %1780 = vmatmul.bf16.gmra.mxu0 %v1531
      %v1781 = vpop.f32.mrf.mxu0
      %v1782 = vadd.f32 %v807, %v1781
      %v1783 = vpop.f32.mrf.mxu0
      %v1784 = vadd.f32 %v809, %v1783
      %1785 = vmatmul.bf16.gmra.mxu0 %v1534
      %v1786 = vpop.f32.mrf.mxu0
      %v1787 = vadd.f32 %v812, %v1786
      %v1788 = vpop.f32.mrf.mxu0
      %v1789 = vadd.f32 %v814, %v1788
      %1790 = vmatmul.bf16.gmra.mxu0 %v1537
      %v1791 = vpop.f32.mrf.mxu0
      %v1792 = vadd.f32 %v817, %v1791
      %v1793 = vpop.f32.mrf.mxu0
      %v1794 = vadd.f32 %v819, %v1793
      %1795 = vmatmul.bf16.gmra.mxu0 %v1540
      %v1796 = vpop.f32.mrf.mxu0
      %v1797 = vadd.f32 %v822, %v1796
      %v1798 = vpop.f32.mrf.mxu0
      %v1799 = vadd.f32 %v824, %v1798
      %1800 = vmatmul.bf16.gmra.mxu0 %v1543
      %v1801 = vpop.f32.mrf.mxu0
      %v1802 = vadd.f32 %v827, %v1801
      %v1803 = vpop.f32.mrf.mxu0
      %v1804 = vadd.f32 %v829, %v1803
      %1805 = vmatmul.bf16.gmra.mxu0 %v1546
      %v1806 = vpop.f32.mrf.mxu0
      %v1807 = vadd.f32 %v832, %v1806
      %v1808 = vpop.f32.mrf.mxu0
      %v1809 = vadd.f32 %v834, %v1808
      %1810 = vmatmul.bf16.gmra.mxu0 %v1549
      %v1811 = vpop.f32.mrf.mxu0
      %v1812 = vadd.f32 %v837, %v1811
      %v1813 = vpop.f32.mrf.mxu0
      %v1814 = vadd.f32 %v839, %v1813
      %1815 = vmatmul.bf16.gmra.mxu0 %v1552
      %v1816 = vpop.f32.mrf.mxu0
      %v1817 = vadd.f32 %v842, %v1816
      %v1818 = vpop.f32.mrf.mxu0
      %v1819 = vadd.f32 %v844, %v1818
      %1820 = vdwg.mxu0
      %1821 = vmatpush.bf16.msra.mxu0 0
      %1822 = vmatpush.bf16.msra.mxu0 0
      %1823 = vmatpush.bf16.msra.mxu0 0
      %1824 = vmatpush.bf16.msra.mxu0 0
      %1825 = vmatpush.bf16.msra.mxu0 0
      %1826 = vmatpush.bf16.msra.mxu0 0
      %1827 = vmatpush.bf16.msra.mxu0 0
      %1828 = vmatpush.bf16.msra.mxu0 %v1491
      %1829 = vmatmul.bf16.gmra.mxu0 %v1507
      %v1830 = vpop.f32.mrf.mxu0
      %v1831 = vadd.f32 %v856, %v1830
      %v1832 = vpop.f32.mrf.mxu0
      %v1833 = vadd.f32 %v858, %v1832
      %1834 = vmatmul.bf16.gmra.mxu0 %v1510
      %v1835 = vpop.f32.mrf.mxu0
      %v1836 = vadd.f32 %v861, %v1835
      %v1837 = vpop.f32.mrf.mxu0
      %v1838 = vadd.f32 %v863, %v1837
      %1839 = vmatmul.bf16.gmra.mxu0 %v1513
      %v1840 = vpop.f32.mrf.mxu0
      %v1841 = vadd.f32 %v866, %v1840
      %v1842 = vpop.f32.mrf.mxu0
      %v1843 = vadd.f32 %v868, %v1842
      %1844 = vmatmul.bf16.gmra.mxu0 %v1516
      %v1845 = vpop.f32.mrf.mxu0
      %v1846 = vadd.f32 %v871, %v1845
      %v1847 = vpop.f32.mrf.mxu0
      %v1848 = vadd.f32 %v873, %v1847
      %1849 = vmatmul.bf16.gmra.mxu0 %v1519
      %v1850 = vpop.f32.mrf.mxu0
      %v1851 = vadd.f32 %v876, %v1850
      %v1852 = vpop.f32.mrf.mxu0
      %v1853 = vadd.f32 %v878, %v1852
      %1854 = vmatmul.bf16.gmra.mxu0 %v1522
      %v1855 = vpop.f32.mrf.mxu0
      %v1856 = vadd.f32 %v881, %v1855
      %v1857 = vpop.f32.mrf.mxu0
      %v1858 = vadd.f32 %v883, %v1857
      %1859 = vmatmul.bf16.gmra.mxu0 %v1525
      %v1860 = vpop.f32.mrf.mxu0
      %v1861 = vadd.f32 %v886, %v1860
      %v1862 = vpop.f32.mrf.mxu0
      %v1863 = vadd.f32 %v888, %v1862
      %1864 = vmatmul.bf16.gmra.mxu0 %v1528
      %v1865 = vpop.f32.mrf.mxu0
      %v1866 = vadd.f32 %v891, %v1865
      %v1867 = vpop.f32.mrf.mxu0
      %v1868 = vadd.f32 %v893, %v1867
      %1869 = vmatmul.bf16.gmra.mxu0 %v1531
      %v1870 = vpop.f32.mrf.mxu0
      %v1871 = vadd.f32 %v896, %v1870
      %v1872 = vpop.f32.mrf.mxu0
      %v1873 = vadd.f32 %v898, %v1872
      %1874 = vmatmul.bf16.gmra.mxu0 %v1534
      %v1875 = vpop.f32.mrf.mxu0
      %v1876 = vadd.f32 %v901, %v1875
      %v1877 = vpop.f32.mrf.mxu0
      %v1878 = vadd.f32 %v903, %v1877
      %1879 = vmatmul.bf16.gmra.mxu0 %v1537
      %v1880 = vpop.f32.mrf.mxu0
      %v1881 = vadd.f32 %v906, %v1880
      %v1882 = vpop.f32.mrf.mxu0
      %v1883 = vadd.f32 %v908, %v1882
      %1884 = vmatmul.bf16.gmra.mxu0 %v1540
      %v1885 = vpop.f32.mrf.mxu0
      %v1886 = vadd.f32 %v911, %v1885
      %v1887 = vpop.f32.mrf.mxu0
      %v1888 = vadd.f32 %v913, %v1887
      %1889 = vmatmul.bf16.gmra.mxu0 %v1543
      %v1890 = vpop.f32.mrf.mxu0
      %v1891 = vadd.f32 %v916, %v1890
      %v1892 = vpop.f32.mrf.mxu0
      %v1893 = vadd.f32 %v918, %v1892
      %1894 = vmatmul.bf16.gmra.mxu0 %v1546
      %v1895 = vpop.f32.mrf.mxu0
      %v1896 = vadd.f32 %v921, %v1895
      %v1897 = vpop.f32.mrf.mxu0
      %v1898 = vadd.f32 %v923, %v1897
      %1899 = vmatmul.bf16.gmra.mxu0 %v1549
      %v1900 = vpop.f32.mrf.mxu0
      %v1901 = vadd.f32 %v926, %v1900
      %v1902 = vpop.f32.mrf.mxu0
      %v1903 = vadd.f32 %v928, %v1902
      %1904 = vmatmul.bf16.gmra.mxu0 %v1552
      %v1905 = vpop.f32.mrf.mxu0
      %v1906 = vadd.f32 %v931, %v1905
      %v1907 = vpop.f32.mrf.mxu0
      %v1908 = vadd.f32 %v933, %v1907
      %1909 = vdwg.mxu0
      %1910 = vmatpush.bf16.msra.mxu0 0
      %1911 = vmatpush.bf16.msra.mxu0 0
      %1912 = vmatpush.bf16.msra.mxu0 0
      %1913 = vmatpush.bf16.msra.mxu0 0
      %1914 = vmatpush.bf16.msra.mxu0 0
      %1915 = vmatpush.bf16.msra.mxu0 0
      %1916 = vmatpush.bf16.msra.mxu0 0
      %1917 = vmatpush.bf16.msra.mxu0 %v1492
      %1918 = vmatmul.bf16.gmra.mxu0 %v1507
      %v1919 = vpop.f32.mrf.mxu0
      %v1920 = vadd.f32 %v945, %v1919
      %v1921 = vpop.f32.mrf.mxu0
      %v1922 = vadd.f32 %v947, %v1921
      %1923 = vmatmul.bf16.gmra.mxu0 %v1510
      %v1924 = vpop.f32.mrf.mxu0
      %v1925 = vadd.f32 %v950, %v1924
      %v1926 = vpop.f32.mrf.mxu0
      %v1927 = vadd.f32 %v952, %v1926
      %1928 = vmatmul.bf16.gmra.mxu0 %v1513
      %v1929 = vpop.f32.mrf.mxu0
      %v1930 = vadd.f32 %v955, %v1929
      %v1931 = vpop.f32.mrf.mxu0
      %v1932 = vadd.f32 %v957, %v1931
      %1933 = vmatmul.bf16.gmra.mxu0 %v1516
      %v1934 = vpop.f32.mrf.mxu0
      %v1935 = vadd.f32 %v960, %v1934
      %v1936 = vpop.f32.mrf.mxu0
      %v1937 = vadd.f32 %v962, %v1936
      %1938 = vmatmul.bf16.gmra.mxu0 %v1519
      %v1939 = vpop.f32.mrf.mxu0
      %v1940 = vadd.f32 %v965, %v1939
      %v1941 = vpop.f32.mrf.mxu0
      %v1942 = vadd.f32 %v967, %v1941
      %1943 = vmatmul.bf16.gmra.mxu0 %v1522
      %v1944 = vpop.f32.mrf.mxu0
      %v1945 = vadd.f32 %v970, %v1944
      %v1946 = vpop.f32.mrf.mxu0
      %v1947 = vadd.f32 %v972, %v1946
      %1948 = vmatmul.bf16.gmra.mxu0 %v1525
      %v1949 = vpop.f32.mrf.mxu0
      %v1950 = vadd.f32 %v975, %v1949
      %v1951 = vpop.f32.mrf.mxu0
      %v1952 = vadd.f32 %v977, %v1951
      %1953 = vmatmul.bf16.gmra.mxu0 %v1528
      %v1954 = vpop.f32.mrf.mxu0
      %v1955 = vadd.f32 %v980, %v1954
      %v1956 = vpop.f32.mrf.mxu0
      %v1957 = vadd.f32 %v982, %v1956
      %1958 = vmatmul.bf16.gmra.mxu0 %v1531
      %v1959 = vpop.f32.mrf.mxu0
      %v1960 = vadd.f32 %v985, %v1959
      %v1961 = vpop.f32.mrf.mxu0
      %v1962 = vadd.f32 %v987, %v1961
      %1963 = vmatmul.bf16.gmra.mxu0 %v1534
      %v1964 = vpop.f32.mrf.mxu0
      %v1965 = vadd.f32 %v990, %v1964
      %v1966 = vpop.f32.mrf.mxu0
      %v1967 = vadd.f32 %v992, %v1966
      %1968 = vmatmul.bf16.gmra.mxu0 %v1537
      %v1969 = vpop.f32.mrf.mxu0
      %v1970 = vadd.f32 %v995, %v1969
      %v1971 = vpop.f32.mrf.mxu0
      %v1972 = vadd.f32 %v997, %v1971
      %1973 = vmatmul.bf16.gmra.mxu0 %v1540
      %v1974 = vpop.f32.mrf.mxu0
      %v1975 = vadd.f32 %v1000, %v1974
      %v1976 = vpop.f32.mrf.mxu0
      %v1977 = vadd.f32 %v1002, %v1976
      %1978 = vmatmul.bf16.gmra.mxu0 %v1543
      %v1979 = vpop.f32.mrf.mxu0
      %v1980 = vadd.f32 %v1005, %v1979
      %v1981 = vpop.f32.mrf.mxu0
      %v1982 = vadd.f32 %v1007, %v1981
      %1983 = vmatmul.bf16.gmra.mxu0 %v1546
      %v1984 = vpop.f32.mrf.mxu0
      %v1985 = vadd.f32 %v1010, %v1984
      %v1986 = vpop.f32.mrf.mxu0
      %v1987 = vadd.f32 %v1012, %v1986
      %1988 = vmatmul.bf16.gmra.mxu0 %v1549
      %v1989 = vpop.f32.mrf.mxu0
      %v1990 = vadd.f32 %v1015, %v1989
      %v1991 = vpop.f32.mrf.mxu0
      %v1992 = vadd.f32 %v1017, %v1991
      %1993 = vmatmul.bf16.gmra.mxu0 %v1552
      %v1994 = vpop.f32.mrf.mxu0
      %v1995 = vadd.f32 %v1020, %v1994
      %v1996 = vpop.f32.mrf.mxu0
      %v1997 = vadd.f32 %v1022, %v1996
      %1998 = vdwg.mxu0
      %1999 = vmatpush.bf16.msra.mxu0 0
      %2000 = vmatpush.bf16.msra.mxu0 0
      %2001 = vmatpush.bf16.msra.mxu0 0
      %2002 = vmatpush.bf16.msra.mxu0 0
      %2003 = vmatpush.bf16.msra.mxu0 0
      %2004 = vmatpush.bf16.msra.mxu0 0
      %2005 = vmatpush.bf16.msra.mxu0 0
      %2006 = vmatpush.bf16.msra.mxu0 %v1493
      %2007 = vmatmul.bf16.gmra.mxu0 %v1507
      %v2008 = vpop.f32.mrf.mxu0
      %v2009 = vadd.f32 %v1034, %v2008
      %v2010 = vpop.f32.mrf.mxu0
      %v2011 = vadd.f32 %v1036, %v2010
      %2012 = vmatmul.bf16.gmra.mxu0 %v1510
      %v2013 = vpop.f32.mrf.mxu0
      %v2014 = vadd.f32 %v1039, %v2013
      %v2015 = vpop.f32.mrf.mxu0
      %v2016 = vadd.f32 %v1041, %v2015
      %2017 = vmatmul.bf16.gmra.mxu0 %v1513
      %v2018 = vpop.f32.mrf.mxu0
      %v2019 = vadd.f32 %v1044, %v2018
      %v2020 = vpop.f32.mrf.mxu0
      %v2021 = vadd.f32 %v1046, %v2020
      %2022 = vmatmul.bf16.gmra.mxu0 %v1516
      %v2023 = vpop.f32.mrf.mxu0
      %v2024 = vadd.f32 %v1049, %v2023
      %v2025 = vpop.f32.mrf.mxu0
      %v2026 = vadd.f32 %v1051, %v2025
      %2027 = vmatmul.bf16.gmra.mxu0 %v1519
      %v2028 = vpop.f32.mrf.mxu0
      %v2029 = vadd.f32 %v1054, %v2028
      %v2030 = vpop.f32.mrf.mxu0
      %v2031 = vadd.f32 %v1056, %v2030
      %2032 = vmatmul.bf16.gmra.mxu0 %v1522
      %v2033 = vpop.f32.mrf.mxu0
      %v2034 = vadd.f32 %v1059, %v2033
      %v2035 = vpop.f32.mrf.mxu0
      %v2036 = vadd.f32 %v1061, %v2035
      %2037 = vmatmul.bf16.gmra.mxu0 %v1525
      %v2038 = vpop.f32.mrf.mxu0
      %v2039 = vadd.f32 %v1064, %v2038
      %v2040 = vpop.f32.mrf.mxu0
      %v2041 = vadd.f32 %v1066, %v2040
      %2042 = vmatmul.bf16.gmra.mxu0 %v1528
      %v2043 = vpop.f32.mrf.mxu0
      %v2044 = vadd.f32 %v1069, %v2043
      %v2045 = vpop.f32.mrf.mxu0
      %v2046 = vadd.f32 %v1071, %v2045
      %2047 = vmatmul.bf16.gmra.mxu0 %v1531
      %v2048 = vpop.f32.mrf.mxu0
      %v2049 = vadd.f32 %v1074, %v2048
      %v2050 = vpop.f32.mrf.mxu0
      %v2051 = vadd.f32 %v1076, %v2050
      %2052 = vmatmul.bf16.gmra.mxu0 %v1534
      %v2053 = vpop.f32.mrf.mxu0
      %v2054 = vadd.f32 %v1079, %v2053
      %v2055 = vpop.f32.mrf.mxu0
      %v2056 = vadd.f32 %v1081, %v2055
      %2057 = vmatmul.bf16.gmra.mxu0 %v1537
      %v2058 = vpop.f32.mrf.mxu0
      %v2059 = vadd.f32 %v1084, %v2058
      %v2060 = vpop.f32.mrf.mxu0
      %v2061 = vadd.f32 %v1086, %v2060
      %2062 = vmatmul.bf16.gmra.mxu0 %v1540
      %v2063 = vpop.f32.mrf.mxu0
      %v2064 = vadd.f32 %v1089, %v2063
      %v2065 = vpop.f32.mrf.mxu0
      %v2066 = vadd.f32 %v1091, %v2065
      %2067 = vmatmul.bf16.gmra.mxu0 %v1543
      %v2068 = vpop.f32.mrf.mxu0
      %v2069 = vadd.f32 %v1094, %v2068
      %v2070 = vpop.f32.mrf.mxu0
      %v2071 = vadd.f32 %v1096, %v2070
      %2072 = vmatmul.bf16.gmra.mxu0 %v1546
      %v2073 = vpop.f32.mrf.mxu0
      %v2074 = vadd.f32 %v1099, %v2073
      %v2075 = vpop.f32.mrf.mxu0
      %v2076 = vadd.f32 %v1101, %v2075
      %2077 = vmatmul.bf16.gmra.mxu0 %v1549
      %v2078 = vpop.f32.mrf.mxu0
      %v2079 = vadd.f32 %v1104, %v2078
      %v2080 = vpop.f32.mrf.mxu0
      %v2081 = vadd.f32 %v1106, %v2080
      %2082 = vmatmul.bf16.gmra.mxu0 %v1552
      %v2083 = vpop.f32.mrf.mxu0
      %v2084 = vadd.f32 %v1109, %v2083
      %v2085 = vpop.f32.mrf.mxu0
      %v2086 = vadd.f32 %v1111, %v2085
      %2087 = vdwg.mxu0
      %2088 = vmatpush.bf16.msra.mxu0 0
      %2089 = vmatpush.bf16.msra.mxu0 0
      %2090 = vmatpush.bf16.msra.mxu0 0
      %2091 = vmatpush.bf16.msra.mxu0 0
      %2092 = vmatpush.bf16.msra.mxu0 0
      %2093 = vmatpush.bf16.msra.mxu0 0
      %2094 = vmatpush.bf16.msra.mxu0 0
      %2095 = vmatpush.bf16.msra.mxu0 %v1494
      %2096 = vmatmul.bf16.gmra.mxu0 %v1507
      %v2097 = vpop.f32.mrf.mxu0
      %v2098 = vadd.f32 %v1123, %v2097
      %v2099 = vpop.f32.mrf.mxu0
      %v2100 = vadd.f32 %v1125, %v2099
      %2101 = vmatmul.bf16.gmra.mxu0 %v1510
      %v2102 = vpop.f32.mrf.mxu0
      %v2103 = vadd.f32 %v1128, %v2102
      %v2104 = vpop.f32.mrf.mxu0
      %v2105 = vadd.f32 %v1130, %v2104
      %2106 = vmatmul.bf16.gmra.mxu0 %v1513
      %v2107 = vpop.f32.mrf.mxu0
      %v2108 = vadd.f32 %v1133, %v2107
      %v2109 = vpop.f32.mrf.mxu0
      %v2110 = vadd.f32 %v1135, %v2109
      %2111 = vmatmul.bf16.gmra.mxu0 %v1516
      %v2112 = vpop.f32.mrf.mxu0
      %v2113 = vadd.f32 %v1138, %v2112
      %v2114 = vpop.f32.mrf.mxu0
      %v2115 = vadd.f32 %v1140, %v2114
      %2116 = vmatmul.bf16.gmra.mxu0 %v1519
      %v2117 = vpop.f32.mrf.mxu0
      %v2118 = vadd.f32 %v1143, %v2117
      %v2119 = vpop.f32.mrf.mxu0
      %v2120 = vadd.f32 %v1145, %v2119
      %2121 = vmatmul.bf16.gmra.mxu0 %v1522
      %v2122 = vpop.f32.mrf.mxu0
      %v2123 = vadd.f32 %v1148, %v2122
      %v2124 = vpop.f32.mrf.mxu0
      %v2125 = vadd.f32 %v1150, %v2124
      %2126 = vmatmul.bf16.gmra.mxu0 %v1525
      %v2127 = vpop.f32.mrf.mxu0
      %v2128 = vadd.f32 %v1153, %v2127
      %v2129 = vpop.f32.mrf.mxu0
      %v2130 = vadd.f32 %v1155, %v2129
      %2131 = vmatmul.bf16.gmra.mxu0 %v1528
      %v2132 = vpop.f32.mrf.mxu0
      %v2133 = vadd.f32 %v1158, %v2132
      %v2134 = vpop.f32.mrf.mxu0
      %v2135 = vadd.f32 %v1160, %v2134
      %2136 = vmatmul.bf16.gmra.mxu0 %v1531
      %v2137 = vpop.f32.mrf.mxu0
      %v2138 = vadd.f32 %v1163, %v2137
      %v2139 = vpop.f32.mrf.mxu0
      %v2140 = vadd.f32 %v1165, %v2139
      %2141 = vmatmul.bf16.gmra.mxu0 %v1534
      %v2142 = vpop.f32.mrf.mxu0
      %v2143 = vadd.f32 %v1168, %v2142
      %v2144 = vpop.f32.mrf.mxu0
      %v2145 = vadd.f32 %v1170, %v2144
      %2146 = vmatmul.bf16.gmra.mxu0 %v1537
      %v2147 = vpop.f32.mrf.mxu0
      %v2148 = vadd.f32 %v1173, %v2147
      %v2149 = vpop.f32.mrf.mxu0
      %v2150 = vadd.f32 %v1175, %v2149
      %2151 = vmatmul.bf16.gmra.mxu0 %v1540
      %v2152 = vpop.f32.mrf.mxu0
      %v2153 = vadd.f32 %v1178, %v2152
      %v2154 = vpop.f32.mrf.mxu0
      %v2155 = vadd.f32 %v1180, %v2154
      %2156 = vmatmul.bf16.gmra.mxu0 %v1543
      %v2157 = vpop.f32.mrf.mxu0
      %v2158 = vadd.f32 %v1183, %v2157
      %v2159 = vpop.f32.mrf.mxu0
      %v2160 = vadd.f32 %v1185, %v2159
      %2161 = vmatmul.bf16.gmra.mxu0 %v1546
      %v2162 = vpop.f32.mrf.mxu0
      %v2163 = vadd.f32 %v1188, %v2162
      %v2164 = vpop.f32.mrf.mxu0
      %v2165 = vadd.f32 %v1190, %v2164
      %2166 = vmatmul.bf16.gmra.mxu0 %v1549
      %v2167 = vpop.f32.mrf.mxu0
      %v2168 = vadd.f32 %v1193, %v2167
      %v2169 = vpop.f32.mrf.mxu0
      %v2170 = vadd.f32 %v1195, %v2169
      %2171 = vmatmul.bf16.gmra.mxu0 %v1552
      %v2172 = vpop.f32.mrf.mxu0
      %v2173 = vadd.f32 %v1198, %v2172
      %v2174 = vpop.f32.mrf.mxu0
      %v2175 = vadd.f32 %v1200, %v2174
      %2176 = vdwg.mxu0
      %2177 = vmatpush.bf16.msra.mxu0 0
      %2178 = vmatpush.bf16.msra.mxu0 0
      %2179 = vmatpush.bf16.msra.mxu0 0
      %2180 = vmatpush.bf16.msra.mxu0 0
      %2181 = vmatpush.bf16.msra.mxu0 0
      %2182 = vmatpush.bf16.msra.mxu0 0
      %2183 = vmatpush.bf16.msra.mxu0 0
      %2184 = vmatpush.bf16.msra.mxu0 %v1495
      %2185 = vmatmul.bf16.gmra.mxu0 %v1507
      %v2186 = vpop.f32.mrf.mxu0
      %v2187 = vadd.f32 %v1212, %v2186
      %v2188 = vpop.f32.mrf.mxu0
      %v2189 = vadd.f32 %v1214, %v2188
      %2190 = vmatmul.bf16.gmra.mxu0 %v1510
      %v2191 = vpop.f32.mrf.mxu0
      %v2192 = vadd.f32 %v1217, %v2191
      %v2193 = vpop.f32.mrf.mxu0
      %v2194 = vadd.f32 %v1219, %v2193
      %2195 = vmatmul.bf16.gmra.mxu0 %v1513
      %v2196 = vpop.f32.mrf.mxu0
      %v2197 = vadd.f32 %v1222, %v2196
      %v2198 = vpop.f32.mrf.mxu0
      %v2199 = vadd.f32 %v1224, %v2198
      %2200 = vmatmul.bf16.gmra.mxu0 %v1516
      %v2201 = vpop.f32.mrf.mxu0
      %v2202 = vadd.f32 %v1227, %v2201
      %v2203 = vpop.f32.mrf.mxu0
      %v2204 = vadd.f32 %v1229, %v2203
      %2205 = vmatmul.bf16.gmra.mxu0 %v1519
      %v2206 = vpop.f32.mrf.mxu0
      %v2207 = vadd.f32 %v1232, %v2206
      %v2208 = vpop.f32.mrf.mxu0
      %v2209 = vadd.f32 %v1234, %v2208
      %2210 = vmatmul.bf16.gmra.mxu0 %v1522
      %v2211 = vpop.f32.mrf.mxu0
      %v2212 = vadd.f32 %v1237, %v2211
      %v2213 = vpop.f32.mrf.mxu0
      %v2214 = vadd.f32 %v1239, %v2213
      %2215 = vmatmul.bf16.gmra.mxu0 %v1525
      %v2216 = vpop.f32.mrf.mxu0
      %v2217 = vadd.f32 %v1242, %v2216
      %v2218 = vpop.f32.mrf.mxu0
      %v2219 = vadd.f32 %v1244, %v2218
      %2220 = vmatmul.bf16.gmra.mxu0 %v1528
      %v2221 = vpop.f32.mrf.mxu0
      %v2222 = vadd.f32 %v1247, %v2221
      %v2223 = vpop.f32.mrf.mxu0
      %v2224 = vadd.f32 %v1249, %v2223
      %2225 = vmatmul.bf16.gmra.mxu0 %v1531
      %v2226 = vpop.f32.mrf.mxu0
      %v2227 = vadd.f32 %v1252, %v2226
      %v2228 = vpop.f32.mrf.mxu0
      %v2229 = vadd.f32 %v1254, %v2228
      %2230 = vmatmul.bf16.gmra.mxu0 %v1534
      %v2231 = vpop.f32.mrf.mxu0
      %v2232 = vadd.f32 %v1257, %v2231
      %v2233 = vpop.f32.mrf.mxu0
      %v2234 = vadd.f32 %v1259, %v2233
      %2235 = vmatmul.bf16.gmra.mxu0 %v1537
      %v2236 = vpop.f32.mrf.mxu0
      %v2237 = vadd.f32 %v1262, %v2236
      %v2238 = vpop.f32.mrf.mxu0
      %v2239 = vadd.f32 %v1264, %v2238
      %2240 = vmatmul.bf16.gmra.mxu0 %v1540
      %v2241 = vpop.f32.mrf.mxu0
      %v2242 = vadd.f32 %v1267, %v2241
      %v2243 = vpop.f32.mrf.mxu0
      %v2244 = vadd.f32 %v1269, %v2243
      %2245 = vmatmul.bf16.gmra.mxu0 %v1543
      %v2246 = vpop.f32.mrf.mxu0
      %v2247 = vadd.f32 %v1272, %v2246
      %v2248 = vpop.f32.mrf.mxu0
      %v2249 = vadd.f32 %v1274, %v2248
      %2250 = vmatmul.bf16.gmra.mxu0 %v1546
      %v2251 = vpop.f32.mrf.mxu0
      %v2252 = vadd.f32 %v1277, %v2251
      %v2253 = vpop.f32.mrf.mxu0
      %v2254 = vadd.f32 %v1279, %v2253
      %2255 = vmatmul.bf16.gmra.mxu0 %v1549
      %v2256 = vpop.f32.mrf.mxu0
      %v2257 = vadd.f32 %v1282, %v2256
      %v2258 = vpop.f32.mrf.mxu0
      %v2259 = vadd.f32 %v1284, %v2258
      %2260 = vmatmul.bf16.gmra.mxu0 %v1552
      %v2261 = vpop.f32.mrf.mxu0
      %v2262 = vadd.f32 %v1287, %v2261
      %v2263 = vpop.f32.mrf.mxu0
      %v2264 = vadd.f32 %v1289, %v2263
      %2265 = vdwg.mxu0
      %2266 = vmatpush.bf16.msra.mxu0 0
      %2267 = vmatpush.bf16.msra.mxu0 0
      %2268 = vmatpush.bf16.msra.mxu0 0
      %2269 = vmatpush.bf16.msra.mxu0 0
      %2270 = vmatpush.bf16.msra.mxu0 0
      %2271 = vmatpush.bf16.msra.mxu0 0
      %2272 = vmatpush.bf16.msra.mxu0 0
      %2273 = vmatpush.bf16.msra.mxu0 %v1496
      %2274 = vmatmul.bf16.gmra.mxu0 %v1507
      %v2275 = vpop.f32.mrf.mxu0
      %v2276 = vadd.f32 %v1301, %v2275
      %v2277 = vpop.f32.mrf.mxu0
      %v2278 = vadd.f32 %v1303, %v2277
      %2279 = vmatmul.bf16.gmra.mxu0 %v1510
      %v2280 = vpop.f32.mrf.mxu0
      %v2281 = vadd.f32 %v1306, %v2280
      %v2282 = vpop.f32.mrf.mxu0
      %v2283 = vadd.f32 %v1308, %v2282
      %2284 = vmatmul.bf16.gmra.mxu0 %v1513
      %v2285 = vpop.f32.mrf.mxu0
      %v2286 = vadd.f32 %v1311, %v2285
      %v2287 = vpop.f32.mrf.mxu0
      %v2288 = vadd.f32 %v1313, %v2287
      %2289 = vmatmul.bf16.gmra.mxu0 %v1516
      %v2290 = vpop.f32.mrf.mxu0
      %v2291 = vadd.f32 %v1316, %v2290
      %v2292 = vpop.f32.mrf.mxu0
      %v2293 = vadd.f32 %v1318, %v2292
      %2294 = vmatmul.bf16.gmra.mxu0 %v1519
      %v2295 = vpop.f32.mrf.mxu0
      %v2296 = vadd.f32 %v1321, %v2295
      %v2297 = vpop.f32.mrf.mxu0
      %v2298 = vadd.f32 %v1323, %v2297
      %2299 = vmatmul.bf16.gmra.mxu0 %v1522
      %v2300 = vpop.f32.mrf.mxu0
      %v2301 = vadd.f32 %v1326, %v2300
      %v2302 = vpop.f32.mrf.mxu0
      %v2303 = vadd.f32 %v1328, %v2302
      %2304 = vmatmul.bf16.gmra.mxu0 %v1525
      %v2305 = vpop.f32.mrf.mxu0
      %v2306 = vadd.f32 %v1331, %v2305
      %v2307 = vpop.f32.mrf.mxu0
      %v2308 = vadd.f32 %v1333, %v2307
      %2309 = vmatmul.bf16.gmra.mxu0 %v1528
      %v2310 = vpop.f32.mrf.mxu0
      %v2311 = vadd.f32 %v1336, %v2310
      %v2312 = vpop.f32.mrf.mxu0
      %v2313 = vadd.f32 %v1338, %v2312
      %2314 = vmatmul.bf16.gmra.mxu0 %v1531
      %v2315 = vpop.f32.mrf.mxu0
      %v2316 = vadd.f32 %v1341, %v2315
      %v2317 = vpop.f32.mrf.mxu0
      %v2318 = vadd.f32 %v1343, %v2317
      %2319 = vmatmul.bf16.gmra.mxu0 %v1534
      %v2320 = vpop.f32.mrf.mxu0
      %v2321 = vadd.f32 %v1346, %v2320
      %v2322 = vpop.f32.mrf.mxu0
      %v2323 = vadd.f32 %v1348, %v2322
      %2324 = vmatmul.bf16.gmra.mxu0 %v1537
      %v2325 = vpop.f32.mrf.mxu0
      %v2326 = vadd.f32 %v1351, %v2325
      %v2327 = vpop.f32.mrf.mxu0
      %v2328 = vadd.f32 %v1353, %v2327
      %2329 = vmatmul.bf16.gmra.mxu0 %v1540
      %v2330 = vpop.f32.mrf.mxu0
      %v2331 = vadd.f32 %v1356, %v2330
      %v2332 = vpop.f32.mrf.mxu0
      %v2333 = vadd.f32 %v1358, %v2332
      %2334 = vmatmul.bf16.gmra.mxu0 %v1543
      %v2335 = vpop.f32.mrf.mxu0
      %v2336 = vadd.f32 %v1361, %v2335
      %v2337 = vpop.f32.mrf.mxu0
      %v2338 = vadd.f32 %v1363, %v2337
      %2339 = vmatmul.bf16.gmra.mxu0 %v1546
      %v2340 = vpop.f32.mrf.mxu0
      %v2341 = vadd.f32 %v1366, %v2340
      %v2342 = vpop.f32.mrf.mxu0
      %v2343 = vadd.f32 %v1368, %v2342
      %2344 = vmatmul.bf16.gmra.mxu0 %v1549
      %v2345 = vpop.f32.mrf.mxu0
      %v2346 = vadd.f32 %v1371, %v2345
      %v2347 = vpop.f32.mrf.mxu0
      %v2348 = vadd.f32 %v1373, %v2347
      %2349 = vmatmul.bf16.gmra.mxu0 %v1552
      %v2350 = vpop.f32.mrf.mxu0
      %v2351 = vadd.f32 %v1376, %v2350
      %v2352 = vpop.f32.mrf.mxu0
      %v2353 = vadd.f32 %v1378, %v2352
      %2354 = vdwg.mxu0
      %2355 = vst [vmem:[#allocation2] sm:$0xff] 0.0
      %2356 = vst [vmem:[#allocation2 + $0x8] sm:$0xff] 0.0
      %2357 = vst [vmem:[#allocation2 + $0x10] sm:$0x3] 0.0
      %2358 = vst [vmem:[#allocation2 + $0x18] sm:$0xff] 0.0
      %2359 = vst [vmem:[#allocation2 + $0x20] sm:$0xff] 0.0
      %2360 = vst [vmem:[#allocation2 + $0x28] sm:$0x3] 0.0
      %2361 = vst [vmem:[#allocation2 + $0x30] sm:$0xff] 0.0
      %2362 = vst [vmem:[#allocation2 + $0x38] sm:$0xff] 0.0
      %2363 = vst [vmem:[#allocation2 + $0x40] sm:$0x3] 0.0
      %2364 = vst [vmem:[#allocation2 + $0x48] sm:$0xff] 0.0
      %2365 = vst [vmem:[#allocation2 + $0x50] sm:$0xff] 0.0
      %2366 = vst [vmem:[#allocation2 + $0x58] sm:$0x3] 0.0
      %2367 = vst [vmem:[#allocation2 + $0x60] sm:$0xff] 0.0
      %2368 = vst [vmem:[#allocation2 + $0x68] sm:$0xff] 0.0
      %2369 = vst [vmem:[#allocation2 + $0x70] sm:$0x3] 0.0
      %2370 = vst [vmem:[#allocation2 + $0x78] sm:$0xff] 0.0
      %2371 = vst [vmem:[#allocation2 + $0x80] sm:$0xff] 0.0
      %2372 = vst [vmem:[#allocation2 + $0x88] sm:$0x3] 0.0
      %2373 = vst [vmem:[#allocation2 + $0x90] sm:$0xff] 0.0
      %2374 = vst [vmem:[#allocation2 + $0x98] sm:$0xff] 0.0
      %2375 = vst [vmem:[#allocation2 + $0xa0] sm:$0x3] 0.0
      %2376 = vst [vmem:[#allocation2 + $0xa8] sm:$0xff] 0.0
      %2377 = vst [vmem:[#allocation2 + $0xb0] sm:$0xff] 0.0
      %2378 = vst [vmem:[#allocation2 + $0xb8] sm:$0x3] 0.0
      %2379 = vst [vmem:[#allocation2 + $0xc0] sm:$0xff] 0.0
      %2380 = vst [vmem:[#allocation2 + $0xc8] sm:$0xff] 0.0
      %2381 = vst [vmem:[#allocation2 + $0xd0] sm:$0x3] 0.0
      %2382 = vst [vmem:[#allocation2 + $0xd8] sm:$0xff] 0.0
      %2383 = vst [vmem:[#allocation2 + $0xe0] sm:$0xff] 0.0
      %2384 = vst [vmem:[#allocation2 + $0xe8] sm:$0x3] 0.0
      %2385 = vst [vmem:[#allocation2 + $0xf0] sm:$0xff] 0.0
      %2386 = vst [vmem:[#allocation2 + $0xf8] sm:$0xff] 0.0
      %2387 = vst [vmem:[#allocation2 + $0x100] sm:$0x3] 0.0
      %2388 = vst [vmem:[#allocation2 + $0x108] sm:$0xff] 0.0
      %2389 = vst [vmem:[#allocation2 + $0x110] sm:$0xff] 0.0
      %2390 = vst [vmem:[#allocation2 + $0x118] sm:$0x3] 0.0
      %2391 = vst [vmem:[#allocation2 + $0x120] sm:$0xff] 0.0
      %2392 = vst [vmem:[#allocation2 + $0x128] sm:$0xff] 0.0
      %2393 = vst [vmem:[#allocation2 + $0x130] sm:$0x3] 0.0
      %2394 = vst [vmem:[#allocation2 + $0x138] sm:$0xff] 0.0
      %2395 = vst [vmem:[#allocation2 + $0x140] sm:$0xff] 0.0
      %2396 = vst [vmem:[#allocation2 + $0x148] sm:$0x3] 0.0
      %2397 = vst [vmem:[#allocation2 + $0x150] sm:$0xff] 0.0
      %2398 = vst [vmem:[#allocation2 + $0x158] sm:$0xff] 0.0
      %2399 = vst [vmem:[#allocation2 + $0x160] sm:$0x3] 0.0
      %2400 = vst [vmem:[#allocation2 + $0x168] sm:$0xff] 0.0
      %2401 = vst [vmem:[#allocation2 + $0x170] sm:$0xff] 0.0
      %2402 = vst [vmem:[#allocation2 + $0x178] sm:$0x3] 0.0
      %2403 = vst [vmem:[#allocation2 + $0x180] sm:$0xff] 0.0
      %2404 = vst [vmem:[#allocation2 + $0x188] sm:$0xff] 0.0
      %2405 = vst [vmem:[#allocation2 + $0x190] sm:$0x3] 0.0
      %2406 = vst [vmem:[#allocation2 + $0x198] sm:$0xff] 0.0
      %2407 = vst [vmem:[#allocation2 + $0x1a0] sm:$0xff] 0.0
      %2408 = vst [vmem:[#allocation2 + $0x1a8] sm:$0x3] 0.0
      %s2409 = scalar_lea.vmem [#allocation2], 48
      %v2410 = vld [vmem:[%s2409 + $0x2] sm:$0xff]
      %v2411 = vld [vmem:[%s2409 + $0xa] sm:$0xff]
      %v2412 = vld [vmem:[%s2409 + $0x1a] sm:$0xff]
      %v2413 = vld [vmem:[%s2409 + $0x22] sm:$0xff]
      %v2414 = vld [vmem:[%s2409 + $0x32] sm:$0xff]
      %v2415 = vld [vmem:[%s2409 + $0x3a] sm:$0xff]
      %v2416 = vld [vmem:[%s2409 + $0x4a] sm:$0xff]
      %v2417 = vld [vmem:[%s2409 + $0x52] sm:$0xff]
      %v2418 = vld [vmem:[%s2409 + $0x62] sm:$0xff]
      %v2419 = vld [vmem:[%s2409 + $0x6a] sm:$0xff]
      %v2420 = vld [vmem:[%s2409 + $0x7a] sm:$0xff]
      %v2421 = vld [vmem:[%s2409 + $0x82] sm:$0xff]
      %v2422 = vld [vmem:[%s2409 + $0x92] sm:$0xff]
      %v2423 = vld [vmem:[%s2409 + $0x9a] sm:$0xff]
      %v2424 = vld [vmem:[%s2409 + $0xaa] sm:$0xff]
      %v2425 = vld [vmem:[%s2409 + $0xb2] sm:$0xff]
      %v2426 = vld [vmem:[%s2409 + $0xc2] sm:$0xff]
      %v2427 = vld [vmem:[%s2409 + $0xca] sm:$0xff]
      %v2428 = vld [vmem:[%s2409 + $0xda] sm:$0xff]
      %v2429 = vld [vmem:[%s2409 + $0xe2] sm:$0xff]
      %v2430 = vld [vmem:[%s2409 + $0xf2] sm:$0xff]
      %v2431 = vld [vmem:[%s2409 + $0xfa] sm:$0xff]
      %v2432 = vld [vmem:[%s2409 + $0x10a] sm:$0xff]
      %v2433 = vld [vmem:[%s2409 + $0x112] sm:$0xff]
      %v2434 = vld [vmem:[%s2409 + $0x122] sm:$0xff]
      %v2435 = vld [vmem:[%s2409 + $0x12a] sm:$0xff]
      %v2436 = vld [vmem:[%s2409 + $0x13a] sm:$0xff]
      %v2437 = vld [vmem:[%s2409 + $0x142] sm:$0xff]
      %v2438 = vld [vmem:[%s2409 + $0x152] sm:$0xff]
      %v2439 = vld [vmem:[%s2409 + $0x15a] sm:$0xff]
      %v2440 = vld [vmem:[%s2409 + $0x16a] sm:$0xff]
      %v2441 = vld [vmem:[%s2409 + $0x172] sm:$0xff]
      %v2442 = vadd.f32 %v2410, %v1564
      %v2443 = vadd.f32 %v2411, %v1566
      %v2444 = vadd.f32 %v2412, %v1569
      %v2445 = vadd.f32 %v2413, %v1571
      %v2446 = vadd.f32 %v2414, %v1574
      %v2447 = vadd.f32 %v2415, %v1576
      %v2448 = vadd.f32 %v2416, %v1579
      %v2449 = vadd.f32 %v2417, %v1581
      %v2450 = vadd.f32 %v2418, %v1584
      %v2451 = vadd.f32 %v2419, %v1586
      %v2452 = vadd.f32 %v2420, %v1589
      %v2453 = vadd.f32 %v2421, %v1591
      %v2454 = vadd.f32 %v2422, %v1594
      %v2455 = vadd.f32 %v2423, %v1596
      %v2456 = vadd.f32 %v2424, %v1599
      %v2457 = vadd.f32 %v2425, %v1601
      %v2458 = vadd.f32 %v2426, %v1604
      %v2459 = vadd.f32 %v2427, %v1606
      %v2460 = vadd.f32 %v2428, %v1609
      %v2461 = vadd.f32 %v2429, %v1611
      %v2462 = vadd.f32 %v2430, %v1614
      %v2463 = vadd.f32 %v2431, %v1616
      %v2464 = vadd.f32 %v2432, %v1619
      %v2465 = vadd.f32 %v2433, %v1621
      %v2466 = vadd.f32 %v2434, %v1624
      %v2467 = vadd.f32 %v2435, %v1626
      %v2468 = vadd.f32 %v2436, %v1629
      %v2469 = vadd.f32 %v2437, %v1631
      %v2470 = vadd.f32 %v2438, %v1634
      %v2471 = vadd.f32 %v2439, %v1636
      %v2472 = vadd.f32 %v2440, %v1639
      %v2473 = vadd.f32 %v2441, %v1641
      %2474 = vst [vmem:[%s2409 + $0x2] sm:$0xff] %v2442
      %2475 = vst [vmem:[%s2409 + $0xa] sm:$0xff] %v2443
      %2476 = vst [vmem:[%s2409 + $0x1a] sm:$0xff] %v2444
      %2477 = vst [vmem:[%s2409 + $0x22] sm:$0xff] %v2445
      %2478 = vst [vmem:[%s2409 + $0x32] sm:$0xff] %v2446
      %2479 = vst [vmem:[%s2409 + $0x3a] sm:$0xff] %v2447
      %2480 = vst [vmem:[%s2409 + $0x4a] sm:$0xff] %v2448
      %2481 = vst [vmem:[%s2409 + $0x52] sm:$0xff] %v2449
      %2482 = vst [vmem:[%s2409 + $0x62] sm:$0xff] %v2450
      %2483 = vst [vmem:[%s2409 + $0x6a] sm:$0xff] %v2451
      %2484 = vst [vmem:[%s2409 + $0x7a] sm:$0xff] %v2452
      %2485 = vst [vmem:[%s2409 + $0x82] sm:$0xff] %v2453
      %2486 = vst [vmem:[%s2409 + $0x92] sm:$0xff] %v2454
      %2487 = vst [vmem:[%s2409 + $0x9a] sm:$0xff] %v2455
      %2488 = vst [vmem:[%s2409 + $0xaa] sm:$0xff] %v2456
      %2489 = vst [vmem:[%s2409 + $0xb2] sm:$0xff] %v2457
      %2490 = vst [vmem:[%s2409 + $0xc2] sm:$0xff] %v2458
      %2491 = vst [vmem:[%s2409 + $0xca] sm:$0xff] %v2459
      %2492 = vst [vmem:[%s2409 + $0xda] sm:$0xff] %v2460
      %2493 = vst [vmem:[%s2409 + $0xe2] sm:$0xff] %v2461
      %2494 = vst [vmem:[%s2409 + $0xf2] sm:$0xff] %v2462
      %2495 = vst [vmem:[%s2409 + $0xfa] sm:$0xff] %v2463
      %2496 = vst [vmem:[%s2409 + $0x10a] sm:$0xff] %v2464
      %2497 = vst [vmem:[%s2409 + $0x112] sm:$0xff] %v2465
      %2498 = vst [vmem:[%s2409 + $0x122] sm:$0xff] %v2466
      %2499 = vst [vmem:[%s2409 + $0x12a] sm:$0xff] %v2467
      %2500 = vst [vmem:[%s2409 + $0x13a] sm:$0xff] %v2468
      %2501 = vst [vmem:[%s2409 + $0x142] sm:$0xff] %v2469
      %2502 = vst [vmem:[%s2409 + $0x152] sm:$0xff] %v2470
      %2503 = vst [vmem:[%s2409 + $0x15a] sm:$0xff] %v2471
      %2504 = vst [vmem:[%s2409 + $0x16a] sm:$0xff] %v2472
      %2505 = vst [vmem:[%s2409 + $0x172] sm:$0xff] %v2473
      %v2506 = vld [vmem:[%s2409 + $0x1] sm:$0xff]
      %v2507 = vld [vmem:[%s2409 + $0x9] sm:$0xff]
      %v2508 = vld [vmem:[%s2409 + $0x19] sm:$0xff]
      %v2509 = vld [vmem:[%s2409 + $0x21] sm:$0xff]
      %v2510 = vld [vmem:[%s2409 + $0x31] sm:$0xff]
      %v2511 = vld [vmem:[%s2409 + $0x39] sm:$0xff]
      %v2512 = vld [vmem:[%s2409 + $0x49] sm:$0xff]
      %v2513 = vld [vmem:[%s2409 + $0x51] sm:$0xff]
      %v2514 = vld [vmem:[%s2409 + $0x61] sm:$0xff]
      %v2515 = vld [vmem:[%s2409 + $0x69] sm:$0xff]
      %v2516 = vld [vmem:[%s2409 + $0x79] sm:$0xff]
      %v2517 = vld [vmem:[%s2409 + $0x81] sm:$0xff]
      %v2518 = vld [vmem:[%s2409 + $0x91] sm:$0xff]
      %v2519 = vld [vmem:[%s2409 + $0x99] sm:$0xff]
      %v2520 = vld [vmem:[%s2409 + $0xa9] sm:$0xff]
      %v2521 = vld [vmem:[%s2409 + $0xb1] sm:$0xff]
      %v2522 = vld [vmem:[%s2409 + $0xc1] sm:$0xff]
      %v2523 = vld [vmem:[%s2409 + $0xc9] sm:$0xff]
      %v2524 = vld [vmem:[%s2409 + $0xd9] sm:$0xff]
      %v2525 = vld [vmem:[%s2409 + $0xe1] sm:$0xff]
      %v2526 = vld [vmem:[%s2409 + $0xf1] sm:$0xff]
      %v2527 = vld [vmem:[%s2409 + $0xf9] sm:$0xff]
      %v2528 = vld [vmem:[%s2409 + $0x109] sm:$0xff]
      %v2529 = vld [vmem:[%s2409 + $0x111] sm:$0xff]
      %v2530 = vld [vmem:[%s2409 + $0x121] sm:$0xff]
      %v2531 = vld [vmem:[%s2409 + $0x129] sm:$0xff]
      %v2532 = vld [vmem:[%s2409 + $0x139] sm:$0xff]
      %v2533 = vld [vmem:[%s2409 + $0x141] sm:$0xff]
      %v2534 = vld [vmem:[%s2409 + $0x151] sm:$0xff]
      %v2535 = vld [vmem:[%s2409 + $0x159] sm:$0xff]
      %v2536 = vld [vmem:[%s2409 + $0x169] sm:$0xff]
      %v2537 = vld [vmem:[%s2409 + $0x171] sm:$0xff]
      %v2538 = vadd.f32 %v2506, %v1653
      %v2539 = vadd.f32 %v2507, %v1655
      %v2540 = vadd.f32 %v2508, %v1658
      %v2541 = vadd.f32 %v2509, %v1660
      %v2542 = vadd.f32 %v2510, %v1663
      %v2543 = vadd.f32 %v2511, %v1665
      %v2544 = vadd.f32 %v2512, %v1668
      %v2545 = vadd.f32 %v2513, %v1670
      %v2546 = vadd.f32 %v2514, %v1673
      %v2547 = vadd.f32 %v2515, %v1675
      %v2548 = vadd.f32 %v2516, %v1678
      %v2549 = vadd.f32 %v2517, %v1680
      %v2550 = vadd.f32 %v2518, %v1683
      %v2551 = vadd.f32 %v2519, %v1685
      %v2552 = vadd.f32 %v2520, %v1688
      %v2553 = vadd.f32 %v2521, %v1690
      %v2554 = vadd.f32 %v2522, %v1693
      %v2555 = vadd.f32 %v2523, %v1695
      %v2556 = vadd.f32 %v2524, %v1698
      %v2557 = vadd.f32 %v2525, %v1700
      %v2558 = vadd.f32 %v2526, %v1703
      %v2559 = vadd.f32 %v2527, %v1705
      %v2560 = vadd.f32 %v2528, %v1708
      %v2561 = vadd.f32 %v2529, %v1710
      %v2562 = vadd.f32 %v2530, %v1713
      %v2563 = vadd.f32 %v2531, %v1715
      %v2564 = vadd.f32 %v2532, %v1718
      %v2565 = vadd.f32 %v2533, %v1720
      %v2566 = vadd.f32 %v2534, %v1723
      %v2567 = vadd.f32 %v2535, %v1725
      %v2568 = vadd.f32 %v2536, %v1728
      %v2569 = vadd.f32 %v2537, %v1730
      %2570 = vst [vmem:[%s2409 + $0x1] sm:$0xff] %v2538
      %2571 = vst [vmem:[%s2409 + $0x9] sm:$0xff] %v2539
      %2572 = vst [vmem:[%s2409 + $0x19] sm:$0xff] %v2540
      %2573 = vst [vmem:[%s2409 + $0x21] sm:$0xff] %v2541
      %2574 = vst [vmem:[%s2409 + $0x31] sm:$0xff] %v2542
      %2575 = vst [vmem:[%s2409 + $0x39] sm:$0xff] %v2543
      %2576 = vst [vmem:[%s2409 + $0x49] sm:$0xff] %v2544
      %2577 = vst [vmem:[%s2409 + $0x51] sm:$0xff] %v2545
      %2578 = vst [vmem:[%s2409 + $0x61] sm:$0xff] %v2546
      %2579 = vst [vmem:[%s2409 + $0x69] sm:$0xff] %v2547
      %2580 = vst [vmem:[%s2409 + $0x79] sm:$0xff] %v2548
      %2581 = vst [vmem:[%s2409 + $0x81] sm:$0xff] %v2549
      %2582 = vst [vmem:[%s2409 + $0x91] sm:$0xff] %v2550
      %2583 = vst [vmem:[%s2409 + $0x99] sm:$0xff] %v2551
      %2584 = vst [vmem:[%s2409 + $0xa9] sm:$0xff] %v2552
      %2585 = vst [vmem:[%s2409 + $0xb1] sm:$0xff] %v2553
      %2586 = vst [vmem:[%s2409 + $0xc1] sm:$0xff] %v2554
      %2587 = vst [vmem:[%s2409 + $0xc9] sm:$0xff] %v2555
      %2588 = vst [vmem:[%s2409 + $0xd9] sm:$0xff] %v2556
      %2589 = vst [vmem:[%s2409 + $0xe1] sm:$0xff] %v2557
      %2590 = vst [vmem:[%s2409 + $0xf1] sm:$0xff] %v2558
      %2591 = vst [vmem:[%s2409 + $0xf9] sm:$0xff] %v2559
      %2592 = vst [vmem:[%s2409 + $0x109] sm:$0xff] %v2560
      %2593 = vst [vmem:[%s2409 + $0x111] sm:$0xff] %v2561
      %2594 = vst [vmem:[%s2409 + $0x121] sm:$0xff] %v2562
      %2595 = vst [vmem:[%s2409 + $0x129] sm:$0xff] %v2563
      %2596 = vst [vmem:[%s2409 + $0x139] sm:$0xff] %v2564
      %2597 = vst [vmem:[%s2409 + $0x141] sm:$0xff] %v2565
      %2598 = vst [vmem:[%s2409 + $0x151] sm:$0xff] %v2566
      %2599 = vst [vmem:[%s2409 + $0x159] sm:$0xff] %v2567
      %2600 = vst [vmem:[%s2409 + $0x169] sm:$0xff] %v2568
      %2601 = vst [vmem:[%s2409 + $0x171] sm:$0xff] %v2569
      %v2602 = vld [vmem:[%s2409] sm:$0xff]
      %v2603 = vld [vmem:[%s2409 + $0x8] sm:$0xff]
      %v2604 = vld [vmem:[%s2409 + $0x18] sm:$0xff]
      %v2605 = vld [vmem:[%s2409 + $0x20] sm:$0xff]
      %v2606 = vld [vmem:[%s2409 + $0x30] sm:$0xff]
      %v2607 = vld [vmem:[%s2409 + $0x38] sm:$0xff]
      %v2608 = vld [vmem:[%s2409 + $0x48] sm:$0xff]
      %v2609 = vld [vmem:[%s2409 + $0x50] sm:$0xff]
      %v2610 = vld [vmem:[%s2409 + $0x60] sm:$0xff]
      %v2611 = vld [vmem:[%s2409 + $0x68] sm:$0xff]
      %v2612 = vld [vmem:[%s2409 + $0x78] sm:$0xff]
      %v2613 = vld [vmem:[%s2409 + $0x80] sm:$0xff]
      %v2614 = vld [vmem:[%s2409 + $0x90] sm:$0xff]
      %v2615 = vld [vmem:[%s2409 + $0x98] sm:$0xff]
      %v2616 = vld [vmem:[%s2409 + $0xa8] sm:$0xff]
      %v2617 = vld [vmem:[%s2409 + $0xb0] sm:$0xff]
      %v2618 = vld [vmem:[%s2409 + $0xc0] sm:$0xff]
      %v2619 = vld [vmem:[%s2409 + $0xc8] sm:$0xff]
      %v2620 = vld [vmem:[%s2409 + $0xd8] sm:$0xff]
      %v2621 = vld [vmem:[%s2409 + $0xe0] sm:$0xff]
      %v2622 = vld [vmem:[%s2409 + $0xf0] sm:$0xff]
      %v2623 = vld [vmem:[%s2409 + $0xf8] sm:$0xff]
      %v2624 = vld [vmem:[%s2409 + $0x108] sm:$0xff]
      %v2625 = vld [vmem:[%s2409 + $0x110] sm:$0xff]
      %v2626 = vld [vmem:[%s2409 + $0x120] sm:$0xff]
      %v2627 = vld [vmem:[%s2409 + $0x128] sm:$0xff]
      %v2628 = vld [vmem:[%s2409 + $0x138] sm:$0xff]
      %v2629 = vld [vmem:[%s2409 + $0x140] sm:$0xff]
      %v2630 = vld [vmem:[%s2409 + $0x150] sm:$0xff]
      %v2631 = vld [vmem:[%s2409 + $0x158] sm:$0xff]
      %v2632 = vld [vmem:[%s2409 + $0x168] sm:$0xff]
      %v2633 = vld [vmem:[%s2409 + $0x170] sm:$0xff]
      %v2634 = vadd.f32 %v2602, %v1742
      %v2635 = vadd.f32 %v2603, %v1744
      %v2636 = vadd.f32 %v2604, %v1747
      %v2637 = vadd.f32 %v2605, %v1749
      %v2638 = vadd.f32 %v2606, %v1752
      %v2639 = vadd.f32 %v2607, %v1754
      %v2640 = vadd.f32 %v2608, %v1757
      %v2641 = vadd.f32 %v2609, %v1759
      %v2642 = vadd.f32 %v2610, %v1762
      %v2643 = vadd.f32 %v2611, %v1764
      %v2644 = vadd.f32 %v2612, %v1767
      %v2645 = vadd.f32 %v2613, %v1769
      %v2646 = vadd.f32 %v2614, %v1772
      %v2647 = vadd.f32 %v2615, %v1774
      %v2648 = vadd.f32 %v2616, %v1777
      %v2649 = vadd.f32 %v2617, %v1779
      %v2650 = vadd.f32 %v2618, %v1782
      %v2651 = vadd.f32 %v2619, %v1784
      %v2652 = vadd.f32 %v2620, %v1787
      %v2653 = vadd.f32 %v2621, %v1789
      %v2654 = vadd.f32 %v2622, %v1792
      %v2655 = vadd.f32 %v2623, %v1794
      %v2656 = vadd.f32 %v2624, %v1797
      %v2657 = vadd.f32 %v2625, %v1799
      %v2658 = vadd.f32 %v2626, %v1802
      %v2659 = vadd.f32 %v2627, %v1804
      %v2660 = vadd.f32 %v2628, %v1807
      %v2661 = vadd.f32 %v2629, %v1809
      %v2662 = vadd.f32 %v2630, %v1812
      %v2663 = vadd.f32 %v2631, %v1814
      %v2664 = vadd.f32 %v2632, %v1817
      %v2665 = vadd.f32 %v2633, %v1819
      %2666 = vst [vmem:[%s2409] sm:$0xff] %v2634
      %2667 = vst [vmem:[%s2409 + $0x8] sm:$0xff] %v2635
      %2668 = vst [vmem:[%s2409 + $0x18] sm:$0xff] %v2636
      %2669 = vst [vmem:[%s2409 + $0x20] sm:$0xff] %v2637
      %2670 = vst [vmem:[%s2409 + $0x30] sm:$0xff] %v2638
      %2671 = vst [vmem:[%s2409 + $0x38] sm:$0xff] %v2639
      %2672 = vst [vmem:[%s2409 + $0x48] sm:$0xff] %v2640
      %2673 = vst [vmem:[%s2409 + $0x50] sm:$0xff] %v2641
      %2674 = vst [vmem:[%s2409 + $0x60] sm:$0xff] %v2642
      %2675 = vst [vmem:[%s2409 + $0x68] sm:$0xff] %v2643
      %2676 = vst [vmem:[%s2409 + $0x78] sm:$0xff] %v2644
      %2677 = vst [vmem:[%s2409 + $0x80] sm:$0xff] %v2645
      %2678 = vst [vmem:[%s2409 + $0x90] sm:$0xff] %v2646
      %2679 = vst [vmem:[%s2409 + $0x98] sm:$0xff] %v2647
      %2680 = vst [vmem:[%s2409 + $0xa8] sm:$0xff] %v2648
      %2681 = vst [vmem:[%s2409 + $0xb0] sm:$0xff] %v2649
      %2682 = vst [vmem:[%s2409 + $0xc0] sm:$0xff] %v2650
      %2683 = vst [vmem:[%s2409 + $0xc8] sm:$0xff] %v2651
      %2684 = vst [vmem:[%s2409 + $0xd8] sm:$0xff] %v2652
      %2685 = vst [vmem:[%s2409 + $0xe0] sm:$0xff] %v2653
      %2686 = vst [vmem:[%s2409 + $0xf0] sm:$0xff] %v2654
      %2687 = vst [vmem:[%s2409 + $0xf8] sm:$0xff] %v2655
      %2688 = vst [vmem:[%s2409 + $0x108] sm:$0xff] %v2656
      %2689 = vst [vmem:[%s2409 + $0x110] sm:$0xff] %v2657
      %2690 = vst [vmem:[%s2409 + $0x120] sm:$0xff] %v2658
      %2691 = vst [vmem:[%s2409 + $0x128] sm:$0xff] %v2659
      %2692 = vst [vmem:[%s2409 + $0x138] sm:$0xff] %v2660
      %2693 = vst [vmem:[%s2409 + $0x140] sm:$0xff] %v2661
      %2694 = vst [vmem:[%s2409 + $0x150] sm:$0xff] %v2662
      %2695 = vst [vmem:[%s2409 + $0x158] sm:$0xff] %v2663
      %2696 = vst [vmem:[%s2409 + $0x168] sm:$0xff] %v2664
      %2697 = vst [vmem:[%s2409 + $0x170] sm:$0xff] %v2665
      %s2698 = scalar_lea.vmem [#allocation2], 24
      %v2699 = vld [vmem:[%s2698 + $0x2] sm:$0xff]
      %v2700 = vld [vmem:[%s2698 + $0xa] sm:$0xff]
      %v2701 = vld [vmem:[%s2698 + $0x1a] sm:$0xff]
      %v2702 = vld [vmem:[%s2698 + $0x22] sm:$0xff]
      %v2703 = vld [vmem:[%s2698 + $0x32] sm:$0xff]
      %v2704 = vld [vmem:[%s2698 + $0x3a] sm:$0xff]
      %v2705 = vld [vmem:[%s2698 + $0x4a] sm:$0xff]
      %v2706 = vld [vmem:[%s2698 + $0x52] sm:$0xff]
      %v2707 = vld [vmem:[%s2698 + $0x62] sm:$0xff]
      %v2708 = vld [vmem:[%s2698 + $0x6a] sm:$0xff]
      %v2709 = vld [vmem:[%s2698 + $0x7a] sm:$0xff]
      %v2710 = vld [vmem:[%s2698 + $0x82] sm:$0xff]
      %v2711 = vld [vmem:[%s2698 + $0x92] sm:$0xff]
      %v2712 = vld [vmem:[%s2698 + $0x9a] sm:$0xff]
      %v2713 = vld [vmem:[%s2698 + $0xaa] sm:$0xff]
      %v2714 = vld [vmem:[%s2698 + $0xb2] sm:$0xff]
      %v2715 = vld [vmem:[%s2698 + $0xc2] sm:$0xff]
      %v2716 = vld [vmem:[%s2698 + $0xca] sm:$0xff]
      %v2717 = vld [vmem:[%s2698 + $0xda] sm:$0xff]
      %v2718 = vld [vmem:[%s2698 + $0xe2] sm:$0xff]
      %v2719 = vld [vmem:[%s2698 + $0xf2] sm:$0xff]
      %v2720 = vld [vmem:[%s2698 + $0xfa] sm:$0xff]
      %v2721 = vld [vmem:[%s2698 + $0x10a] sm:$0xff]
      %v2722 = vld [vmem:[%s2698 + $0x112] sm:$0xff]
      %v2723 = vld [vmem:[%s2698 + $0x122] sm:$0xff]
      %v2724 = vld [vmem:[%s2698 + $0x12a] sm:$0xff]
      %v2725 = vld [vmem:[%s2698 + $0x13a] sm:$0xff]
      %v2726 = vld [vmem:[%s2698 + $0x142] sm:$0xff]
      %v2727 = vld [vmem:[%s2698 + $0x152] sm:$0xff]
      %v2728 = vld [vmem:[%s2698 + $0x15a] sm:$0xff]
      %v2729 = vld [vmem:[%s2698 + $0x16a] sm:$0xff]
      %v2730 = vld [vmem:[%s2698 + $0x172] sm:$0xff]
      %v2731 = vadd.f32 %v2699, %v1831
      %v2732 = vadd.f32 %v2700, %v1833
      %v2733 = vadd.f32 %v2701, %v1836
      %v2734 = vadd.f32 %v2702, %v1838
      %v2735 = vadd.f32 %v2703, %v1841
      %v2736 = vadd.f32 %v2704, %v1843
      %v2737 = vadd.f32 %v2705, %v1846
      %v2738 = vadd.f32 %v2706, %v1848
      %v2739 = vadd.f32 %v2707, %v1851
      %v2740 = vadd.f32 %v2708, %v1853
      %v2741 = vadd.f32 %v2709, %v1856
      %v2742 = vadd.f32 %v2710, %v1858
      %v2743 = vadd.f32 %v2711, %v1861
      %v2744 = vadd.f32 %v2712, %v1863
      %v2745 = vadd.f32 %v2713, %v1866
      %v2746 = vadd.f32 %v2714, %v1868
      %v2747 = vadd.f32 %v2715, %v1871
      %v2748 = vadd.f32 %v2716, %v1873
      %v2749 = vadd.f32 %v2717, %v1876
      %v2750 = vadd.f32 %v2718, %v1878
      %v2751 = vadd.f32 %v2719, %v1881
      %v2752 = vadd.f32 %v2720, %v1883
      %v2753 = vadd.f32 %v2721, %v1886
      %v2754 = vadd.f32 %v2722, %v1888
      %v2755 = vadd.f32 %v2723, %v1891
      %v2756 = vadd.f32 %v2724, %v1893
      %v2757 = vadd.f32 %v2725, %v1896
      %v2758 = vadd.f32 %v2726, %v1898
      %v2759 = vadd.f32 %v2727, %v1901
      %v2760 = vadd.f32 %v2728, %v1903
      %v2761 = vadd.f32 %v2729, %v1906
      %v2762 = vadd.f32 %v2730, %v1908
      %2763 = vst [vmem:[%s2698 + $0x2] sm:$0xff] %v2731
      %2764 = vst [vmem:[%s2698 + $0xa] sm:$0xff] %v2732
      %2765 = vst [vmem:[%s2698 + $0x1a] sm:$0xff] %v2733
      %2766 = vst [vmem:[%s2698 + $0x22] sm:$0xff] %v2734
      %2767 = vst [vmem:[%s2698 + $0x32] sm:$0xff] %v2735
      %2768 = vst [vmem:[%s2698 + $0x3a] sm:$0xff] %v2736
      %2769 = vst [vmem:[%s2698 + $0x4a] sm:$0xff] %v2737
      %2770 = vst [vmem:[%s2698 + $0x52] sm:$0xff] %v2738
      %2771 = vst [vmem:[%s2698 + $0x62] sm:$0xff] %v2739
      %2772 = vst [vmem:[%s2698 + $0x6a] sm:$0xff] %v2740
      %2773 = vst [vmem:[%s2698 + $0x7a] sm:$0xff] %v2741
      %2774 = vst [vmem:[%s2698 + $0x82] sm:$0xff] %v2742
      %2775 = vst [vmem:[%s2698 + $0x92] sm:$0xff] %v2743
      %2776 = vst [vmem:[%s2698 + $0x9a] sm:$0xff] %v2744
      %2777 = vst [vmem:[%s2698 + $0xaa] sm:$0xff] %v2745
      %2778 = vst [vmem:[%s2698 + $0xb2] sm:$0xff] %v2746
      %2779 = vst [vmem:[%s2698 + $0xc2] sm:$0xff] %v2747
      %2780 = vst [vmem:[%s2698 + $0xca] sm:$0xff] %v2748
      %2781 = vst [vmem:[%s2698 + $0xda] sm:$0xff] %v2749
      %2782 = vst [vmem:[%s2698 + $0xe2] sm:$0xff] %v2750
      %2783 = vst [vmem:[%s2698 + $0xf2] sm:$0xff] %v2751
      %2784 = vst [vmem:[%s2698 + $0xfa] sm:$0xff] %v2752
      %2785 = vst [vmem:[%s2698 + $0x10a] sm:$0xff] %v2753
      %2786 = vst [vmem:[%s2698 + $0x112] sm:$0xff] %v2754
      %2787 = vst [vmem:[%s2698 + $0x122] sm:$0xff] %v2755
      %2788 = vst [vmem:[%s2698 + $0x12a] sm:$0xff] %v2756
      %2789 = vst [vmem:[%s2698 + $0x13a] sm:$0xff] %v2757
      %2790 = vst [vmem:[%s2698 + $0x142] sm:$0xff] %v2758
      %2791 = vst [vmem:[%s2698 + $0x152] sm:$0xff] %v2759
      %2792 = vst [vmem:[%s2698 + $0x15a] sm:$0xff] %v2760
      %2793 = vst [vmem:[%s2698 + $0x16a] sm:$0xff] %v2761
      %2794 = vst [vmem:[%s2698 + $0x172] sm:$0xff] %v2762
      %v2795 = vld [vmem:[%s2698 + $0x1] sm:$0xff]
      %v2796 = vld [vmem:[%s2698 + $0x9] sm:$0xff]
      %v2797 = vld [vmem:[%s2698 + $0x19] sm:$0xff]
      %v2798 = vld [vmem:[%s2698 + $0x21] sm:$0xff]
      %v2799 = vld [vmem:[%s2698 + $0x31] sm:$0xff]
      %v2800 = vld [vmem:[%s2698 + $0x39] sm:$0xff]
      %v2801 = vld [vmem:[%s2698 + $0x49] sm:$0xff]
      %v2802 = vld [vmem:[%s2698 + $0x51] sm:$0xff]
      %v2803 = vld [vmem:[%s2698 + $0x61] sm:$0xff]
      %v2804 = vld [vmem:[%s2698 + $0x69] sm:$0xff]
      %v2805 = vld [vmem:[%s2698 + $0x79] sm:$0xff]
      %v2806 = vld [vmem:[%s2698 + $0x81] sm:$0xff]
      %v2807 = vld [vmem:[%s2698 + $0x91] sm:$0xff]
      %v2808 = vld [vmem:[%s2698 + $0x99] sm:$0xff]
      %v2809 = vld [vmem:[%s2698 + $0xa9] sm:$0xff]
      %v2810 = vld [vmem:[%s2698 + $0xb1] sm:$0xff]
      %v2811 = vld [vmem:[%s2698 + $0xc1] sm:$0xff]
      %v2812 = vld [vmem:[%s2698 + $0xc9] sm:$0xff]
      %v2813 = vld [vmem:[%s2698 + $0xd9] sm:$0xff]
      %v2814 = vld [vmem:[%s2698 + $0xe1] sm:$0xff]
      %v2815 = vld [vmem:[%s2698 + $0xf1] sm:$0xff]
      %v2816 = vld [vmem:[%s2698 + $0xf9] sm:$0xff]
      %v2817 = vld [vmem:[%s2698 + $0x109] sm:$0xff]
      %v2818 = vld [vmem:[%s2698 + $0x111] sm:$0xff]
      %v2819 = vld [vmem:[%s2698 + $0x121] sm:$0xff]
      %v2820 = vld [vmem:[%s2698 + $0x129] sm:$0xff]
      %v2821 = vld [vmem:[%s2698 + $0x139] sm:$0xff]
      %v2822 = vld [vmem:[%s2698 + $0x141] sm:$0xff]
      %v2823 = vld [vmem:[%s2698 + $0x151] sm:$0xff]
      %v2824 = vld [vmem:[%s2698 + $0x159] sm:$0xff]
      %v2825 = vld [vmem:[%s2698 + $0x169] sm:$0xff]
      %v2826 = vld [vmem:[%s2698 + $0x171] sm:$0xff]
      %v2827 = vadd.f32 %v2795, %v1920
      %v2828 = vadd.f32 %v2796, %v1922
      %v2829 = vadd.f32 %v2797, %v1925
      %v2830 = vadd.f32 %v2798, %v1927
      %v2831 = vadd.f32 %v2799, %v1930
      %v2832 = vadd.f32 %v2800, %v1932
      %v2833 = vadd.f32 %v2801, %v1935
      %v2834 = vadd.f32 %v2802, %v1937
      %v2835 = vadd.f32 %v2803, %v1940
      %v2836 = vadd.f32 %v2804, %v1942
      %v2837 = vadd.f32 %v2805, %v1945
      %v2838 = vadd.f32 %v2806, %v1947
      %v2839 = vadd.f32 %v2807, %v1950
      %v2840 = vadd.f32 %v2808, %v1952
      %v2841 = vadd.f32 %v2809, %v1955
      %v2842 = vadd.f32 %v2810, %v1957
      %v2843 = vadd.f32 %v2811, %v1960
      %v2844 = vadd.f32 %v2812, %v1962
      %v2845 = vadd.f32 %v2813, %v1965
      %v2846 = vadd.f32 %v2814, %v1967
      %v2847 = vadd.f32 %v2815, %v1970
      %v2848 = vadd.f32 %v2816, %v1972
      %v2849 = vadd.f32 %v2817, %v1975
      %v2850 = vadd.f32 %v2818, %v1977
      %v2851 = vadd.f32 %v2819, %v1980
      %v2852 = vadd.f32 %v2820, %v1982
      %v2853 = vadd.f32 %v2821, %v1985
      %v2854 = vadd.f32 %v2822, %v1987
      %v2855 = vadd.f32 %v2823, %v1990
      %v2856 = vadd.f32 %v2824, %v1992
      %v2857 = vadd.f32 %v2825, %v1995
      %v2858 = vadd.f32 %v2826, %v1997
      %2859 = vst [vmem:[%s2698 + $0x1] sm:$0xff] %v2827
      %2860 = vst [vmem:[%s2698 + $0x9] sm:$0xff] %v2828
      %2861 = vst [vmem:[%s2698 + $0x19] sm:$0xff] %v2829
      %2862 = vst [vmem:[%s2698 + $0x21] sm:$0xff] %v2830
      %2863 = vst [vmem:[%s2698 + $0x31] sm:$0xff] %v2831
      %2864 = vst [vmem:[%s2698 + $0x39] sm:$0xff] %v2832
      %2865 = vst [vmem:[%s2698 + $0x49] sm:$0xff] %v2833
      %2866 = vst [vmem:[%s2698 + $0x51] sm:$0xff] %v2834
      %2867 = vst [vmem:[%s2698 + $0x61] sm:$0xff] %v2835
      %2868 = vst [vmem:[%s2698 + $0x69] sm:$0xff] %v2836
      %2869 = vst [vmem:[%s2698 + $0x79] sm:$0xff] %v2837
      %2870 = vst [vmem:[%s2698 + $0x81] sm:$0xff] %v2838
      %2871 = vst [vmem:[%s2698 + $0x91] sm:$0xff] %v2839
      %2872 = vst [vmem:[%s2698 + $0x99] sm:$0xff] %v2840
      %2873 = vst [vmem:[%s2698 + $0xa9] sm:$0xff] %v2841
      %2874 = vst [vmem:[%s2698 + $0xb1] sm:$0xff] %v2842
      %2875 = vst [vmem:[%s2698 + $0xc1] sm:$0xff] %v2843
      %2876 = vst [vmem:[%s2698 + $0xc9] sm:$0xff] %v2844
      %2877 = vst [vmem:[%s2698 + $0xd9] sm:$0xff] %v2845
      %2878 = vst [vmem:[%s2698 + $0xe1] sm:$0xff] %v2846
      %2879 = vst [vmem:[%s2698 + $0xf1] sm:$0xff] %v2847
      %2880 = vst [vmem:[%s2698 + $0xf9] sm:$0xff] %v2848
      %2881 = vst [vmem:[%s2698 + $0x109] sm:$0xff] %v2849
      %2882 = vst [vmem:[%s2698 + $0x111] sm:$0xff] %v2850
      %2883 = vst [vmem:[%s2698 + $0x121] sm:$0xff] %v2851
      %2884 = vst [vmem:[%s2698 + $0x129] sm:$0xff] %v2852
      %2885 = vst [vmem:[%s2698 + $0x139] sm:$0xff] %v2853
      %2886 = vst [vmem:[%s2698 + $0x141] sm:$0xff] %v2854
      %2887 = vst [vmem:[%s2698 + $0x151] sm:$0xff] %v2855
      %2888 = vst [vmem:[%s2698 + $0x159] sm:$0xff] %v2856
      %2889 = vst [vmem:[%s2698 + $0x169] sm:$0xff] %v2857
      %2890 = vst [vmem:[%s2698 + $0x171] sm:$0xff] %v2858
      %v2891 = vld [vmem:[%s2698] sm:$0xff]
      %v2892 = vld [vmem:[%s2698 + $0x8] sm:$0xff]
      %v2893 = vld [vmem:[%s2698 + $0x18] sm:$0xff]
      %v2894 = vld [vmem:[%s2698 + $0x20] sm:$0xff]
      %v2895 = vld [vmem:[%s2698 + $0x30] sm:$0xff]
      %v2896 = vld [vmem:[%s2698 + $0x38] sm:$0xff]
      %v2897 = vld [vmem:[%s2698 + $0x48] sm:$0xff]
      %v2898 = vld [vmem:[%s2698 + $0x50] sm:$0xff]
      %v2899 = vld [vmem:[%s2698 + $0x60] sm:$0xff]
      %v2900 = vld [vmem:[%s2698 + $0x68] sm:$0xff]
      %v2901 = vld [vmem:[%s2698 + $0x78] sm:$0xff]
      %v2902 = vld [vmem:[%s2698 + $0x80] sm:$0xff]
      %v2903 = vld [vmem:[%s2698 + $0x90] sm:$0xff]
      %v2904 = vld [vmem:[%s2698 + $0x98] sm:$0xff]
      %v2905 = vld [vmem:[%s2698 + $0xa8] sm:$0xff]
      %v2906 = vld [vmem:[%s2698 + $0xb0] sm:$0xff]
      %v2907 = vld [vmem:[%s2698 + $0xc0] sm:$0xff]
      %v2908 = vld [vmem:[%s2698 + $0xc8] sm:$0xff]
      %v2909 = vld [vmem:[%s2698 + $0xd8] sm:$0xff]
      %v2910 = vld [vmem:[%s2698 + $0xe0] sm:$0xff]
      %v2911 = vld [vmem:[%s2698 + $0xf0] sm:$0xff]
      %v2912 = vld [vmem:[%s2698 + $0xf8] sm:$0xff]
      %v2913 = vld [vmem:[%s2698 + $0x108] sm:$0xff]
      %v2914 = vld [vmem:[%s2698 + $0x110] sm:$0xff]
      %v2915 = vld [vmem:[%s2698 + $0x120] sm:$0xff]
      %v2916 = vld [vmem:[%s2698 + $0x128] sm:$0xff]
      %v2917 = vld [vmem:[%s2698 + $0x138] sm:$0xff]
      %v2918 = vld [vmem:[%s2698 + $0x140] sm:$0xff]
      %v2919 = vld [vmem:[%s2698 + $0x150] sm:$0xff]
      %v2920 = vld [vmem:[%s2698 + $0x158] sm:$0xff]
      %v2921 = vld [vmem:[%s2698 + $0x168] sm:$0xff]
      %v2922 = vld [vmem:[%s2698 + $0x170] sm:$0xff]
      %v2923 = vadd.f32 %v2891, %v2009
      %v2924 = vadd.f32 %v2892, %v2011
      %v2925 = vadd.f32 %v2893, %v2014
      %v2926 = vadd.f32 %v2894, %v2016
      %v2927 = vadd.f32 %v2895, %v2019
      %v2928 = vadd.f32 %v2896, %v2021
      %v2929 = vadd.f32 %v2897, %v2024
      %v2930 = vadd.f32 %v2898, %v2026
      %v2931 = vadd.f32 %v2899, %v2029
      %v2932 = vadd.f32 %v2900, %v2031
      %v2933 = vadd.f32 %v2901, %v2034
      %v2934 = vadd.f32 %v2902, %v2036
      %v2935 = vadd.f32 %v2903, %v2039
      %v2936 = vadd.f32 %v2904, %v2041
      %v2937 = vadd.f32 %v2905, %v2044
      %v2938 = vadd.f32 %v2906, %v2046
      %v2939 = vadd.f32 %v2907, %v2049
      %v2940 = vadd.f32 %v2908, %v2051
      %v2941 = vadd.f32 %v2909, %v2054
      %v2942 = vadd.f32 %v2910, %v2056
      %v2943 = vadd.f32 %v2911, %v2059
      %v2944 = vadd.f32 %v2912, %v2061
      %v2945 = vadd.f32 %v2913, %v2064
      %v2946 = vadd.f32 %v2914, %v2066
      %v2947 = vadd.f32 %v2915, %v2069
      %v2948 = vadd.f32 %v2916, %v2071
      %v2949 = vadd.f32 %v2917, %v2074
      %v2950 = vadd.f32 %v2918, %v2076
      %v2951 = vadd.f32 %v2919, %v2079
      %v2952 = vadd.f32 %v2920, %v2081
      %v2953 = vadd.f32 %v2921, %v2084
      %v2954 = vadd.f32 %v2922, %v2086
      %2955 = vst [vmem:[%s2698] sm:$0xff] %v2923
      %2956 = vst [vmem:[%s2698 + $0x8] sm:$0xff] %v2924
      %2957 = vst [vmem:[%s2698 + $0x18] sm:$0xff] %v2925
      %2958 = vst [vmem:[%s2698 + $0x20] sm:$0xff] %v2926
      %2959 = vst [vmem:[%s2698 + $0x30] sm:$0xff] %v2927
      %2960 = vst [vmem:[%s2698 + $0x38] sm:$0xff] %v2928
      %2961 = vst [vmem:[%s2698 + $0x48] sm:$0xff] %v2929
      %2962 = vst [vmem:[%s2698 + $0x50] sm:$0xff] %v2930
      %2963 = vst [vmem:[%s2698 + $0x60] sm:$0xff] %v2931
      %2964 = vst [vmem:[%s2698 + $0x68] sm:$0xff] %v2932
      %2965 = vst [vmem:[%s2698 + $0x78] sm:$0xff] %v2933
      %2966 = vst [vmem:[%s2698 + $0x80] sm:$0xff] %v2934
      %2967 = vst [vmem:[%s2698 + $0x90] sm:$0xff] %v2935
      %2968 = vst [vmem:[%s2698 + $0x98] sm:$0xff] %v2936
      %2969 = vst [vmem:[%s2698 + $0xa8] sm:$0xff] %v2937
      %2970 = vst [vmem:[%s2698 + $0xb0] sm:$0xff] %v2938
      %2971 = vst [vmem:[%s2698 + $0xc0] sm:$0xff] %v2939
      %2972 = vst [vmem:[%s2698 + $0xc8] sm:$0xff] %v2940
      %2973 = vst [vmem:[%s2698 + $0xd8] sm:$0xff] %v2941
      %2974 = vst [vmem:[%s2698 + $0xe0] sm:$0xff] %v2942
      %2975 = vst [vmem:[%s2698 + $0xf0] sm:$0xff] %v2943
      %2976 = vst [vmem:[%s2698 + $0xf8] sm:$0xff] %v2944
      %2977 = vst [vmem:[%s2698 + $0x108] sm:$0xff] %v2945
      %2978 = vst [vmem:[%s2698 + $0x110] sm:$0xff] %v2946
      %2979 = vst [vmem:[%s2698 + $0x120] sm:$0xff] %v2947
      %2980 = vst [vmem:[%s2698 + $0x128] sm:$0xff] %v2948
      %2981 = vst [vmem:[%s2698 + $0x138] sm:$0xff] %v2949
      %2982 = vst [vmem:[%s2698 + $0x140] sm:$0xff] %v2950
      %2983 = vst [vmem:[%s2698 + $0x150] sm:$0xff] %v2951
      %2984 = vst [vmem:[%s2698 + $0x158] sm:$0xff] %v2952
      %2985 = vst [vmem:[%s2698 + $0x168] sm:$0xff] %v2953
      %2986 = vst [vmem:[%s2698 + $0x170] sm:$0xff] %v2954
      %v2987 = vld [vmem:[#allocation2 + $0x2] sm:$0xff]
      %v2988 = vld [vmem:[#allocation2 + $0xa] sm:$0xff]
      %v2989 = vld [vmem:[#allocation2 + $0x1a] sm:$0xff]
      %v2990 = vld [vmem:[#allocation2 + $0x22] sm:$0xff]
      %v2991 = vld [vmem:[#allocation2 + $0x32] sm:$0xff]
      %v2992 = vld [vmem:[#allocation2 + $0x3a] sm:$0xff]
      %v2993 = vld [vmem:[#allocation2 + $0x4a] sm:$0xff]
      %v2994 = vld [vmem:[#allocation2 + $0x52] sm:$0xff]
      %v2995 = vld [vmem:[#allocation2 + $0x62] sm:$0xff]
      %v2996 = vld [vmem:[#allocation2 + $0x6a] sm:$0xff]
      %v2997 = vld [vmem:[#allocation2 + $0x7a] sm:$0xff]
      %v2998 = vld [vmem:[#allocation2 + $0x82] sm:$0xff]
      %v2999 = vld [vmem:[#allocation2 + $0x92] sm:$0xff]
      %v3000 = vld [vmem:[#allocation2 + $0x9a] sm:$0xff]
      %v3001 = vld [vmem:[#allocation2 + $0xaa] sm:$0xff]
      %v3002 = vld [vmem:[#allocation2 + $0xb2] sm:$0xff]
      %v3003 = vld [vmem:[#allocation2 + $0xc2] sm:$0xff]
      %v3004 = vld [vmem:[#allocation2 + $0xca] sm:$0xff]
      %v3005 = vld [vmem:[#allocation2 + $0xda] sm:$0xff]
      %v3006 = vld [vmem:[#allocation2 + $0xe2] sm:$0xff]
      %v3007 = vld [vmem:[#allocation2 + $0xf2] sm:$0xff]
      %v3008 = vld [vmem:[#allocation2 + $0xfa] sm:$0xff]
      %v3009 = vld [vmem:[#allocation2 + $0x10a] sm:$0xff]
      %v3010 = vld [vmem:[#allocation2 + $0x112] sm:$0xff]
      %v3011 = vld [vmem:[#allocation2 + $0x122] sm:$0xff]
      %v3012 = vld [vmem:[#allocation2 + $0x12a] sm:$0xff]
      %v3013 = vld [vmem:[#allocation2 + $0x13a] sm:$0xff]
      %v3014 = vld [vmem:[#allocation2 + $0x142] sm:$0xff]
      %v3015 = vld [vmem:[#allocation2 + $0x152] sm:$0xff]
      %v3016 = vld [vmem:[#allocation2 + $0x15a] sm:$0xff]
      %v3017 = vld [vmem:[#allocation2 + $0x16a] sm:$0xff]
      %v3018 = vld [vmem:[#allocation2 + $0x172] sm:$0xff]
      %v3019 = vadd.f32 %v2987, %v2098
      %v3020 = vadd.f32 %v2988, %v2100
      %v3021 = vadd.f32 %v2989, %v2103
      %v3022 = vadd.f32 %v2990, %v2105
      %v3023 = vadd.f32 %v2991, %v2108
      %v3024 = vadd.f32 %v2992, %v2110
      %v3025 = vadd.f32 %v2993, %v2113
      %v3026 = vadd.f32 %v2994, %v2115
      %v3027 = vadd.f32 %v2995, %v2118
      %v3028 = vadd.f32 %v2996, %v2120
      %v3029 = vadd.f32 %v2997, %v2123
      %v3030 = vadd.f32 %v2998, %v2125
      %v3031 = vadd.f32 %v2999, %v2128
      %v3032 = vadd.f32 %v3000, %v2130
      %v3033 = vadd.f32 %v3001, %v2133
      %v3034 = vadd.f32 %v3002, %v2135
      %v3035 = vadd.f32 %v3003, %v2138
      %v3036 = vadd.f32 %v3004, %v2140
      %v3037 = vadd.f32 %v3005, %v2143
      %v3038 = vadd.f32 %v3006, %v2145
      %v3039 = vadd.f32 %v3007, %v2148
      %v3040 = vadd.f32 %v3008, %v2150
      %v3041 = vadd.f32 %v3009, %v2153
      %v3042 = vadd.f32 %v3010, %v2155
      %v3043 = vadd.f32 %v3011, %v2158
      %v3044 = vadd.f32 %v3012, %v2160
      %v3045 = vadd.f32 %v3013, %v2163
      %v3046 = vadd.f32 %v3014, %v2165
      %v3047 = vadd.f32 %v3015, %v2168
      %v3048 = vadd.f32 %v3016, %v2170
      %v3049 = vadd.f32 %v3017, %v2173
      %v3050 = vadd.f32 %v3018, %v2175
      %3051 = vst [vmem:[#allocation2 + $0x2] sm:$0xff] %v3019
      %3052 = vst [vmem:[#allocation2 + $0xa] sm:$0xff] %v3020
      %3053 = vst [vmem:[#allocation2 + $0x1a] sm:$0xff] %v3021
      %3054 = vst [vmem:[#allocation2 + $0x22] sm:$0xff] %v3022
      %3055 = vst [vmem:[#allocation2 + $0x32] sm:$0xff] %v3023
      %3056 = vst [vmem:[#allocation2 + $0x3a] sm:$0xff] %v3024
      %3057 = vst [vmem:[#allocation2 + $0x4a] sm:$0xff] %v3025
      %3058 = vst [vmem:[#allocation2 + $0x52] sm:$0xff] %v3026
      %3059 = vst [vmem:[#allocation2 + $0x62] sm:$0xff] %v3027
      %3060 = vst [vmem:[#allocation2 + $0x6a] sm:$0xff] %v3028
      %3061 = vst [vmem:[#allocation2 + $0x7a] sm:$0xff] %v3029
      %3062 = vst [vmem:[#allocation2 + $0x82] sm:$0xff] %v3030
      %3063 = vst [vmem:[#allocation2 + $0x92] sm:$0xff] %v3031
      %3064 = vst [vmem:[#allocation2 + $0x9a] sm:$0xff] %v3032
      %3065 = vst [vmem:[#allocation2 + $0xaa] sm:$0xff] %v3033
      %3066 = vst [vmem:[#allocation2 + $0xb2] sm:$0xff] %v3034
      %3067 = vst [vmem:[#allocation2 + $0xc2] sm:$0xff] %v3035
      %3068 = vst [vmem:[#allocation2 + $0xca] sm:$0xff] %v3036
      %3069 = vst [vmem:[#allocation2 + $0xda] sm:$0xff] %v3037
      %3070 = vst [vmem:[#allocation2 + $0xe2] sm:$0xff] %v3038
      %3071 = vst [vmem:[#allocation2 + $0xf2] sm:$0xff] %v3039
      %3072 = vst [vmem:[#allocation2 + $0xfa] sm:$0xff] %v3040
      %3073 = vst [vmem:[#allocation2 + $0x10a] sm:$0xff] %v3041
      %3074 = vst [vmem:[#allocation2 + $0x112] sm:$0xff] %v3042
      %3075 = vst [vmem:[#allocation2 + $0x122] sm:$0xff] %v3043
      %3076 = vst [vmem:[#allocation2 + $0x12a] sm:$0xff] %v3044
      %3077 = vst [vmem:[#allocation2 + $0x13a] sm:$0xff] %v3045
      %3078 = vst [vmem:[#allocation2 + $0x142] sm:$0xff] %v3046
      %3079 = vst [vmem:[#allocation2 + $0x152] sm:$0xff] %v3047
      %3080 = vst [vmem:[#allocation2 + $0x15a] sm:$0xff] %v3048
      %3081 = vst [vmem:[#allocation2 + $0x16a] sm:$0xff] %v3049
      %3082 = vst [vmem:[#allocation2 + $0x172] sm:$0xff] %v3050
      %v3083 = vld [vmem:[#allocation2 + $0x1] sm:$0xff]
      %v3084 = vld [vmem:[#allocation2 + $0x9] sm:$0xff]
      %v3085 = vld [vmem:[#allocation2 + $0x19] sm:$0xff]
      %v3086 = vld [vmem:[#allocation2 + $0x21] sm:$0xff]
      %v3087 = vld [vmem:[#allocation2 + $0x31] sm:$0xff]
      %v3088 = vld [vmem:[#allocation2 + $0x39] sm:$0xff]
      %v3089 = vld [vmem:[#allocation2 + $0x49] sm:$0xff]
      %v3090 = vld [vmem:[#allocation2 + $0x51] sm:$0xff]
      %v3091 = vld [vmem:[#allocation2 + $0x61] sm:$0xff]
      %v3092 = vld [vmem:[#allocation2 + $0x69] sm:$0xff]
      %v3093 = vld [vmem:[#allocation2 + $0x79] sm:$0xff]
      %v3094 = vld [vmem:[#allocation2 + $0x81] sm:$0xff]
      %v3095 = vld [vmem:[#allocation2 + $0x91] sm:$0xff]
      %v3096 = vld [vmem:[#allocation2 + $0x99] sm:$0xff]
      %v3097 = vld [vmem:[#allocation2 + $0xa9] sm:$0xff]
      %v3098 = vld [vmem:[#allocation2 + $0xb1] sm:$0xff]
      %v3099 = vld [vmem:[#allocation2 + $0xc1] sm:$0xff]
      %v3100 = vld [vmem:[#allocation2 + $0xc9] sm:$0xff]
      %v3101 = vld [vmem:[#allocation2 + $0xd9] sm:$0xff]
      %v3102 = vld [vmem:[#allocation2 + $0xe1] sm:$0xff]
      %v3103 = vld [vmem:[#allocation2 + $0xf1] sm:$0xff]
      %v3104 = vld [vmem:[#allocation2 + $0xf9] sm:$0xff]
      %v3105 = vld [vmem:[#allocation2 + $0x109] sm:$0xff]
      %v3106 = vld [vmem:[#allocation2 + $0x111] sm:$0xff]
      %v3107 = vld [vmem:[#allocation2 + $0x121] sm:$0xff]
      %v3108 = vld [vmem:[#allocation2 + $0x129] sm:$0xff]
      %v3109 = vld [vmem:[#allocation2 + $0x139] sm:$0xff]
      %v3110 = vld [vmem:[#allocation2 + $0x141] sm:$0xff]
      %v3111 = vld [vmem:[#allocation2 + $0x151] sm:$0xff]
      %v3112 = vld [vmem:[#allocation2 + $0x159] sm:$0xff]
      %v3113 = vld [vmem:[#allocation2 + $0x169] sm:$0xff]
      %v3114 = vld [vmem:[#allocation2 + $0x171] sm:$0xff]
      %v3115 = vadd.f32 %v3083, %v2187
      %v3116 = vadd.f32 %v3084, %v2189
      %v3117 = vadd.f32 %v3085, %v2192
      %v3118 = vadd.f32 %v3086, %v2194
      %v3119 = vadd.f32 %v3087, %v2197
      %v3120 = vadd.f32 %v3088, %v2199
      %v3121 = vadd.f32 %v3089, %v2202
      %v3122 = vadd.f32 %v3090, %v2204
      %v3123 = vadd.f32 %v3091, %v2207
      %v3124 = vadd.f32 %v3092, %v2209
      %v3125 = vadd.f32 %v3093, %v2212
      %v3126 = vadd.f32 %v3094, %v2214
      %v3127 = vadd.f32 %v3095, %v2217
      %v3128 = vadd.f32 %v3096, %v2219
      %v3129 = vadd.f32 %v3097, %v2222
      %v3130 = vadd.f32 %v3098, %v2224
      %v3131 = vadd.f32 %v3099, %v2227
      %v3132 = vadd.f32 %v3100, %v2229
      %v3133 = vadd.f32 %v3101, %v2232
      %v3134 = vadd.f32 %v3102, %v2234
      %v3135 = vadd.f32 %v3103, %v2237
      %v3136 = vadd.f32 %v3104, %v2239
      %v3137 = vadd.f32 %v3105, %v2242
      %v3138 = vadd.f32 %v3106, %v2244
      %v3139 = vadd.f32 %v3107, %v2247
      %v3140 = vadd.f32 %v3108, %v2249
      %v3141 = vadd.f32 %v3109, %v2252
      %v3142 = vadd.f32 %v3110, %v2254
      %v3143 = vadd.f32 %v3111, %v2257
      %v3144 = vadd.f32 %v3112, %v2259
      %v3145 = vadd.f32 %v3113, %v2262
      %v3146 = vadd.f32 %v3114, %v2264
      %3147 = vst [vmem:[#allocation2 + $0x1] sm:$0xff] %v3115
      %3148 = vst [vmem:[#allocation2 + $0x9] sm:$0xff] %v3116
      %3149 = vst [vmem:[#allocation2 + $0x19] sm:$0xff] %v3117
      %3150 = vst [vmem:[#allocation2 + $0x21] sm:$0xff] %v3118
      %3151 = vst [vmem:[#allocation2 + $0x31] sm:$0xff] %v3119
      %3152 = vst [vmem:[#allocation2 + $0x39] sm:$0xff] %v3120
      %3153 = vst [vmem:[#allocation2 + $0x49] sm:$0xff] %v3121
      %3154 = vst [vmem:[#allocation2 + $0x51] sm:$0xff] %v3122
      %3155 = vst [vmem:[#allocation2 + $0x61] sm:$0xff] %v3123
      %3156 = vst [vmem:[#allocation2 + $0x69] sm:$0xff] %v3124
      %3157 = vst [vmem:[#allocation2 + $0x79] sm:$0xff] %v3125
      %3158 = vst [vmem:[#allocation2 + $0x81] sm:$0xff] %v3126
      %3159 = vst [vmem:[#allocation2 + $0x91] sm:$0xff] %v3127
      %3160 = vst [vmem:[#allocation2 + $0x99] sm:$0xff] %v3128
      %3161 = vst [vmem:[#allocation2 + $0xa9] sm:$0xff] %v3129
      %3162 = vst [vmem:[#allocation2 + $0xb1] sm:$0xff] %v3130
      %3163 = vst [vmem:[#allocation2 + $0xc1] sm:$0xff] %v3131
      %3164 = vst [vmem:[#allocation2 + $0xc9] sm:$0xff] %v3132
      %3165 = vst [vmem:[#allocation2 + $0xd9] sm:$0xff] %v3133
      %3166 = vst [vmem:[#allocation2 + $0xe1] sm:$0xff] %v3134
      %3167 = vst [vmem:[#allocation2 + $0xf1] sm:$0xff] %v3135
      %3168 = vst [vmem:[#allocation2 + $0xf9] sm:$0xff] %v3136
      %3169 = vst [vmem:[#allocation2 + $0x109] sm:$0xff] %v3137
      %3170 = vst [vmem:[#allocation2 + $0x111] sm:$0xff] %v3138
      %3171 = vst [vmem:[#allocation2 + $0x121] sm:$0xff] %v3139
      %3172 = vst [vmem:[#allocation2 + $0x129] sm:$0xff] %v3140
      %3173 = vst [vmem:[#allocation2 + $0x139] sm:$0xff] %v3141
      %3174 = vst [vmem:[#allocation2 + $0x141] sm:$0xff] %v3142
      %3175 = vst [vmem:[#allocation2 + $0x151] sm:$0xff] %v3143
      %3176 = vst [vmem:[#allocation2 + $0x159] sm:$0xff] %v3144
      %3177 = vst [vmem:[#allocation2 + $0x169] sm:$0xff] %v3145
      %3178 = vst [vmem:[#allocation2 + $0x171] sm:$0xff] %v3146
      %v3179 = vld [vmem:[#allocation2] sm:$0xff]
      %v3180 = vld [vmem:[#allocation2 + $0x8] sm:$0xff]
      %v3181 = vld [vmem:[#allocation2 + $0x18] sm:$0xff]
      %v3182 = vld [vmem:[#allocation2 + $0x20] sm:$0xff]
      %v3183 = vld [vmem:[#allocation2 + $0x30] sm:$0xff]
      %v3184 = vld [vmem:[#allocation2 + $0x38] sm:$0xff]
      %v3185 = vld [vmem:[#allocation2 + $0x48] sm:$0xff]
      %v3186 = vld [vmem:[#allocation2 + $0x50] sm:$0xff]
      %v3187 = vld [vmem:[#allocation2 + $0x60] sm:$0xff]
      %v3188 = vld [vmem:[#allocation2 + $0x68] sm:$0xff]
      %v3189 = vld [vmem:[#allocation2 + $0x78] sm:$0xff]
      %v3190 = vld [vmem:[#allocation2 + $0x80] sm:$0xff]
      %v3191 = vld [vmem:[#allocation2 + $0x90] sm:$0xff]
      %v3192 = vld [vmem:[#allocation2 + $0x98] sm:$0xff]
      %v3193 = vld [vmem:[#allocation2 + $0xa8] sm:$0xff]
      %v3194 = vld [vmem:[#allocation2 + $0xb0] sm:$0xff]
      %v3195 = vld [vmem:[#allocation2 + $0xc0] sm:$0xff]
      %v3196 = vld [vmem:[#allocation2 + $0xc8] sm:$0xff]
      %v3197 = vld [vmem:[#allocation2 + $0xd8] sm:$0xff]
      %v3198 = vld [vmem:[#allocation2 + $0xe0] sm:$0xff]
      %v3199 = vld [vmem:[#allocation2 + $0xf0] sm:$0xff]
      %v3200 = vld [vmem:[#allocation2 + $0xf8] sm:$0xff]
      %v3201 = vld [vmem:[#allocation2 + $0x108] sm:$0xff]
      %v3202 = vld [vmem:[#allocation2 + $0x110] sm:$0xff]
      %v3203 = vld [vmem:[#allocation2 + $0x120] sm:$0xff]
      %v3204 = vld [vmem:[#allocation2 + $0x128] sm:$0xff]
      %v3205 = vld [vmem:[#allocation2 + $0x138] sm:$0xff]
      %v3206 = vld [vmem:[#allocation2 + $0x140] sm:$0xff]
      %v3207 = vld [vmem:[#allocation2 + $0x150] sm:$0xff]
      %v3208 = vld [vmem:[#allocation2 + $0x158] sm:$0xff]
      %v3209 = vld [vmem:[#allocation2 + $0x168] sm:$0xff]
      %v3210 = vld [vmem:[#allocation2 + $0x170] sm:$0xff]
      %v3211 = vadd.f32 %v3179, %v2276
      %v3212 = vadd.f32 %v3180, %v2278
      %v3213 = vadd.f32 %v3181, %v2281
      %v3214 = vadd.f32 %v3182, %v2283
      %v3215 = vadd.f32 %v3183, %v2286
      %v3216 = vadd.f32 %v3184, %v2288
      %v3217 = vadd.f32 %v3185, %v2291
      %v3218 = vadd.f32 %v3186, %v2293
      %v3219 = vadd.f32 %v3187, %v2296
      %v3220 = vadd.f32 %v3188, %v2298
      %v3221 = vadd.f32 %v3189, %v2301
      %v3222 = vadd.f32 %v3190, %v2303
      %v3223 = vadd.f32 %v3191, %v2306
      %v3224 = vadd.f32 %v3192, %v2308
      %v3225 = vadd.f32 %v3193, %v2311
      %v3226 = vadd.f32 %v3194, %v2313
      %v3227 = vadd.f32 %v3195, %v2316
      %v3228 = vadd.f32 %v3196, %v2318
      %v3229 = vadd.f32 %v3197, %v2321
      %v3230 = vadd.f32 %v3198, %v2323
      %v3231 = vadd.f32 %v3199, %v2326
      %v3232 = vadd.f32 %v3200, %v2328
      %v3233 = vadd.f32 %v3201, %v2331
      %v3234 = vadd.f32 %v3202, %v2333
      %v3235 = vadd.f32 %v3203, %v2336
      %v3236 = vadd.f32 %v3204, %v2338
      %v3237 = vadd.f32 %v3205, %v2341
      %v3238 = vadd.f32 %v3206, %v2343
      %v3239 = vadd.f32 %v3207, %v2346
      %v3240 = vadd.f32 %v3208, %v2348
      %v3241 = vadd.f32 %v3209, %v2351
      %v3242 = vadd.f32 %v3210, %v2353
      %3243 = vst [vmem:[#allocation2] sm:$0xff] %v3211
      %3244 = vst [vmem:[#allocation2 + $0x8] sm:$0xff] %v3212
      %3245 = vst [vmem:[#allocation2 + $0x18] sm:$0xff] %v3213
      %3246 = vst [vmem:[#allocation2 + $0x20] sm:$0xff] %v3214
      %3247 = vst [vmem:[#allocation2 + $0x30] sm:$0xff] %v3215
      %3248 = vst [vmem:[#allocation2 + $0x38] sm:$0xff] %v3216
      %3249 = vst [vmem:[#allocation2 + $0x48] sm:$0xff] %v3217
      %3250 = vst [vmem:[#allocation2 + $0x50] sm:$0xff] %v3218
      %3251 = vst [vmem:[#allocation2 + $0x60] sm:$0xff] %v3219
      %3252 = vst [vmem:[#allocation2 + $0x68] sm:$0xff] %v3220
      %3253 = vst [vmem:[#allocation2 + $0x78] sm:$0xff] %v3221
      %3254 = vst [vmem:[#allocation2 + $0x80] sm:$0xff] %v3222
      %3255 = vst [vmem:[#allocation2 + $0x90] sm:$0xff] %v3223
      %3256 = vst [vmem:[#allocation2 + $0x98] sm:$0xff] %v3224
      %3257 = vst [vmem:[#allocation2 + $0xa8] sm:$0xff] %v3225
      %3258 = vst [vmem:[#allocation2 + $0xb0] sm:$0xff] %v3226
      %3259 = vst [vmem:[#allocation2 + $0xc0] sm:$0xff] %v3227
      %3260 = vst [vmem:[#allocation2 + $0xc8] sm:$0xff] %v3228
      %3261 = vst [vmem:[#allocation2 + $0xd8] sm:$0xff] %v3229
      %3262 = vst [vmem:[#allocation2 + $0xe0] sm:$0xff] %v3230
      %3263 = vst [vmem:[#allocation2 + $0xf0] sm:$0xff] %v3231
      %3264 = vst [vmem:[#allocation2 + $0xf8] sm:$0xff] %v3232
      %3265 = vst [vmem:[#allocation2 + $0x108] sm:$0xff] %v3233
      %3266 = vst [vmem:[#allocation2 + $0x110] sm:$0xff] %v3234
      %3267 = vst [vmem:[#allocation2 + $0x120] sm:$0xff] %v3235
      %3268 = vst [vmem:[#allocation2 + $0x128] sm:$0xff] %v3236
      %3269 = vst [vmem:[#allocation2 + $0x138] sm:$0xff] %v3237
      %3270 = vst [vmem:[#allocation2 + $0x140] sm:$0xff] %v3238
      %3271 = vst [vmem:[#allocation2 + $0x150] sm:$0xff] %v3239
      %3272 = vst [vmem:[#allocation2 + $0x158] sm:$0xff] %v3240
      %3273 = vst [vmem:[#allocation2 + $0x168] sm:$0xff] %v3241
      %3274 = vst [vmem:[#allocation2 + $0x170] sm:$0xff] %v3242
      %v3275 = vld [vmem:[%s2698 + $0x1] sm:$0xff]
      %v3276 = vld [vmem:[%s2698 + $0x9] sm:$0xff]
      %v3277 = vld [vmem:[%s2698 + $0x19] sm:$0xff]
      %v3278 = vld [vmem:[%s2698 + $0x21] sm:$0xff]
      %v3279 = vld [vmem:[%s2698 + $0x31] sm:$0xff]
      %v3280 = vld [vmem:[%s2698 + $0x39] sm:$0xff]
      %v3281 = vld [vmem:[%s2698 + $0x49] sm:$0xff]
      %v3282 = vld [vmem:[%s2698 + $0x51] sm:$0xff]
      %v3283 = vld [vmem:[%s2698 + $0x61] sm:$0xff]
      %v3284 = vld [vmem:[%s2698 + $0x69] sm:$0xff]
      %v3285 = vld [vmem:[%s2698 + $0x79] sm:$0xff]
      %v3286 = vld [vmem:[%s2698 + $0x81] sm:$0xff]
      %v3287 = vld [vmem:[%s2698 + $0x91] sm:$0xff]
      %v3288 = vld [vmem:[%s2698 + $0x99] sm:$0xff]
      %v3289 = vld [vmem:[%s2698 + $0xa9] sm:$0xff]
      %v3290 = vld [vmem:[%s2698 + $0xb1] sm:$0xff]
      %v3291 = vld [vmem:[%s2698 + $0xc1] sm:$0xff]
      %v3292 = vld [vmem:[%s2698 + $0xc9] sm:$0xff]
      %v3293 = vld [vmem:[%s2698 + $0xd9] sm:$0xff]
      %v3294 = vld [vmem:[%s2698 + $0xe1] sm:$0xff]
      %v3295 = vld [vmem:[%s2698 + $0xf1] sm:$0xff]
      %v3296 = vld [vmem:[%s2698 + $0xf9] sm:$0xff]
      %v3297 = vld [vmem:[%s2698 + $0x109] sm:$0xff]
      %v3298 = vld [vmem:[%s2698 + $0x111] sm:$0xff]
      %v3299 = vld [vmem:[%s2698 + $0x121] sm:$0xff]
      %v3300 = vld [vmem:[%s2698 + $0x129] sm:$0xff]
      %v3301 = vld [vmem:[%s2698 + $0x139] sm:$0xff]
      %v3302 = vld [vmem:[%s2698 + $0x141] sm:$0xff]
      %v3303 = vld [vmem:[%s2698 + $0x151] sm:$0xff]
      %v3304 = vld [vmem:[%s2698 + $0x159] sm:$0xff]
      %v3305 = vld [vmem:[%s2698 + $0x169] sm:$0xff]
      %v3306 = vld [vmem:[%s2698 + $0x171] sm:$0xff]
      %v3307 = vld [vmem:[%s310] sm:$0x1]
      %v3309 = vperm.slane %v3307, 0
      %v3311 = vadd.f32 %v3275, %v3309
      %v3312 = vadd.f32 %v3276, %v3309
      %v3313 = vadd.f32 %v3277, %v3309
      %v3314 = vadd.f32 %v3278, %v3309
      %v3315 = vadd.f32 %v3279, %v3309
      %v3316 = vadd.f32 %v3280, %v3309
      %v3317 = vadd.f32 %v3281, %v3309
      %v3318 = vadd.f32 %v3282, %v3309
      %v3319 = vadd.f32 %v3283, %v3309
      %v3320 = vadd.f32 %v3284, %v3309
      %v3321 = vadd.f32 %v3285, %v3309
      %v3322 = vadd.f32 %v3286, %v3309
      %v3323 = vadd.f32 %v3287, %v3309
      %v3324 = vadd.f32 %v3288, %v3309
      %v3325 = vadd.f32 %v3289, %v3309
      %v3326 = vadd.f32 %v3290, %v3309
      %v3327 = vadd.f32 %v3291, %v3309
      %v3328 = vadd.f32 %v3292, %v3309
      %v3329 = vadd.f32 %v3293, %v3309
      %v3330 = vadd.f32 %v3294, %v3309
      %v3331 = vadd.f32 %v3295, %v3309
      %v3332 = vadd.f32 %v3296, %v3309
      %v3333 = vadd.f32 %v3297, %v3309
      %v3334 = vadd.f32 %v3298, %v3309
      %v3335 = vadd.f32 %v3299, %v3309
      %v3336 = vadd.f32 %v3300, %v3309
      %v3337 = vadd.f32 %v3301, %v3309
      %v3338 = vadd.f32 %v3302, %v3309
      %v3339 = vadd.f32 %v3303, %v3309
      %v3340 = vadd.f32 %v3304, %v3309
      %v3341 = vadd.f32 %v3305, %v3309
      %v3342 = vadd.f32 %v3306, %v3309
      %v3343 = vmax.f32 %v3311, 0.0
      %v3344 = vmax.f32 %v3312, 0.0
      %v3345 = vmax.f32 %v3313, 0.0
      %v3346 = vmax.f32 %v3314, 0.0
      %v3347 = vmax.f32 %v3315, 0.0
      %v3348 = vmax.f32 %v3316, 0.0
      %v3349 = vmax.f32 %v3317, 0.0
      %v3350 = vmax.f32 %v3318, 0.0
      %v3351 = vmax.f32 %v3319, 0.0
      %v3352 = vmax.f32 %v3320, 0.0
      %v3353 = vmax.f32 %v3321, 0.0
      %v3354 = vmax.f32 %v3322, 0.0
      %v3355 = vmax.f32 %v3323, 0.0
      %v3356 = vmax.f32 %v3324, 0.0
      %v3357 = vmax.f32 %v3325, 0.0
      %v3358 = vmax.f32 %v3326, 0.0
      %v3359 = vmax.f32 %v3327, 0.0
      %v3360 = vmax.f32 %v3328, 0.0
      %v3361 = vmax.f32 %v3329, 0.0
      %v3362 = vmax.f32 %v3330, 0.0
      %v3363 = vmax.f32 %v3331, 0.0
      %v3364 = vmax.f32 %v3332, 0.0
      %v3365 = vmax.f32 %v3333, 0.0
      %v3366 = vmax.f32 %v3334, 0.0
      %v3367 = vmax.f32 %v3335, 0.0
      %v3368 = vmax.f32 %v3336, 0.0
      %v3369 = vmax.f32 %v3337, 0.0
      %v3370 = vmax.f32 %v3338, 0.0
      %v3371 = vmax.f32 %v3339, 0.0
      %v3372 = vmax.f32 %v3340, 0.0
      %v3373 = vmax.f32 %v3341, 0.0
      %v3374 = vmax.f32 %v3342, 0.0
      %3375 = vst [vmem:[%s318] sm:$0xff] %v3343
      %3376 = vst [vmem:[%s318 + $0x8] sm:$0xff] %v3344
      %3377 = vst [vmem:[%s318 + $0x10] sm:$0xff] %v3345
      %3378 = vst [vmem:[%s318 + $0x18] sm:$0xff] %v3346
      %3379 = vst [vmem:[%s318 + $0x20] sm:$0xff] %v3347
      %3380 = vst [vmem:[%s318 + $0x28] sm:$0xff] %v3348
      %3381 = vst [vmem:[%s318 + $0x30] sm:$0xff] %v3349
      %3382 = vst [vmem:[%s318 + $0x38] sm:$0xff] %v3350
      %3383 = vst [vmem:[%s318 + $0x40] sm:$0xff] %v3351
      %3384 = vst [vmem:[%s318 + $0x48] sm:$0xff] %v3352
      %3385 = vst [vmem:[%s318 + $0x50] sm:$0xff] %v3353
      %3386 = vst [vmem:[%s318 + $0x58] sm:$0xff] %v3354
      %3387 = vst [vmem:[%s318 + $0x60] sm:$0xff] %v3355
      %3388 = vst [vmem:[%s318 + $0x68] sm:$0xff] %v3356
      %3389 = vst [vmem:[%s318 + $0x70] sm:$0xff] %v3357
      %3390 = vst [vmem:[%s318 + $0x78] sm:$0xff] %v3358
      %3391 = vst [vmem:[%s318 + $0x80] sm:$0xff] %v3359
      %3392 = vst [vmem:[%s318 + $0x88] sm:$0xff] %v3360
      %3393 = vst [vmem:[%s318 + $0x90] sm:$0xff] %v3361
      %3394 = vst [vmem:[%s318 + $0x98] sm:$0xff] %v3362
      %3395 = vst [vmem:[%s318 + $0xa0] sm:$0xff] %v3363
      %3396 = vst [vmem:[%s318 + $0xa8] sm:$0xff] %v3364
      %3397 = vst [vmem:[%s318 + $0xb0] sm:$0xff] %v3365
      %3398 = vst [vmem:[%s318 + $0xb8] sm:$0xff] %v3366
      %3399 = vst [vmem:[%s318 + $0xc0] sm:$0xff] %v3367
      %3400 = vst [vmem:[%s318 + $0xc8] sm:$0xff] %v3368
      %3401 = vst [vmem:[%s318 + $0xd0] sm:$0xff] %v3369
      %3402 = vst [vmem:[%s318 + $0xd8] sm:$0xff] %v3370
      %3403 = vst [vmem:[%s318 + $0xe0] sm:$0xff] %v3371
      %3404 = vst [vmem:[%s318 + $0xe8] sm:$0xff] %v3372
      %3405 = vst [vmem:[%s318 + $0xf0] sm:$0xff] %v3373
      %3406 = vst [vmem:[%s318 + $0xf8] sm:$0xff] %v3374
      %p3407 = scmp.lt.s32.totalorder %s20, 1
      %s3408 = scalar_select %p3407, %s20, 1
      %p3409 = scmp.lt.s32.totalorder %s21, 0
      %s3410 = scalar_select %p3409, %s21, 0
      %s3411 = smul.addr %s3408, 32
      %s3412 = sadd.s32 %s3410, %s3411
      %s3413 = smul.addr %s3412, 8
      %s3414 = scalar_lea.vmem %s5, %s3413
      // Predicated region
      $region41: #{psp_module_forward.1} parent=39 // pred_check
        %p3415 = pneg %p178
      $region42: #{psp_module_forward.1} parent=39 // pred_check_branch
        %3417 = sbr.rel (%p3415) target = $region44
      $region43: #{psp_module_forward.1} parent=39 // pred_region
        _
      $region44: #{psp_module_forward.1} parent=39 // pred_fallthru
        _
    $region40: #{psp_module_forward.1} parent=5 // pred_fallthru
      _
    %p3418 = scmp.le.s32.totalorder 2, %s11
    // Predicated region
    $region45: #{psp_module_forward.1} parent=5 // pred_check
      %p3419 = pneg %p3418
    $region46: #{psp_module_forward.1} parent=5 // pred_check_branch
      %3421 = sbr.rel (%p3419) target = $region48
    $region47: #{psp_module_forward.1} parent=5 // pred_region
      %s3422 = ssub.s32 %s11, 2
      // Predicated region
      $region49: #{psp_module_forward.1} parent=47 // pred_check
        %p3423 = pneg %p184
      $region50: #{psp_module_forward.1} parent=47 // pred_check_branch
        %3425 = sbr.rel (%p3423) target = $region52
      $region51: #{psp_module_forward.1} parent=47 // pred_region
        %p3426 = scmp.lt.s32.totalorder %s22, 1
        %s3427 = scalar_select %p3426, %s22, 1
        %p3428 = scmp.lt.s32.totalorder %s23, 0
        %s3429 = scalar_select %p3428, %s23, 0
        %s3430 = smul.addr %s3427, 32
        %s3431 = sadd.s32 %s3429, %s3430
        %s3432 = smul.addr %s3431, 8
        %s3433 = scalar_lea.vmem %s5, %s3432
      $region52: #{psp_module_forward.1} parent=47 // pred_fallthru
        _
    $region48: #{psp_module_forward.1} parent=5 // pred_fallthru
      _
  $region6: #{psp_module_forward.1} parent=0 // loop_footer
    %s15 = sadd.s32 1, %s11
  $region7: #{psp_module_forward.1} parent=0 // loop_footer_branch
    %10 = sbr.rel target = $region3
  $region8: #{psp_module_forward.1} parent=0 // loop_exit
    _

</llo_original>
